<compile_context>
chip_gen: v7x
topology: tpu7x:2x2x1
jax: 0.10.0
libtpu: 0.0.40
codegen_flags: <defaults>
</compile_context>

<pallas_src>
import functools

import numpy as np
import jax
import jax.numpy as jnp
from jax import lax
from jax.experimental import pallas as pl
from jax.experimental.pallas import tpu as pltpu

EPS = 1e-5          # PyTorch GroupNorm default eps
NUM_GROUPS = 8


def _round_up(x, m):
    return (x + m - 1) // m * m


# ------------------------------ Pallas kernel ------------------------------
def _conv_block_kernel(chunks, hw_deltas, hw_plane, lpad, pe, pext, cout,
                       x_ref, mask_ref, a_ref,
                       w1_ref, b1_ref, g1_ref, be1_ref,
                       w2_ref, b2_ref, g2_ref, be2_ref,
                       out_ref, y1_ref):
    """One batch element: conv1 -> GN -> ReLU -> conv2 -> GN -> ReLU."""

    def conv_pass(src_ref, w_ref, b_ref, dst_ref, dst_base):
        # src_ref: (C, PEXT) bf16 with zero conv-halos / aprons / tail.
        # Writes the *pre-GN* conv result (bf16) chunk by chunk into dst_ref and
        # accumulates the masked f32 GroupNorm sums on the fly.
        s1 = jnp.zeros((cout, 1), jnp.float32)
        s2 = jnp.zeros((cout, 1), jnp.float32)
        for c0, cl in chunks:
            acc = None
            for kd in range(3):                      # kd-chunked accumulation (K = 9*C)
                off = lpad + c0 + (kd - 1) * hw_plane
                taps = [src_ref[:, off + d: off + d + cl] for d in hw_deltas]
                patch = jnp.concatenate(taps, axis=0)             # (9*C, cl) bf16
                part = jnp.dot(w_ref[kd], patch,                  # MXU, f32 acc
                               preferred_element_type=jnp.float32)
                acc = part if acc is None else acc + part
            acc = acc + b_ref[...]                                # (cout, cl) f32
            mk = mask_ref[:, c0:c0 + cl].astype(jnp.float32)      # (1, cl) interior mask
            am = acc * mk
            s1 = s1 + jnp.sum(am, axis=1, keepdims=True)
            s2 = s2 + jnp.sum(am * acc, axis=1, keepdims=True)
            dst_ref[:, dst_base + c0: dst_base + c0 + cl] = acc.astype(dst_ref.dtype)
        return s1, s2

    def gn_relu_pass(dst_ref, dst_base, s1, s2, gamma_ref, beta_ref):
        # One folded (cout,cout)x(cout,2) dot gives per-channel group mean / E[x^2].
        stats = jnp.dot(a_ref[...], jnp.concatenate([s1, s2], axis=1),
                        preferred_element_type=jnp.float32)       # (cout, 2)
        mean = stats[:, 0:1]
        var = stats[:, 1:2] - mean * mean
        scale = gamma_ref[...] * lax.rsqrt(var + EPS)             # EUP
        shift = beta_ref[...] - mean * scale
        for c0, cl in chunks:                                     # VMEM-local, VPU only
            v = dst_ref[:, dst_base + c0: dst_base + c0 + cl].astype(jnp.float32)
            mk = mask_ref[:, c0:c0 + cl].astype(jnp.float32)
            y = jnp.maximum(v * scale + shift, 0.0) * mk          # ReLU + re-zero halos/tail
            dst_ref[:, dst_base + c0: dst_base + c0 + cl] = y.astype(dst_ref.dtype)

    # Zero the lane aprons of the conv2-input scratch; its interior is overwritten below.
    zeros_apron = jnp.zeros((cout, lpad), y1_ref.dtype)
    y1_ref[:, 0:lpad] = zeros_apron
    y1_ref[:, lpad + pe: pext] = zeros_apron

    s1a, s2a = conv_pass(x_ref, w1_ref, b1_ref, y1_ref, lpad)     # conv1 -> scratch
    gn_relu_pass(y1_ref, lpad, s1a, s2a, g1_ref, be1_ref)         # GN1 + ReLU in place
    s1b, s2b = conv_pass(y1_ref, w2_ref, b2_ref, out_ref, 0)      # conv2 -> output block
    gn_relu_pass(out_ref, 0, s1b, s2b, g2_ref, be2_ref)           # GN2 + ReLU in place


# ------------------------------ wrappers (glue) ------------------------------
def _to_matmul_weight(w_oidhw):
    """PyTorch Conv3d weight (cout, cin, 3, 3, 3) -> (3, cout, 9*cin) bf16."""
    cout, cin = int(w_oidhw.shape[0]), int(w_oidhw.shape[1])
    w = jnp.transpose(w_oidhw, (2, 0, 3, 4, 1))       # (kd, cout, kh, kw, cin)
    return w.reshape(3, cout, 9 * cin).astype(jnp.bfloat16)


def _vmem_limit_bytes():
    """Generation-aware VMEM budget: ~3/4 of physical (≈96 MiB v5e/v6e, ≈48 MiB v7x)."""
    cap = None
    try:
        cap = int(pltpu.get_tpu_info().vmem_capacity_bytes)
    except Exception:
        cap = None
    if not cap:
        kind = jax.devices()[0].device_kind.lower()
        cap = (64 if ("v7" in kind or "7x" in kind) else 128) * 1024 * 1024
    return min(cap * 3 // 4, 112 * 1024 * 1024)


def conv_block_3d(x_ncdhw, params, num_groups=NUM_GROUPS, lane_chunk=4096):
    """ConvBlock3D on NCDHW input; one grid step per batch element (bf16 output)."""
    N, cin, D, H, W = map(int, x_ncdhw.shape)
    cout = int(params["w1"].shape[0])
    assert cout % num_groups == 0, "GroupNorm requires out_channels % 8 == 0"

    Dp, Hp, Wp = D + 2, H + 2, W + 2
    HW = Hp * Wp
    P = Dp * HW
    LPAD = _round_up(HW + Wp + 1, 128)     # lane apron >= max |tap shift| (shape-derived)
    PE = _round_up(P, 128)                 # lane-dense padded-flat volume
    PEXT = PE + 2 * LPAD
    CHUNK = min(PE, _round_up(lane_chunk, 128))
    chunks = tuple((c0, min(CHUNK, PE - c0)) for c0 in range(0, PE, CHUNK))
    hw_deltas = tuple((kh - 1) * Wp + (kw - 1) for kh in range(3) for kw in range(3))

    # Stage input: bf16 first, then conv halo pad + flatten + apron/tail pad (one fused chain).
    xb = x_ncdhw.astype(jnp.bfloat16)
    xp = jnp.pad(xb, ((0, 0), (0, 0), (1, 1), (1, 1), (1, 1)))
    xe = jnp.pad(xp.reshape(N, cin, P), ((0, 0), (0, 0), (LPAD, LPAD + PE - P)))

    # Interior mask over the padded-flat domain (constant; also zeroes the PE tail).
    m = np.zeros((Dp, Hp, Wp), np.float32)
    m[1:-1, 1:-1, 1:-1] = 1.0
    m = np.pad(m.reshape(P), (0, PE - P))
    mask = jnp.asarray(m.reshape(1, PE), dtype=jnp.bfloat16)

    # Group-averaging matrix (same-group indicator / element count); both GNs share it.
    gs = cout // num_groups
    cnt = float(gs * D * H * W)
    a_np = (np.arange(cout)[:, None] // gs == np.arange(cout)[None, :] // gs)
    a = jnp.asarray(a_np.astype(np.float32) / cnt)

    w1 = _to_matmul_weight(params["w1"])
    w2 = _to_matmul_weight(params["w2"])
    b1 = params["b1"].reshape(cout, 1).astype(jnp.float32)
    g1 = params["g1"].reshape(cout, 1).astype(jnp.float32)
    be1 = params["be1"].reshape(cout, 1).astype(jnp.float32)
    b2 = params["b2"].reshape(cout, 1).astype(jnp.float32)
    g2 = params["g2"].reshape(cout, 1).astype(jnp.float32)
    be2 = params["be2"].reshape(cout, 1).astype(jnp.float32)

    kern = functools.partial(_conv_block_kernel, chunks, hw_deltas, HW, LPAD, PE, PEXT, cout)

    def const_spec(shape):
        # Grid-invariant operands (weights, mask, GN params). TODO(synk): single-buffer
        # these (pipeline_mode) once validated; they never change block index.
        nd = len(shape)
        return pl.BlockSpec(shape, lambda n, _nd=nd: (0,) * _nd)

    flops = 2 * N * PE * 27 * (cin * cout + cout * cout)
    bytes_accessed = int(xe.size * 2 + (w1.size + w2.size) * 2 + N * cout * PE * 2)
    cost = pl.CostEstimate(flops=int(flops), transcendentals=int(4 * N * cout),
                           bytes_accessed=bytes_accessed)

    y_flat = pl.pallas_call(
        kern,
        out_shape=jax.ShapeDtypeStruct((N, cout, PE), jnp.bfloat16),
        grid_spec=pltpu.PrefetchScalarGridSpec(
            num_scalar_prefetch=0,
            grid=(N,),
            in_specs=[
                pl.BlockSpec((None, cin, PEXT), lambda n: (n, 0, 0)),
                const_spec((1, PE)),
                const_spec((cout, cout)),
                const_spec((3, cout, 9 * cin)),
                const_spec((cout, 1)), const_spec((cout, 1)), const_spec((cout, 1)),
                const_spec((3, cout, 9 * cout)),
                const_spec((cout, 1)), const_spec((cout, 1)), const_spec((cout, 1)),
            ],
            out_specs=pl.BlockSpec((None, cout, PE), lambda n: (n, 0, 0)),
            scratch_shapes=[pltpu.VMEM((cout, PEXT), jnp.bfloat16)],  # conv2 input slab
        ),
        compiler_params=pltpu.CompilerParams(
            # TODO(synk): pltpu.CORE_PARALLEL over a D-block axis for v7x (2 TCs); that
            # needs the multi-pass GroupNorm restructure noted below before D can be gridded.
            dimension_semantics=("parallel",),
            vmem_limit_bytes=_vmem_limit_bytes(),
        ),
        cost_estimate=cost,
    )(xe, mask, a, w1, b1, g1, be1, w2, b2, g2, be2)

    # Slice the interior of the lane-dense padded slab (single XLA pass).
    y = y_flat[:, :, :P].reshape(N, cout, Dp, Hp, Wp)[:, :, 1:-1, 1:-1, 1:-1]
    return y
    # TODO(synk): volumes whose (C, PEXT) bf16 activations exceed VMEM need a D-blocked
    # multi-pass variant (conv+GN-stat kernels with a 2-plane carry, stats finalized
    # between passes): GroupNorm's *global* statistics prevent D-grid tiling of this
    # single fused kernel.


def _upsample_linear_axis(x, axis, factor):
    """1-D linear interpolation along `axis`, align_corners=True."""
    in_size = x.shape[axis]
    out_size = in_size * factor
    if in_size == 1:
        return jnp.repeat(x, out_size, axis=axis)
    coords = jnp.arange(out_size, dtype=jnp.float32) * ((in_size - 1) / (out_size - 1))
    i0 = jnp.clip(jnp.floor(coords).astype(jnp.int32), 0, in_size - 2)
    w = coords - i0.astype(jnp.float32)
    x0 = jnp.take(x, i0, axis=axis)
    x1 = jnp.take(x, i0 + 1, axis=axis)
    shape = [1] * x.ndim
    shape[axis] = out_size
    w = w.reshape(shape).astype(x.dtype)
    return x0 * (1.0 - w) + x1 * w


def upsample_trilinear_align_corners(x_ncdhw, factor=2):
    for ax in (2, 3, 4):
        x_ncdhw = _upsample_linear_axis(x_ncdhw, ax, factor)
    return x_ncdhw


def up_block_3d(x_ncdhw, skip_ncdhw, params):
    """UpBlock3D.forward: upsample(x) -> cat([x, skip], C) -> ConvBlock3D."""
    # bf16 staging halves HBM traffic of the pre-kernel passes.
    # TODO(synk): fuse the factor-2 trilinear lerp + channel concat into the kernel's
    # chunk loop (shifted-slice lerp) to remove these staging HBM passes entirely.
    x = upsample_trilinear_align_corners(x_ncdhw.astype(jnp.bfloat16), 2)
    x = jnp.concatenate([x, skip_ncdhw.astype(jnp.bfloat16)], axis=1)
    return conv_block_3d(x, params)


# ------------------------------ pure-JAX reference ------------------------------
def conv_block_3d_ref(x, params, num_groups=NUM_GROUPS):
    def conv(h, w, b):
        y = lax.conv_general_dilated(
            h, w, window_strides=(1, 1, 1),
            padding=((1, 1), (1, 1), (1, 1)),
            dimension_numbers=("NCDHW", "OIDHW", "NCDHW"),
            precision=lax.Precision.HIGHEST)
        return y + b.reshape(1, -1, 1, 1, 1)

    def gn(y, gamma, beta):
        N, C, D, H, W = y.shape
        yg = y.reshape(N, num_groups, -1)
        mu = jnp.mean(yg, axis=2, keepdims=True)
        var = jnp.var(yg, axis=2, keepdims=True)
        yn = ((yg - mu) * lax.rsqrt(var + EPS)).reshape(N, C, D, H, W)
        return yn * gamma.reshape(1, -1, 1, 1, 1) + beta.reshape(1, -1, 1, 1, 1)

    h = jnp.maximum(gn(conv(x, params["w1"], params["b1"]), params["g1"], params["be1"]), 0.0)
    h = jnp.maximum(gn(conv(h, params["w2"], params["b2"]), params["g2"], params["be2"]), 0.0)
    return h


def up_block_3d_ref(x, skip, params):
    x = upsample_trilinear_align_corners(x, 2)
    x = jnp.concatenate([x, skip], axis=1)
    return conv_block_3d_ref(x, params)


# ------------------------------ params ------------------------------
def init_params(key, in_channels, out_channels):
    ks = jax.random.split(key, 8)
    w1 = jax.random.normal(ks[0], (out_channels, in_channels, 3, 3, 3), jnp.float32) \
        / np.sqrt(float(in_channels * 27))
    b1 = 0.01 * jax.random.normal(ks[1], (out_channels,), jnp.float32)
    g1 = 1.0 + 0.1 * jax.random.normal(ks[2], (out_channels,), jnp.float32)
    be1 = 0.1 * jax.random.normal(ks[3], (out_channels,), jnp.float32)
    w2 = jax.random.normal(ks[4], (out_channels, out_channels, 3, 3, 3), jnp.float32) \
        / np.sqrt(float(out_channels * 27))
    b2 = 0.01 * jax.random.normal(ks[5], (out_channels,), jnp.float32)
    g2 = 1.0 + 0.1 * jax.random.normal(ks[6], (out_channels,), jnp.float32)
    be2 = 0.1 * jax.random.normal(ks[7], (out_channels,), jnp.float32)
    return dict(w1=w1, b1=b1, g1=g1, be1=be1, w2=w2, b2=b2, g2=g2, be2=be2)


if __name__ == "__main__":
    key = jax.random.PRNGKey(0)
    kx, ks, kp = jax.random.split(key, 3)

    # decoder up-block: x has half the spatial size of skip
    N, c_up, c_skip, c_out = 2, 8, 8, 8
    D = H = W = 4
    x = jax.random.normal(kx, (N, c_up, D, H, W), jnp.float32)                 # NCDHW
    skip = jax.random.normal(ks, (N, c_skip, 2 * D, 2 * H, 2 * W), jnp.float32)

    params = init_params(kp, c_up + c_skip, c_out)   # ConvBlock3D(16 -> 8)

    out = jax.block_until_ready(jax.jit(up_block_3d)(x, skip, params))
    assert out.shape == (N, c_out, 2 * D, 2 * H, 2 * W), out.shape
    assert bool(jnp.all(jnp.isfinite(out.astype(jnp.float32))))

    # exercise the weight-layout contract + GroupNorm math against a pure-XLA reference
    ref = jax.block_until_ready(jax.jit(up_block_3d_ref)(x, skip, params))
    max_err = float(jnp.max(jnp.abs(out.astype(jnp.float32) - ref)))
    assert max_err < 0.2, f"kernel vs reference max abs err = {max_err}"

    print("KERNEL_OK")
</pallas_src>

<mosaic_0001>
module attributes {stable_mosaic.version = 11 : i64} {
  func.func @_conv_block_kernel(%arg0: i32, %arg1: memref<1x16x1280xbf16, #tpu.memory_space<vmem>>, %arg2: memref<1x1024xbf16, #tpu.memory_space<vmem>>, %arg3: memref<8x8xf32, #tpu.memory_space<vmem>>, %arg4: memref<3x8x144xbf16, #tpu.memory_space<vmem>>, %arg5: memref<8x1xf32, #tpu.memory_space<vmem>>, %arg6: memref<8x1xf32, #tpu.memory_space<vmem>>, %arg7: memref<8x1xf32, #tpu.memory_space<vmem>>, %arg8: memref<3x8x72xbf16, #tpu.memory_space<vmem>>, %arg9: memref<8x1xf32, #tpu.memory_space<vmem>>, %arg10: memref<8x1xf32, #tpu.memory_space<vmem>>, %arg11: memref<8x1xf32, #tpu.memory_space<vmem>>, %arg12: memref<1x8x1024xbf16, #tpu.memory_space<vmem>>, %arg13: memref<8x1280xbf16, #tpu.memory_space<vmem>>) attributes {dimension_semantics = [#tpu.dimension_semantics<parallel>], iteration_bounds = array<i64: 2>, scalar_prefetch = 0 : i64, scratch_operands = 1 : i64, tpu.core_type = #tpu.core_type<tc>, window_params = [{transform_indices = @transform_0, window_bounds = array<i64: 1, 16, 1280>}, {pipeline_mode = #tpu.pipeline_mode<synchronous>, transform_indices = @transform_1, window_bounds = array<i64: 1, 1024>}, {pipeline_mode = #tpu.pipeline_mode<synchronous>, transform_indices = @transform_2, window_bounds = array<i64: 8, 8>}, {pipeline_mode = #tpu.pipeline_mode<synchronous>, transform_indices = @transform_3, window_bounds = array<i64: 3, 8, 144>}, {pipeline_mode = #tpu.pipeline_mode<synchronous>, transform_indices = @transform_4, window_bounds = array<i64: 8, 1>}, {pipeline_mode = #tpu.pipeline_mode<synchronous>, transform_indices = @transform_5, window_bounds = array<i64: 8, 1>}, {pipeline_mode = #tpu.pipeline_mode<synchronous>, transform_indices = @transform_6, window_bounds = array<i64: 8, 1>}, {pipeline_mode = #tpu.pipeline_mode<synchronous>, transform_indices = @transform_7, window_bounds = array<i64: 3, 8, 72>}, {pipeline_mode = #tpu.pipeline_mode<synchronous>, transform_indices = @transform_8, window_bounds = array<i64: 8, 1>}, {pipeline_mode = #tpu.pipeline_mode<synchronous>, transform_indices = @transform_9, window_bounds = array<i64: 8, 1>}, {pipeline_mode = #tpu.pipeline_mode<synchronous>, transform_indices = @transform_10, window_bounds = array<i64: 8, 1>}, {transform_indices = @transform_11, window_bounds = array<i64: 1, 8, 1024>}]} {
    %cst = arith.constant 0.000000e+00 : bf16
    %0 = vector.broadcast %cst : bf16 to vector<8x128xbf16>
    %c0 = arith.constant 0 : index
    %c0_0 = arith.constant 0 : index
    %1 = vector.load %arg13[%c0, %c0_0] : memref<8x1280xbf16, #tpu.memory_space<vmem>>, vector<8x128xbf16>
    tpu.vector_store %arg13[%c0, %c0_0], %0 {strides = array<i32>} : memref<8x1280xbf16, #tpu.memory_space<vmem>>, vector<8x128xbf16>,
    %c0_1 = arith.constant 0 : index
    %c1152 = arith.constant 1152 : index
    %2 = vector.load %arg13[%c0_1, %c1152] : memref<8x1280xbf16, #tpu.memory_space<vmem>>, vector<8x128xbf16>
    tpu.vector_store %arg13[%c0_1, %c1152], %0 {strides = array<i32>} : memref<8x1280xbf16, #tpu.memory_space<vmem>>, vector<8x128xbf16>,
    %cst_2 = arith.constant 0.000000e+00 : f32
    %3 = vector.broadcast %cst_2 : f32 to vector<8x1xf32>
    %cst_3 = arith.constant 0.000000e+00 : f32
    %4 = vector.broadcast %cst_3 : f32 to vector<8x1xf32>
    %c0_4 = arith.constant 0 : index
    %c0_5 = arith.constant 0 : index
    %c17 = arith.constant 17 : index
    %5 = vector.load %arg1[%c0_4, %c0_5, %c17] : memref<1x16x1280xbf16, #tpu.memory_space<vmem>>, vector<1x16x1024xbf16>
    %6 = vector.shape_cast %5 : vector<1x16x1024xbf16> to vector<16x1024xbf16>
    %c0_6 = arith.constant 0 : index
    %c0_7 = arith.constant 0 : index
    %c18 = arith.constant 18 : index
    %7 = vector.load %arg1[%c0_6, %c0_7, %c18] : memref<1x16x1280xbf16, #tpu.memory_space<vmem>>, vector<1x16x1024xbf16>
    %8 = vector.shape_cast %7 : vector<1x16x1024xbf16> to vector<16x1024xbf16>
    %c0_8 = arith.constant 0 : index
    %c0_9 = arith.constant 0 : index
    %c19 = arith.constant 19 : index
    %9 = vector.load %arg1[%c0_8, %c0_9, %c19] : memref<1x16x1280xbf16, #tpu.memory_space<vmem>>, vector<1x16x1024xbf16>
    %10 = vector.shape_cast %9 : vector<1x16x1024xbf16> to vector<16x1024xbf16>
    %c0_10 = arith.constant 0 : index
    %c0_11 = arith.constant 0 : index
    %c27 = arith.constant 27 : index
    %11 = vector.load %arg1[%c0_10, %c0_11, %c27] : memref<1x16x1280xbf16, #tpu.memory_space<vmem>>, vector<1x16x1024xbf16>
    %12 = vector.shape_cast %11 : vector<1x16x1024xbf16> to vector<16x1024xbf16>
    %c0_12 = arith.constant 0 : index
    %c0_13 = arith.constant 0 : index
    %c28 = arith.constant 28 : index
    %13 = vector.load %arg1[%c0_12, %c0_13, %c28] : memref<1x16x1280xbf16, #tpu.memory_space<vmem>>, vector<1x16x1024xbf16>
    %14 = vector.shape_cast %13 : vector<1x16x1024xbf16> to vector<16x1024xbf16>
    %c0_14 = arith.constant 0 : index
    %c0_15 = arith.constant 0 : index
    %c29 = arith.constant 29 : index
    %15 = vector.load %arg1[%c0_14, %c0_15, %c29] : memref<1x16x1280xbf16, #tpu.memory_space<vmem>>, vector<1x16x1024xbf16>
    %16 = vector.shape_cast %15 : vector<1x16x1024xbf16> to vector<16x1024xbf16>
    %c0_16 = arith.constant 0 : index
    %c0_17 = arith.constant 0 : index
    %c37 = arith.constant 37 : index
    %17 = vector.load %arg1[%c0_16, %c0_17, %c37] : memref<1x16x1280xbf16, #tpu.memory_space<vmem>>, vector<1x16x1024xbf16>
    %18 = vector.shape_cast %17 : vector<1x16x1024xbf16> to vector<16x1024xbf16>
    %c0_18 = arith.constant 0 : index
    %c0_19 = arith.constant 0 : index
    %c38 = arith.constant 38 : index
    %19 = vector.load %arg1[%c0_18, %c0_19, %c38] : memref<1x16x1280xbf16, #tpu.memory_space<vmem>>, vector<1x16x1024xbf16>
    %20 = vector.shape_cast %19 : vector<1x16x1024xbf16> to vector<16x1024xbf16>
    %c0_20 = arith.constant 0 : index
    %c0_21 = arith.constant 0 : index
    %c39 = arith.constant 39 : index
    %21 = vector.load %arg1[%c0_20, %c0_21, %c39] : memref<1x16x1280xbf16, #tpu.memory_space<vmem>>, vector<1x16x1024xbf16>
    %22 = vector.shape_cast %21 : vector<1x16x1024xbf16> to vector<16x1024xbf16>
    %23 = tpu.concatenate %6, %8, %10, %12, %14, %16, %18, %20, %22 in 0 : vector<16x1024xbf16>, vector<16x1024xbf16>, vector<16x1024xbf16>, vector<16x1024xbf16>, vector<16x1024xbf16>, vector<16x1024xbf16>, vector<16x1024xbf16>, vector<16x1024xbf16>, vector<16x1024xbf16> -> vector<144x1024xbf16>
    %c0_22 = arith.constant 0 : index
    %c0_23 = arith.constant 0 : index
    %c0_24 = arith.constant 0 : index
    %24 = vector.load %arg4[%c0_22, %c0_23, %c0_24] : memref<3x8x144xbf16, #tpu.memory_space<vmem>>, vector<1x8x144xbf16>
    %25 = vector.shape_cast %24 : vector<1x8x144xbf16> to vector<8x144xbf16>
    %cst_25 = arith.constant dense<0.000000e+00> : vector<8x1024xf32>
    %26 = tpu.matmul %25, %23, %cst_25 {dimension_numbers = #tpu.dot_dimension_numbers<[1], [0], [0], [1], [0, 0, 1, 1], [], []>} : vector<8x144xbf16>, vector<144x1024xbf16>, vector<8x1024xf32> -> vector<8x1024xf32>
    %c0_26 = arith.constant 0 : index
    %c0_27 = arith.constant 0 : index
    %c117 = arith.constant 117 : index
    %27 = vector.load %arg1[%c0_26, %c0_27, %c117] : memref<1x16x1280xbf16, #tpu.memory_space<vmem>>, vector<1x16x1024xbf16>
    %28 = vector.shape_cast %27 : vector<1x16x1024xbf16> to vector<16x1024xbf16>
    %c0_28 = arith.constant 0 : index
    %c0_29 = arith.constant 0 : index
    %c118 = arith.constant 118 : index
    %29 = vector.load %arg1[%c0_28, %c0_29, %c118] : memref<1x16x1280xbf16, #tpu.memory_space<vmem>>, vector<1x16x1024xbf16>
    %30 = vector.shape_cast %29 : vector<1x16x1024xbf16> to vector<16x1024xbf16>
    %c0_30 = arith.constant 0 : index
    %c0_31 = arith.constant 0 : index
    %c119 = arith.constant 119 : index
    %31 = vector.load %arg1[%c0_30, %c0_31, %c119] : memref<1x16x1280xbf16, #tpu.memory_space<vmem>>, vector<1x16x1024xbf16>
    %32 = vector.shape_cast %31 : vector<1x16x1024xbf16> to vector<16x1024xbf16>
    %c0_32 = arith.constant 0 : index
    %c0_33 = arith.constant 0 : index
    %c127 = arith.constant 127 : index
    %33 = vector.load %arg1[%c0_32, %c0_33, %c127] : memref<1x16x1280xbf16, #tpu.memory_space<vmem>>, vector<1x16x1024xbf16>
    %34 = vector.shape_cast %33 : vector<1x16x1024xbf16> to vector<16x1024xbf16>
    %c0_34 = arith.constant 0 : index
    %c0_35 = arith.constant 0 : index
    %c128 = arith.constant 128 : index
    %35 = vector.load %arg1[%c0_34, %c0_35, %c128] : memref<1x16x1280xbf16, #tpu.memory_space<vmem>>, vector<1x16x1024xbf16>
    %36 = vector.shape_cast %35 : vector<1x16x1024xbf16> to vector<16x1024xbf16>
    %c0_36 = arith.constant 0 : index
    %c0_37 = arith.constant 0 : index
    %c129 = arith.constant 129 : index
    %37 = vector.load %arg1[%c0_36, %c0_37, %c129] : memref<1x16x1280xbf16, #tpu.memory_space<vmem>>, vector<1x16x1024xbf16>
    %38 = vector.shape_cast %37 : vector<1x16x1024xbf16> to vector<16x1024xbf16>
    %c0_38 = arith.constant 0 : index
    %c0_39 = arith.constant 0 : index
    %c137 = arith.constant 137 : index
    %39 = vector.load %arg1[%c0_38, %c0_39, %c137] : memref<1x16x1280xbf16, #tpu.memory_space<vmem>>, vector<1x16x1024xbf16>
    %40 = vector.shape_cast %39 : vector<1x16x1024xbf16> to vector<16x1024xbf16>
    %c0_40 = arith.constant 0 : index
    %c0_41 = arith.constant 0 : index
    %c138 = arith.constant 138 : index
    %41 = vector.load %arg1[%c0_40, %c0_41, %c138] : memref<1x16x1280xbf16, #tpu.memory_space<vmem>>, vector<1x16x1024xbf16>
    %42 = vector.shape_cast %41 : vector<1x16x1024xbf16> to vector<16x1024xbf16>
    %c0_42 = arith.constant 0 : index
    %c0_43 = arith.constant 0 : index
    %c139 = arith.constant 139 : index
    %43 = vector.load %arg1[%c0_42, %c0_43, %c139] : memref<1x16x1280xbf16, #tpu.memory_space<vmem>>, vector<1x16x1024xbf16>
    %44 = vector.shape_cast %43 : vector<1x16x1024xbf16> to vector<16x1024xbf16>
    %45 = tpu.concatenate %28, %30, %32, %34, %36, %38, %40, %42, %44 in 0 : vector<16x1024xbf16>, vector<16x1024xbf16>, vector<16x1024xbf16>, vector<16x1024xbf16>, vector<16x1024xbf16>, vector<16x1024xbf16>, vector<16x1024xbf16>, vector<16x1024xbf16>, vector<16x1024xbf16> -> vector<144x1024xbf16>
    %c1 = arith.constant 1 : index
    %c0_44 = arith.constant 0 : index
    %c0_45 = arith.constant 0 : index
    %46 = vector.load %arg4[%c1, %c0_44, %c0_45] : memref<3x8x144xbf16, #tpu.memory_space<vmem>>, vector<1x8x144xbf16>
    %47 = vector.shape_cast %46 : vector<1x8x144xbf16> to vector<8x144xbf16>
    %cst_46 = arith.constant dense<0.000000e+00> : vector<8x1024xf32>
    %48 = tpu.matmul %47, %45, %cst_46 {dimension_numbers = #tpu.dot_dimension_numbers<[1], [0], [0], [1], [0, 0, 1, 1], [], []>} : vector<8x144xbf16>, vector<144x1024xbf16>, vector<8x1024xf32> -> vector<8x1024xf32>
    %49 = arith.addf %26, %48 : vector<8x1024xf32>
    %c0_47 = arith.constant 0 : index
    %c0_48 = arith.constant 0 : index
    %c217 = arith.constant 217 : index
    %50 = vector.load %arg1[%c0_47, %c0_48, %c217] : memref<1x16x1280xbf16, #tpu.memory_space<vmem>>, vector<1x16x1024xbf16>
    %51 = vector.shape_cast %50 : vector<1x16x1024xbf16> to vector<16x1024xbf16>
    %c0_49 = arith.constant 0 : index
    %c0_50 = arith.constant 0 : index
    %c218 = arith.constant 218 : index
    %52 = vector.load %arg1[%c0_49, %c0_50, %c218] : memref<1x16x1280xbf16, #tpu.memory_space<vmem>>, vector<1x16x1024xbf16>
    %53 = vector.shape_cast %52 : vector<1x16x1024xbf16> to vector<16x1024xbf16>
    %c0_51 = arith.constant 0 : index
    %c0_52 = arith.constant 0 : index
    %c219 = arith.constant 219 : index
    %54 = vector.load %arg1[%c0_51, %c0_52, %c219] : memref<1x16x1280xbf16, #tpu.memory_space<vmem>>, vector<1x16x1024xbf16>
    %55 = vector.shape_cast %54 : vector<1x16x1024xbf16> to vector<16x1024xbf16>
    %c0_53 = arith.constant 0 : index
    %c0_54 = arith.constant 0 : index
    %c227 = arith.constant 227 : index
    %56 = vector.load %arg1[%c0_53, %c0_54, %c227] : memref<1x16x1280xbf16, #tpu.memory_space<vmem>>, vector<1x16x1024xbf16>
    %57 = vector.shape_cast %56 : vector<1x16x1024xbf16> to vector<16x1024xbf16>
    %c0_55 = arith.constant 0 : index
    %c0_56 = arith.constant 0 : index
    %c228 = arith.constant 228 : index
    %58 = vector.load %arg1[%c0_55, %c0_56, %c228] : memref<1x16x1280xbf16, #tpu.memory_space<vmem>>, vector<1x16x1024xbf16>
    %59 = vector.shape_cast %58 : vector<1x16x1024xbf16> to vector<16x1024xbf16>
    %c0_57 = arith.constant 0 : index
    %c0_58 = arith.constant 0 : index
    %c229 = arith.constant 229 : index
    %60 = vector.load %arg1[%c0_57, %c0_58, %c229] : memref<1x16x1280xbf16, #tpu.memory_space<vmem>>, vector<1x16x1024xbf16>
    %61 = vector.shape_cast %60 : vector<1x16x1024xbf16> to vector<16x1024xbf16>
    %c0_59 = arith.constant 0 : index
    %c0_60 = arith.constant 0 : index
    %c237 = arith.constant 237 : index
    %62 = vector.load %arg1[%c0_59, %c0_60, %c237] : memref<1x16x1280xbf16, #tpu.memory_space<vmem>>, vector<1x16x1024xbf16>
    %63 = vector.shape_cast %62 : vector<1x16x1024xbf16> to vector<16x1024xbf16>
    %c0_61 = arith.constant 0 : index
    %c0_62 = arith.constant 0 : index
    %c238 = arith.constant 238 : index
    %64 = vector.load %arg1[%c0_61, %c0_62, %c238] : memref<1x16x1280xbf16, #tpu.memory_space<vmem>>, vector<1x16x1024xbf16>
    %65 = vector.shape_cast %64 : vector<1x16x1024xbf16> to vector<16x1024xbf16>
    %c0_63 = arith.constant 0 : index
    %c0_64 = arith.constant 0 : index
    %c239 = arith.constant 239 : index
    %66 = vector.load %arg1[%c0_63, %c0_64, %c239] : memref<1x16x1280xbf16, #tpu.memory_space<vmem>>, vector<1x16x1024xbf16>
    %67 = vector.shape_cast %66 : vector<1x16x1024xbf16> to vector<16x1024xbf16>
    %68 = tpu.concatenate %51, %53, %55, %57, %59, %61, %63, %65, %67 in 0 : vector<16x1024xbf16>, vector<16x1024xbf16>, vector<16x1024xbf16>, vector<16x1024xbf16>, vector<16x1024xbf16>, vector<16x1024xbf16>, vector<16x1024xbf16>, vector<16x1024xbf16>, vector<16x1024xbf16> -> vector<144x1024xbf16>
    %c2 = arith.constant 2 : index
    %c0_65 = arith.constant 0 : index
    %c0_66 = arith.constant 0 : index
    %69 = vector.load %arg4[%c2, %c0_65, %c0_66] : memref<3x8x144xbf16, #tpu.memory_space<vmem>>, vector<1x8x144xbf16>
    %70 = vector.shape_cast %69 : vector<1x8x144xbf16> to vector<8x144xbf16>
    %cst_67 = arith.constant dense<0.000000e+00> : vector<8x1024xf32>
    %71 = tpu.matmul %70, %68, %cst_67 {dimension_numbers = #tpu.dot_dimension_numbers<[1], [0], [0], [1], [0, 0, 1, 1], [], []>} : vector<8x144xbf16>, vector<144x1024xbf16>, vector<8x1024xf32> -> vector<8x1024xf32>
    %72 = arith.addf %49, %71 : vector<8x1024xf32>
    %c0_68 = arith.constant 0 : index
    %c0_69 = arith.constant 0 : index
    %73 = vector.load %arg5[%c0_68, %c0_69] : memref<8x1xf32, #tpu.memory_space<vmem>>, vector<8x1xf32>
    %74 = vector.broadcast %73 : vector<8x1xf32> to vector<8x1024xf32>
    %75 = arith.addf %72, %74 : vector<8x1024xf32>
    %c0_70 = arith.constant 0 : index
    %c0_71 = arith.constant 0 : index
    %76 = vector.load %arg2[%c0_70, %c0_71] : memref<1x1024xbf16, #tpu.memory_space<vmem>>, vector<1x1024xbf16>
    %77 = arith.extf %76 : vector<1x1024xbf16> to vector<1x1024xf32>
    %78 = vector.broadcast %77 : vector<1x1024xf32> to vector<8x1024xf32>
    %79 = arith.mulf %75, %78 : vector<8x1024xf32>
    %cst_72 = arith.constant dense<0.000000e+00> : vector<8xf32>
    %80 = vector.multi_reduction <add>, %79, %cst_72 [1] : vector<8x1024xf32> to vector<8xf32>
    %81 = vector.shape_cast %80 : vector<8xf32> to vector<8x1xf32>
    %82 = arith.addf %3, %81 : vector<8x1xf32>
    %83 = arith.mulf %79, %75 : vector<8x1024xf32>
    %cst_73 = arith.constant dense<0.000000e+00> : vector<8xf32>
    %84 = vector.multi_reduction <add>, %83, %cst_73 [1] : vector<8x1024xf32> to vector<8xf32>
    %85 = vector.shape_cast %84 : vector<8xf32> to vector<8x1xf32>
    %86 = arith.addf %4, %85 : vector<8x1xf32>
    %87 = arith.truncf %75 : vector<8x1024xf32> to vector<8x1024xbf16>
    %c0_74 = arith.constant 0 : index
    %c128_75 = arith.constant 128 : index
    %88 = vector.load %arg13[%c0_74, %c128_75] : memref<8x1280xbf16, #tpu.memory_space<vmem>>, vector<8x1024xbf16>
    tpu.vector_store %arg13[%c0_74, %c128_75], %87 {strides = array<i32>} : memref<8x1280xbf16, #tpu.memory_space<vmem>>, vector<8x1024xbf16>,
    %c0_76 = arith.constant 0 : index
    %c0_77 = arith.constant 0 : index
    %89 = vector.load %arg3[%c0_76, %c0_77] : memref<8x8xf32, #tpu.memory_space<vmem>>, vector<8x8xf32>
    %90 = tpu.concatenate %82, %86 in 1 : vector<8x1xf32>, vector<8x1xf32> -> vector<8x2xf32>
    %cst_78 = arith.constant dense<0.000000e+00> : vector<8x2xf32>
    %91 = tpu.matmul %89, %90, %cst_78 {dimension_numbers = #tpu.dot_dimension_numbers<[1], [0], [0], [1], [0, 0, 1, 1], [], []>} : vector<8x8xf32>, vector<8x2xf32>, vector<8x2xf32> -> vector<8x2xf32>
    %92 = vector.extract_strided_slice %91 {offsets = [0, 0], sizes = [8, 1], strides = [1, 1]} : vector<8x2xf32> to vector<8x1xf32>
    %93 = vector.extract_strided_slice %91 {offsets = [0, 1], sizes = [8, 1], strides = [1, 1]} : vector<8x2xf32> to vector<8x1xf32>
    %94 = arith.mulf %92, %92 : vector<8x1xf32>
    %95 = arith.subf %93, %94 : vector<8x1xf32>
    %c0_79 = arith.constant 0 : index
    %c0_80 = arith.constant 0 : index
    %96 = vector.load %arg6[%c0_79, %c0_80] : memref<8x1xf32, #tpu.memory_space<vmem>>, vector<8x1xf32>
    %cst_81 = arith.constant 9.99999974E-6 : f32
    %97 = vector.broadcast %cst_81 : f32 to vector<8x1xf32>
    %98 = arith.addf %95, %97 : vector<8x1xf32>
    %99 = math.rsqrt %98 : vector<8x1xf32>
    %100 = arith.mulf %96, %99 : vector<8x1xf32>
    %c0_82 = arith.constant 0 : index
    %c0_83 = arith.constant 0 : index
    %101 = vector.load %arg7[%c0_82, %c0_83] : memref<8x1xf32, #tpu.memory_space<vmem>>, vector<8x1xf32>
    %102 = arith.mulf %92, %100 : vector<8x1xf32>
    %103 = arith.subf %101, %102 : vector<8x1xf32>
    %c0_84 = arith.constant 0 : index
    %c128_85 = arith.constant 128 : index
    %104 = vector.load %arg13[%c0_84, %c128_85] : memref<8x1280xbf16, #tpu.memory_space<vmem>>, vector<8x1024xbf16>
    %105 = arith.extf %104 : vector<8x1024xbf16> to vector<8x1024xf32>
    %c0_86 = arith.constant 0 : index
    %c0_87 = arith.constant 0 : index
    %106 = vector.load %arg2[%c0_86, %c0_87] : memref<1x1024xbf16, #tpu.memory_space<vmem>>, vector<1x1024xbf16>
    %107 = arith.extf %106 : vector<1x1024xbf16> to vector<1x1024xf32>
    %108 = vector.broadcast %100 : vector<8x1xf32> to vector<8x1024xf32>
    %109 = arith.mulf %105, %108 : vector<8x1024xf32>
    %110 = vector.broadcast %103 : vector<8x1xf32> to vector<8x1024xf32>
    %111 = arith.addf %109, %110 : vector<8x1024xf32>
    %cst_88 = arith.constant 0.000000e+00 : f32
    %112 = vector.broadcast %cst_88 : f32 to vector<8x1024xf32>
    %113 = arith.maximumf %111, %112 : vector<8x1024xf32>
    %114 = vector.broadcast %107 : vector<1x1024xf32> to vector<8x1024xf32>
    %115 = arith.mulf %113, %114 : vector<8x1024xf32>
    %116 = arith.truncf %115 : vector<8x1024xf32> to vector<8x1024xbf16>
    %c0_89 = arith.constant 0 : index
    %c128_90 = arith.constant 128 : index
    %117 = vector.load %arg13[%c0_89, %c128_90] : memref<8x1280xbf16, #tpu.memory_space<vmem>>, vector<8x1024xbf16>
    tpu.vector_store %arg13[%c0_89, %c128_90], %116 {strides = array<i32>} : memref<8x1280xbf16, #tpu.memory_space<vmem>>, vector<8x1024xbf16>,
    %cst_91 = arith.constant 0.000000e+00 : f32
    %118 = vector.broadcast %cst_91 : f32 to vector<8x1xf32>
    %cst_92 = arith.constant 0.000000e+00 : f32
    %119 = vector.broadcast %cst_92 : f32 to vector<8x1xf32>
    %c0_93 = arith.constant 0 : index
    %c17_94 = arith.constant 17 : index
    %120 = vector.load %arg13[%c0_93, %c17_94] : memref<8x1280xbf16, #tpu.memory_space<vmem>>, vector<8x1024xbf16>
    %c0_95 = arith.constant 0 : index
    %c18_96 = arith.constant 18 : index
    %121 = vector.load %arg13[%c0_95, %c18_96] : memref<8x1280xbf16, #tpu.memory_space<vmem>>, vector<8x1024xbf16>
    %c0_97 = arith.constant 0 : index
    %c19_98 = arith.constant 19 : index
    %122 = vector.load %arg13[%c0_97, %c19_98] : memref<8x1280xbf16, #tpu.memory_space<vmem>>, vector<8x1024xbf16>
    %c0_99 = arith.constant 0 : index
    %c27_100 = arith.constant 27 : index
    %123 = vector.load %arg13[%c0_99, %c27_100] : memref<8x1280xbf16, #tpu.memory_space<vmem>>, vector<8x1024xbf16>
    %c0_101 = arith.constant 0 : index
    %c28_102 = arith.constant 28 : index
    %124 = vector.load %arg13[%c0_101, %c28_102] : memref<8x1280xbf16, #tpu.memory_space<vmem>>, vector<8x1024xbf16>
    %c0_103 = arith.constant 0 : index
    %c29_104 = arith.constant 29 : index
    %125 = vector.load %arg13[%c0_103, %c29_104] : memref<8x1280xbf16, #tpu.memory_space<vmem>>, vector<8x1024xbf16>
    %c0_105 = arith.constant 0 : index
    %c37_106 = arith.constant 37 : index
    %126 = vector.load %arg13[%c0_105, %c37_106] : memref<8x1280xbf16, #tpu.memory_space<vmem>>, vector<8x1024xbf16>
    %c0_107 = arith.constant 0 : index
    %c38_108 = arith.constant 38 : index
    %127 = vector.load %arg13[%c0_107, %c38_108] : memref<8x1280xbf16, #tpu.memory_space<vmem>>, vector<8x1024xbf16>
    %c0_109 = arith.constant 0 : index
    %c39_110 = arith.constant 39 : index
    %128 = vector.load %arg13[%c0_109, %c39_110] : memref<8x1280xbf16, #tpu.memory_space<vmem>>, vector<8x1024xbf16>
    %129 = tpu.concatenate %120, %121, %122, %123, %124, %125, %126, %127, %128 in 0 : vector<8x1024xbf16>, vector<8x1024xbf16>, vector<8x1024xbf16>, vector<8x1024xbf16>, vector<8x1024xbf16>, vector<8x1024xbf16>, vector<8x1024xbf16>, vector<8x1024xbf16>, vector<8x1024xbf16> -> vector<72x1024xbf16>
    %c0_111 = arith.constant 0 : index
    %c0_112 = arith.constant 0 : index
    %c0_113 = arith.constant 0 : index
    %130 = vector.load %arg8[%c0_111, %c0_112, %c0_113] : memref<3x8x72xbf16, #tpu.memory_space<vmem>>, vector<1x8x72xbf16>
    %131 = vector.shape_cast %130 : vector<1x8x72xbf16> to vector<8x72xbf16>
    %cst_114 = arith.constant dense<0.000000e+00> : vector<8x1024xf32>
    %132 = tpu.matmul %131, %129, %cst_114 {dimension_numbers = #tpu.dot_dimension_numbers<[1], [0], [0], [1], [0, 0, 1, 1], [], []>} : vector<8x72xbf16>, vector<72x1024xbf16>, vector<8x1024xf32> -> vector<8x1024xf32>
    %c0_115 = arith.constant 0 : index
    %c117_116 = arith.constant 117 : index
    %133 = vector.load %arg13[%c0_115, %c117_116] : memref<8x1280xbf16, #tpu.memory_space<vmem>>, vector<8x1024xbf16>
    %c0_117 = arith.constant 0 : index
    %c118_118 = arith.constant 118 : index
    %134 = vector.load %arg13[%c0_117, %c118_118] : memref<8x1280xbf16, #tpu.memory_space<vmem>>, vector<8x1024xbf16>
    %c0_119 = arith.constant 0 : index
    %c119_120 = arith.constant 119 : index
    %135 = vector.load %arg13[%c0_119, %c119_120] : memref<8x1280xbf16, #tpu.memory_space<vmem>>, vector<8x1024xbf16>
    %c0_121 = arith.constant 0 : index
    %c127_122 = arith.constant 127 : index
    %136 = vector.load %arg13[%c0_121, %c127_122] : memref<8x1280xbf16, #tpu.memory_space<vmem>>, vector<8x1024xbf16>
    %c0_123 = arith.constant 0 : index
    %c128_124 = arith.constant 128 : index
    %137 = vector.load %arg13[%c0_123, %c128_124] : memref<8x1280xbf16, #tpu.memory_space<vmem>>, vector<8x1024xbf16>
    %c0_125 = arith.constant 0 : index
    %c129_126 = arith.constant 129 : index
    %138 = vector.load %arg13[%c0_125, %c129_126] : memref<8x1280xbf16, #tpu.memory_space<vmem>>, vector<8x1024xbf16>
    %c0_127 = arith.constant 0 : index
    %c137_128 = arith.constant 137 : index
    %139 = vector.load %arg13[%c0_127, %c137_128] : memref<8x1280xbf16, #tpu.memory_space<vmem>>, vector<8x1024xbf16>
    %c0_129 = arith.constant 0 : index
    %c138_130 = arith.constant 138 : index
    %140 = vector.load %arg13[%c0_129, %c138_130] : memref<8x1280xbf16, #tpu.memory_space<vmem>>, vector<8x1024xbf16>
    %c0_131 = arith.constant 0 : index
    %c139_132 = arith.constant 139 : index
    %141 = vector.load %arg13[%c0_131, %c139_132] : memref<8x1280xbf16, #tpu.memory_space<vmem>>, vector<8x1024xbf16>
    %142 = tpu.concatenate %133, %134, %135, %136, %137, %138, %139, %140, %141 in 0 : vector<8x1024xbf16>, vector<8x1024xbf16>, vector<8x1024xbf16>, vector<8x1024xbf16>, vector<8x1024xbf16>, vector<8x1024xbf16>, vector<8x1024xbf16>, vector<8x1024xbf16>, vector<8x1024xbf16> -> vector<72x1024xbf16>
    %c1_133 = arith.constant 1 : index
    %c0_134 = arith.constant 0 : index
    %c0_135 = arith.constant 0 : index
    %143 = vector.load %arg8[%c1_133, %c0_134, %c0_135] : memref<3x8x72xbf16, #tpu.memory_space<vmem>>, vector<1x8x72xbf16>
    %144 = vector.shape_cast %143 : vector<1x8x72xbf16> to vector<8x72xbf16>
    %cst_136 = arith.constant dense<0.000000e+00> : vector<8x1024xf32>
    %145 = tpu.matmul %144, %142, %cst_136 {dimension_numbers = #tpu.dot_dimension_numbers<[1], [0], [0], [1], [0, 0, 1, 1], [], []>} : vector<8x72xbf16>, vector<72x1024xbf16>, vector<8x1024xf32> -> vector<8x1024xf32>
    %146 = arith.addf %132, %145 : vector<8x1024xf32>
    %c0_137 = arith.constant 0 : index
    %c217_138 = arith.constant 217 : index
    %147 = vector.load %arg13[%c0_137, %c217_138] : memref<8x1280xbf16, #tpu.memory_space<vmem>>, vector<8x1024xbf16>
    %c0_139 = arith.constant 0 : index
    %c218_140 = arith.constant 218 : index
    %148 = vector.load %arg13[%c0_139, %c218_140] : memref<8x1280xbf16, #tpu.memory_space<vmem>>, vector<8x1024xbf16>
    %c0_141 = arith.constant 0 : index
    %c219_142 = arith.constant 219 : index
    %149 = vector.load %arg13[%c0_141, %c219_142] : memref<8x1280xbf16, #tpu.memory_space<vmem>>, vector<8x1024xbf16>
    %c0_143 = arith.constant 0 : index
    %c227_144 = arith.constant 227 : index
    %150 = vector.load %arg13[%c0_143, %c227_144] : memref<8x1280xbf16, #tpu.memory_space<vmem>>, vector<8x1024xbf16>
    %c0_145 = arith.constant 0 : index
    %c228_146 = arith.constant 228 : index
    %151 = vector.load %arg13[%c0_145, %c228_146] : memref<8x1280xbf16, #tpu.memory_space<vmem>>, vector<8x1024xbf16>
    %c0_147 = arith.constant 0 : index
    %c229_148 = arith.constant 229 : index
    %152 = vector.load %arg13[%c0_147, %c229_148] : memref<8x1280xbf16, #tpu.memory_space<vmem>>, vector<8x1024xbf16>
    %c0_149 = arith.constant 0 : index
    %c237_150 = arith.constant 237 : index
    %153 = vector.load %arg13[%c0_149, %c237_150] : memref<8x1280xbf16, #tpu.memory_space<vmem>>, vector<8x1024xbf16>
    %c0_151 = arith.constant 0 : index
    %c238_152 = arith.constant 238 : index
    %154 = vector.load %arg13[%c0_151, %c238_152] : memref<8x1280xbf16, #tpu.memory_space<vmem>>, vector<8x1024xbf16>
    %c0_153 = arith.constant 0 : index
    %c239_154 = arith.constant 239 : index
    %155 = vector.load %arg13[%c0_153, %c239_154] : memref<8x1280xbf16, #tpu.memory_space<vmem>>, vector<8x1024xbf16>
    %156 = tpu.concatenate %147, %148, %149, %150, %151, %152, %153, %154, %155 in 0 : vector<8x1024xbf16>, vector<8x1024xbf16>, vector<8x1024xbf16>, vector<8x1024xbf16>, vector<8x1024xbf16>, vector<8x1024xbf16>, vector<8x1024xbf16>, vector<8x1024xbf16>, vector<8x1024xbf16> -> vector<72x1024xbf16>
    %c2_155 = arith.constant 2 : index
    %c0_156 = arith.constant 0 : index
    %c0_157 = arith.constant 0 : index
    %157 = vector.load %arg8[%c2_155, %c0_156, %c0_157] : memref<3x8x72xbf16, #tpu.memory_space<vmem>>, vector<1x8x72xbf16>
    %158 = vector.shape_cast %157 : vector<1x8x72xbf16> to vector<8x72xbf16>
    %cst_158 = arith.constant dense<0.000000e+00> : vector<8x1024xf32>
    %159 = tpu.matmul %158, %156, %cst_158 {dimension_numbers = #tpu.dot_dimension_numbers<[1], [0], [0], [1], [0, 0, 1, 1], [], []>} : vector<8x72xbf16>, vector<72x1024xbf16>, vector<8x1024xf32> -> vector<8x1024xf32>
    %160 = arith.addf %146, %159 : vector<8x1024xf32>
    %c0_159 = arith.constant 0 : index
    %c0_160 = arith.constant 0 : index
    %161 = vector.load %arg9[%c0_159, %c0_160] : memref<8x1xf32, #tpu.memory_space<vmem>>, vector<8x1xf32>
    %162 = vector.broadcast %161 : vector<8x1xf32> to vector<8x1024xf32>
    %163 = arith.addf %160, %162 : vector<8x1024xf32>
    %c0_161 = arith.constant 0 : index
    %c0_162 = arith.constant 0 : index
    %164 = vector.load %arg2[%c0_161, %c0_162] : memref<1x1024xbf16, #tpu.memory_space<vmem>>, vector<1x1024xbf16>
    %165 = arith.extf %164 : vector<1x1024xbf16> to vector<1x1024xf32>
    %166 = vector.broadcast %165 : vector<1x1024xf32> to vector<8x1024xf32>
    %167 = arith.mulf %163, %166 : vector<8x1024xf32>
    %cst_163 = arith.constant dense<0.000000e+00> : vector<8xf32>
    %168 = vector.multi_reduction <add>, %167, %cst_163 [1] : vector<8x1024xf32> to vector<8xf32>
    %169 = vector.shape_cast %168 : vector<8xf32> to vector<8x1xf32>
    %170 = arith.addf %118, %169 : vector<8x1xf32>
    %171 = arith.mulf %167, %163 : vector<8x1024xf32>
    %cst_164 = arith.constant dense<0.000000e+00> : vector<8xf32>
    %172 = vector.multi_reduction <add>, %171, %cst_164 [1] : vector<8x1024xf32> to vector<8xf32>
    %173 = vector.shape_cast %172 : vector<8xf32> to vector<8x1xf32>
    %174 = arith.addf %119, %173 : vector<8x1xf32>
    %175 = arith.truncf %163 : vector<8x1024xf32> to vector<8x1024xbf16>
    %c0_165 = arith.constant 0 : index
    %c0_166 = arith.constant 0 : index
    %c0_167 = arith.constant 0 : index
    %176 = vector.load %arg12[%c0_165, %c0_166, %c0_167] : memref<1x8x1024xbf16, #tpu.memory_space<vmem>>, vector<1x8x1024xbf16>
    %177 = vector.shape_cast %176 : vector<1x8x1024xbf16> to vector<8x1024xbf16>
    %178 = vector.shape_cast %175 : vector<8x1024xbf16> to vector<1x8x1024xbf16>
    tpu.vector_store %arg12[%c0_165, %c0_166, %c0_167], %178 {strides = array<i32>} : memref<1x8x1024xbf16, #tpu.memory_space<vmem>>, vector<1x8x1024xbf16>,
    %c0_168 = arith.constant 0 : index
    %c0_169 = arith.constant 0 : index
    %179 = vector.load %arg3[%c0_168, %c0_169] : memref<8x8xf32, #tpu.memory_space<vmem>>, vector<8x8xf32>
    %180 = tpu.concatenate %170, %174 in 1 : vector<8x1xf32>, vector<8x1xf32> -> vector<8x2xf32>
    %cst_170 = arith.constant dense<0.000000e+00> : vector<8x2xf32>
    %181 = tpu.matmul %179, %180, %cst_170 {dimension_numbers = #tpu.dot_dimension_numbers<[1], [0], [0], [1], [0, 0, 1, 1], [], []>} : vector<8x8xf32>, vector<8x2xf32>, vector<8x2xf32> -> vector<8x2xf32>
    %182 = vector.extract_strided_slice %181 {offsets = [0, 0], sizes = [8, 1], strides = [1, 1]} : vector<8x2xf32> to vector<8x1xf32>
    %183 = vector.extract_strided_slice %181 {offsets = [0, 1], sizes = [8, 1], strides = [1, 1]} : vector<8x2xf32> to vector<8x1xf32>
    %184 = arith.mulf %182, %182 : vector<8x1xf32>
    %185 = arith.subf %183, %184 : vector<8x1xf32>
    %c0_171 = arith.constant 0 : index
    %c0_172 = arith.constant 0 : index
    %186 = vector.load %arg10[%c0_171, %c0_172] : memref<8x1xf32, #tpu.memory_space<vmem>>, vector<8x1xf32>
    %cst_173 = arith.constant 9.99999974E-6 : f32
    %187 = vector.broadcast %cst_173 : f32 to vector<8x1xf32>
    %188 = arith.addf %185, %187 : vector<8x1xf32>
    %189 = math.rsqrt %188 : vector<8x1xf32>
    %190 = arith.mulf %186, %189 : vector<8x1xf32>
    %c0_174 = arith.constant 0 : index
    %c0_175 = arith.constant 0 : index
    %191 = vector.load %arg11[%c0_174, %c0_175] : memref<8x1xf32, #tpu.memory_space<vmem>>, vector<8x1xf32>
    %192 = arith.mulf %182, %190 : vector<8x1xf32>
    %193 = arith.subf %191, %192 : vector<8x1xf32>
    %c0_176 = arith.constant 0 : index
    %c0_177 = arith.constant 0 : index
    %c0_178 = arith.constant 0 : index
    %194 = vector.load %arg12[%c0_176, %c0_177, %c0_178] : memref<1x8x1024xbf16, #tpu.memory_space<vmem>>, vector<1x8x1024xbf16>
    %195 = vector.shape_cast %194 : vector<1x8x1024xbf16> to vector<8x1024xbf16>
    %196 = arith.extf %195 : vector<8x1024xbf16> to vector<8x1024xf32>
    %c0_179 = arith.constant 0 : index
    %c0_180 = arith.constant 0 : index
    %197 = vector.load %arg2[%c0_179, %c0_180] : memref<1x1024xbf16, #tpu.memory_space<vmem>>, vector<1x1024xbf16>
    %198 = arith.extf %197 : vector<1x1024xbf16> to vector<1x1024xf32>
    %199 = vector.broadcast %190 : vector<8x1xf32> to vector<8x1024xf32>
    %200 = arith.mulf %196, %199 : vector<8x1024xf32>
    %201 = vector.broadcast %193 : vector<8x1xf32> to vector<8x1024xf32>
    %202 = arith.addf %200, %201 : vector<8x1024xf32>
    %cst_181 = arith.constant 0.000000e+00 : f32
    %203 = vector.broadcast %cst_181 : f32 to vector<8x1024xf32>
    %204 = arith.maximumf %202, %203 : vector<8x1024xf32>
    %205 = vector.broadcast %198 : vector<1x1024xf32> to vector<8x1024xf32>
    %206 = arith.mulf %204, %205 : vector<8x1024xf32>
    %207 = arith.truncf %206 : vector<8x1024xf32> to vector<8x1024xbf16>
    %c0_182 = arith.constant 0 : index
    %c0_183 = arith.constant 0 : index
    %c0_184 = arith.constant 0 : index
    %208 = vector.load %arg12[%c0_182, %c0_183, %c0_184] : memref<1x8x1024xbf16, #tpu.memory_space<vmem>>, vector<1x8x1024xbf16>
    %209 = vector.shape_cast %208 : vector<1x8x1024xbf16> to vector<8x1024xbf16>
    %210 = vector.shape_cast %207 : vector<8x1024xbf16> to vector<1x8x1024xbf16>
    tpu.vector_store %arg12[%c0_182, %c0_183, %c0_184], %210 {strides = array<i32>} : memref<1x8x1024xbf16, #tpu.memory_space<vmem>>, vector<1x8x1024xbf16>,
    return
  }
  func.func @transform_0(%arg0: i32) -> (i32, i32, i32) {
    %c0_i32 = arith.constant 0 : i32
    %c0_i32_0 = arith.constant 0 : i32
    %c0_i32_1 = arith.constant 0 : i32
    return %arg0, %c0_i32, %c0_i32_0 : i32, i32, i32
  }
  func.func @transform_1(%arg0: i32) -> (i32, i32) {
    %c0_i32 = arith.constant 0 : i32
    %c0_i32_0 = arith.constant 0 : i32
    %c0_i32_1 = arith.constant 0 : i32
    return %c0_i32, %c0_i32_0 : i32, i32
  }
  func.func @transform_2(%arg0: i32) -> (i32, i32) {
    %c0_i32 = arith.constant 0 : i32
    %c0_i32_0 = arith.constant 0 : i32
    %c0_i32_1 = arith.constant 0 : i32
    return %c0_i32, %c0_i32_0 : i32, i32
  }
  func.func @transform_3(%arg0: i32) -> (i32, i32, i32) {
    %c0_i32 = arith.constant 0 : i32
    %c0_i32_0 = arith.constant 0 : i32
    %c0_i32_1 = arith.constant 0 : i32
    %c0_i32_2 = arith.constant 0 : i32
    return %c0_i32, %c0_i32_0, %c0_i32_1 : i32, i32, i32
  }
  func.func @transform_4(%arg0: i32) -> (i32, i32) {
    %c0_i32 = arith.constant 0 : i32
    %c0_i32_0 = arith.constant 0 : i32
    %c0_i32_1 = arith.constant 0 : i32
    return %c0_i32, %c0_i32_0 : i32, i32
  }
  func.func @transform_5(%arg0: i32) -> (i32, i32) {
    %c0_i32 = arith.constant 0 : i32
    %c0_i32_0 = arith.constant 0 : i32
    %c0_i32_1 = arith.constant 0 : i32
    return %c0_i32, %c0_i32_0 : i32, i32
  }
  func.func @transform_6(%arg0: i32) -> (i32, i32) {
    %c0_i32 = arith.constant 0 : i32
    %c0_i32_0 = arith.constant 0 : i32
    %c0_i32_1 = arith.constant 0 : i32
    return %c0_i32, %c0_i32_0 : i32, i32
  }
  func.func @transform_7(%arg0: i32) -> (i32, i32, i32) {
    %c0_i32 = arith.constant 0 : i32
    %c0_i32_0 = arith.constant 0 : i32
    %c0_i32_1 = arith.constant 0 : i32
    %c0_i32_2 = arith.constant 0 : i32
    return %c0_i32, %c0_i32_0, %c0_i32_1 : i32, i32, i32
  }
  func.func @transform_8(%arg0: i32) -> (i32, i32) {
    %c0_i32 = arith.constant 0 : i32
    %c0_i32_0 = arith.constant 0 : i32
    %c0_i32_1 = arith.constant 0 : i32
    return %c0_i32, %c0_i32_0 : i32, i32
  }
  func.func @transform_9(%arg0: i32) -> (i32, i32) {
    %c0_i32 = arith.constant 0 : i32
    %c0_i32_0 = arith.constant 0 : i32
    %c0_i32_1 = arith.constant 0 : i32
    return %c0_i32, %c0_i32_0 : i32, i32
  }
  func.func @transform_10(%arg0: i32) -> (i32, i32) {
    %c0_i32 = arith.constant 0 : i32
    %c0_i32_0 = arith.constant 0 : i32
    %c0_i32_1 = arith.constant 0 : i32
    return %c0_i32, %c0_i32_0 : i32, i32
  }
  func.func @transform_11(%arg0: i32) -> (i32, i32, i32) {
    %c0_i32 = arith.constant 0 : i32
    %c0_i32_0 = arith.constant 0 : i32
    %c0_i32_1 = arith.constant 0 : i32
    return %arg0, %c0_i32, %c0_i32_0 : i32, i32, i32
  }
}

</mosaic_0001>

<llo_original>
// kernel: up_block_3d.1
$region0: #{up_block_3d.1}
  #allocation0 [shape = 'u32[]', space=smem, size = 0x4, offset = 0x4, fixed_abs, tag = 'smem constant byte address 0x4 - core index']
  #allocation1 [shape = 'u32[144,128]{1,0:T(1,128)}', space=vmem, size = 0x12000, scoped, tag = 'internal scratch']
  #allocation2 [shape = 'bf16[8,1280]{1,0:T(8,128)(2,1)}', space=vmem, size = 0x5000, scoped, tag = 'scratch operand']
  %s0 = inlined_call_operand.hbm [shape: bf16[2,16,1280], index: 0, kind: input, shape index: {}]
  %s1 = inlined_call_operand.hbm [shape: bf16[1,1024], index: 1, kind: input, shape index: {}]
  %s2 = inlined_call_operand.hbm [shape: f32[8,8], index: 2, kind: input, shape index: {}]
  %s3 = inlined_call_operand.hbm [shape: bf16[3,8,144], index: 3, kind: input, shape index: {}]
  %s4 = inlined_call_operand.hbm [shape: f32[8,1], index: 4, kind: input, shape index: {}]
  %s5 = inlined_call_operand.hbm [shape: f32[8,1], index: 5, kind: input, shape index: {}]
  %s6 = inlined_call_operand.hbm [shape: f32[8,1], index: 6, kind: input, shape index: {}]
  %s7 = inlined_call_operand.hbm [shape: bf16[3,8,72], index: 7, kind: input, shape index: {}]
  %s8 = inlined_call_operand.hbm [shape: f32[8,1], index: 8, kind: input, shape index: {}]
  %s9 = inlined_call_operand.hbm [shape: f32[8,1], index: 9, kind: input, shape index: {}]
  %s10 = inlined_call_operand.hbm [shape: f32[8,1], index: 10, kind: input, shape index: {}]
  %s11 = inlined_call_operand.hbm [shape: bf16[2,8,1024], index: 11, kind: output, shape index: {}]
  %s12 = sld [smem:[#allocation0]]
  $region121: #{up_block_3d.1} parent=0
    _
  %s14 = ssub.s32 1, %s12
  %s15 = scalar_select 0, %s14, %s12
  $region1: #{up_block_3d.1} parent=0
    #allocation3 [shape = 'u8[81920]{0}', space=vmem, size = 0x14000, scoped, tag = 'input window, operand 0']
    #allocation4 [shape = 's32[2]{0}', space=sflag, size = 0x8, scoped, tag = 'scoped memory for up_block_3d.1']
    #allocation5 [shape = 's32[2]{0}', space=sflag, size = 0x8, scoped, tag = 'scoped memory for up_block_3d.1']
    #allocation6 [shape = 'u8[4096]{0}', space=vmem, size = 0x1000, scoped, tag = 'input window, operand 1, single buffered']
    #allocation7 [shape = 's32[1]{0}', space=sflag, size = 0x4, scoped, tag = 'scoped memory for up_block_3d.1']
    #allocation8 [shape = 'u8[4096]{0}', space=vmem, size = 0x1000, scoped, tag = 'input window, operand 2, single buffered']
    #allocation9 [shape = 'u8[12288]{0}', space=vmem, size = 0x3000, scoped, tag = 'input window, operand 3, single buffered']
    #allocation10 [shape = 's32[1]{0}', space=sflag, size = 0x4, scoped, tag = 'scoped memory for up_block_3d.1']
    #allocation11 [shape = 'u8[4096]{0}', space=vmem, size = 0x1000, scoped, tag = 'input window, operand 4, single buffered']
    #allocation12 [shape = 'u8[4096]{0}', space=vmem, size = 0x1000, scoped, tag = 'input window, operand 5, single buffered']
    #allocation13 [shape = 's32[1]{0}', space=sflag, size = 0x4, scoped, tag = 'scoped memory for up_block_3d.1']
    #allocation14 [shape = 'u8[4096]{0}', space=vmem, size = 0x1000, scoped, tag = 'input window, operand 6, single buffered']
    #allocation15 [shape = 'u8[6144]{0}', space=vmem, size = 0x1800, scoped, tag = 'input window, operand 7, single buffered']
    #allocation16 [shape = 's32[1]{0}', space=sflag, size = 0x4, scoped, tag = 'scoped memory for up_block_3d.1']
    #allocation17 [shape = 'u8[4096]{0}', space=vmem, size = 0x1000, scoped, tag = 'input window, operand 8, single buffered']
    #allocation18 [shape = 'u8[4096]{0}', space=vmem, size = 0x1000, scoped, tag = 'input window, operand 9, single buffered']
    #allocation19 [shape = 's32[1]{0}', space=sflag, size = 0x4, scoped, tag = 'scoped memory for up_block_3d.1']
    #allocation20 [shape = 'u8[4096]{0}', space=vmem, size = 0x1000, scoped, tag = 'input window, operand 10, single buffered']
    #allocation21 [shape = 'u8[32768]{0}', space=vmem, size = 0x8000, scoped, tag = 'output window, operand 0']
    %16 = vsyncpa [#allocation4], 0
    %s17 = scalar_lea.sflag [#allocation4], 1
    %18 = vsyncpa %s17, 0
    %19 = vsyncpa [#allocation7], 0
    %20 = vsyncpa [#allocation10], 0
    %21 = vsyncpa [#allocation13], 0
    %22 = vsyncpa [#allocation16], 0
    %23 = vsyncpa [#allocation19], 0
    %24 = vsyncpa [#allocation5], 0
    %s25 = scalar_lea.sflag [#allocation5], 1
    %26 = vsyncpa %s25, 0
    loop: start=0, step=1, limit=4
    $region2: #{up_block_3d.1} parent=1 // loop_pre_header
      _
    $region3: #{up_block_3d.1} parent=1 // loop_header
      %s28 = sphi 0, %s32
      %p29 = scmp.ge.s32.totalorder %s28, 4
      %s38 = sphi 0, %s40
      %s41 = sphi 0, %s38
      %s42 = sphi 0, %s41
      %s58 = sphi 0, %s42
      %s62 = sphi 0, %s62
      %s64 = sphi 0, %s62
      %s65 = sphi 0, %s64
      %s79 = sphi 0, %s65
      %s83 = sphi 0, %s83
      %s85 = sphi 0, %s83
      %s86 = sphi 0, %s85
      %s100 = sphi 0, %s86
      %s104 = sphi 0, %s104
      %s106 = sphi 0, %s104
      %s107 = sphi 0, %s106
      %s121 = sphi 0, %s107
      %s125 = sphi 0, %s125
      %s127 = sphi 0, %s125
      %s128 = sphi 0, %s127
      %s142 = sphi 0, %s128
      %s146 = sphi 0, %s146
      %s148 = sphi 0, %s146
      %s149 = sphi 0, %s148
      %s163 = sphi 0, %s149
      %s167 = sphi 0, %s167
      %s169 = sphi 0, %s167
      %s170 = sphi 0, %s169
      %s184 = sphi 0, %s170
      %s188 = sphi 0, %s188
      %s190 = sphi 0, %s188
      %s191 = sphi 0, %s190
      %s205 = sphi 0, %s191
      %s209 = sphi 0, %s209
      %s211 = sphi 0, %s209
      %s212 = sphi 0, %s211
      %s226 = sphi 0, %s212
      %s230 = sphi 0, %s230
      %s232 = sphi 0, %s230
      %s233 = sphi 0, %s232
      %s247 = sphi 0, %s233
      %s251 = sphi 0, %s251
      %s253 = sphi 0, %s251
      %s254 = sphi 0, %s253
      %s268 = sphi 0, %s254
      %s274 = sphi 0, %s276
      %s277 = sphi 0, %s274
      %s278 = sphi 0, %s277
      %s294 = sphi 0, %s278
    $region4: #{up_block_3d.1} parent=1 // loop_header_branch
      %31 = sbr.rel (%p29) target = $region8
    $region5: #{up_block_3d.1} parent=1 // loop_body
      %s33 = ssub.s32 %s28, 1
      %s34 = ssub.s32 %s28, 2
      %s35 = sadd.s32 %s28, 1
      %s36 = ssub.s32 %s28, %s35
      %p37 = scmp.eq.s32.totalorder %s36, 0
      %s39 = sadd.s32 %s38, 1
      %s40 = scalar_select %p37, %s38, %s39
      %p43 = pneg %p37
      %p44 = scmp.eq.s32.totalorder %s28, 1
      %p45 = por %p43, %p44
      %p46 = scmp.ne.s32.totalorder %s38, %s41
      %p47 = scmp.eq.s32.totalorder %s28, 0
      %p48 = por %p46, %p47
      %p49 = scmp.ne.s32.totalorder %s38, %s41
      %p50 = scmp.eq.s32.totalorder %s33, 1
      %p51 = por %p49, %p50
      %p52 = scmp.ne.s32.totalorder %s41, %s42
      %p53 = scmp.eq.s32.totalorder %s33, 0
      %p54 = por %p52, %p53
      %p55 = scmp.ne.s32.totalorder %s41, %s42
      %p56 = scmp.eq.s32.totalorder %s34, 1
      %p57 = por %p55, %p56
      %p59 = scmp.ne.s32.totalorder %s42, %s58
      %p60 = scmp.eq.s32.totalorder %s34, 0
      %p61 = por %p59, %p60
      %s63 = sadd.s32 %s62, 1
      %p66 = scmp.eq.s32.totalorder %s28, 1
      %p67 = scmp.ne.s32.totalorder %s62, %s64
      %p68 = scmp.eq.s32.totalorder %s28, 0
      %p69 = por %p67, %p68
      %p70 = scmp.ne.s32.totalorder %s62, %s64
      %p71 = scmp.eq.s32.totalorder %s33, 1
      %p72 = por %p70, %p71
      %p73 = scmp.ne.s32.totalorder %s64, %s65
      %p74 = scmp.eq.s32.totalorder %s33, 0
      %p75 = por %p73, %p74
      %p76 = scmp.ne.s32.totalorder %s64, %s65
      %p77 = scmp.eq.s32.totalorder %s34, 1
      %p78 = por %p76, %p77
      %p80 = scmp.ne.s32.totalorder %s65, %s79
      %p81 = scmp.eq.s32.totalorder %s34, 0
      %p82 = por %p80, %p81
      %s84 = sadd.s32 %s83, 1
      %p87 = scmp.eq.s32.totalorder %s28, 1
      %p88 = scmp.ne.s32.totalorder %s83, %s85
      %p89 = scmp.eq.s32.totalorder %s28, 0
      %p90 = por %p88, %p89
      %p91 = scmp.ne.s32.totalorder %s83, %s85
      %p92 = scmp.eq.s32.totalorder %s33, 1
      %p93 = por %p91, %p92
      %p94 = scmp.ne.s32.totalorder %s85, %s86
      %p95 = scmp.eq.s32.totalorder %s33, 0
      %p96 = por %p94, %p95
      %p97 = scmp.ne.s32.totalorder %s85, %s86
      %p98 = scmp.eq.s32.totalorder %s34, 1
      %p99 = por %p97, %p98
      %p101 = scmp.ne.s32.totalorder %s86, %s100
      %p102 = scmp.eq.s32.totalorder %s34, 0
      %p103 = por %p101, %p102
      %s105 = sadd.s32 %s104, 1
      %p108 = scmp.eq.s32.totalorder %s28, 1
      %p109 = scmp.ne.s32.totalorder %s104, %s106
      %p110 = scmp.eq.s32.totalorder %s28, 0
      %p111 = por %p109, %p110
      %p112 = scmp.ne.s32.totalorder %s104, %s106
      %p113 = scmp.eq.s32.totalorder %s33, 1
      %p114 = por %p112, %p113
      %p115 = scmp.ne.s32.totalorder %s106, %s107
      %p116 = scmp.eq.s32.totalorder %s33, 0
      %p117 = por %p115, %p116
      %p118 = scmp.ne.s32.totalorder %s106, %s107
      %p119 = scmp.eq.s32.totalorder %s34, 1
      %p120 = por %p118, %p119
      %p122 = scmp.ne.s32.totalorder %s107, %s121
      %p123 = scmp.eq.s32.totalorder %s34, 0
      %p124 = por %p122, %p123
      %s126 = sadd.s32 %s125, 1
      %p129 = scmp.eq.s32.totalorder %s28, 1
      %p130 = scmp.ne.s32.totalorder %s125, %s127
      %p131 = scmp.eq.s32.totalorder %s28, 0
      %p132 = por %p130, %p131
      %p133 = scmp.ne.s32.totalorder %s125, %s127
      %p134 = scmp.eq.s32.totalorder %s33, 1
      %p135 = por %p133, %p134
      %p136 = scmp.ne.s32.totalorder %s127, %s128
      %p137 = scmp.eq.s32.totalorder %s33, 0
      %p138 = por %p136, %p137
      %p139 = scmp.ne.s32.totalorder %s127, %s128
      %p140 = scmp.eq.s32.totalorder %s34, 1
      %p141 = por %p139, %p140
      %p143 = scmp.ne.s32.totalorder %s128, %s142
      %p144 = scmp.eq.s32.totalorder %s34, 0
      %p145 = por %p143, %p144
      %s147 = sadd.s32 %s146, 1
      %p150 = scmp.eq.s32.totalorder %s28, 1
      %p151 = scmp.ne.s32.totalorder %s146, %s148
      %p152 = scmp.eq.s32.totalorder %s28, 0
      %p153 = por %p151, %p152
      %p154 = scmp.ne.s32.totalorder %s146, %s148
      %p155 = scmp.eq.s32.totalorder %s33, 1
      %p156 = por %p154, %p155
      %p157 = scmp.ne.s32.totalorder %s148, %s149
      %p158 = scmp.eq.s32.totalorder %s33, 0
      %p159 = por %p157, %p158
      %p160 = scmp.ne.s32.totalorder %s148, %s149
      %p161 = scmp.eq.s32.totalorder %s34, 1
      %p162 = por %p160, %p161
      %p164 = scmp.ne.s32.totalorder %s149, %s163
      %p165 = scmp.eq.s32.totalorder %s34, 0
      %p166 = por %p164, %p165
      %s168 = sadd.s32 %s167, 1
      %p171 = scmp.eq.s32.totalorder %s28, 1
      %p172 = scmp.ne.s32.totalorder %s167, %s169
      %p173 = scmp.eq.s32.totalorder %s28, 0
      %p174 = por %p172, %p173
      %p175 = scmp.ne.s32.totalorder %s167, %s169
      %p176 = scmp.eq.s32.totalorder %s33, 1
      %p177 = por %p175, %p176
      %p178 = scmp.ne.s32.totalorder %s169, %s170
      %p179 = scmp.eq.s32.totalorder %s33, 0
      %p180 = por %p178, %p179
      %p181 = scmp.ne.s32.totalorder %s169, %s170
      %p182 = scmp.eq.s32.totalorder %s34, 1
      %p183 = por %p181, %p182
      %p185 = scmp.ne.s32.totalorder %s170, %s184
      %p186 = scmp.eq.s32.totalorder %s34, 0
      %p187 = por %p185, %p186
      %s189 = sadd.s32 %s188, 1
      %p192 = scmp.eq.s32.totalorder %s28, 1
      %p193 = scmp.ne.s32.totalorder %s188, %s190
      %p194 = scmp.eq.s32.totalorder %s28, 0
      %p195 = por %p193, %p194
      %p196 = scmp.ne.s32.totalorder %s188, %s190
      %p197 = scmp.eq.s32.totalorder %s33, 1
      %p198 = por %p196, %p197
      %p199 = scmp.ne.s32.totalorder %s190, %s191
      %p200 = scmp.eq.s32.totalorder %s33, 0
      %p201 = por %p199, %p200
      %p202 = scmp.ne.s32.totalorder %s190, %s191
      %p203 = scmp.eq.s32.totalorder %s34, 1
      %p204 = por %p202, %p203
      %p206 = scmp.ne.s32.totalorder %s191, %s205
      %p207 = scmp.eq.s32.totalorder %s34, 0
      %p208 = por %p206, %p207
      %s210 = sadd.s32 %s209, 1
      %p213 = scmp.eq.s32.totalorder %s28, 1
      %p214 = scmp.ne.s32.totalorder %s209, %s211
      %p215 = scmp.eq.s32.totalorder %s28, 0
      %p216 = por %p214, %p215
      %p217 = scmp.ne.s32.totalorder %s209, %s211
      %p218 = scmp.eq.s32.totalorder %s33, 1
      %p219 = por %p217, %p218
      %p220 = scmp.ne.s32.totalorder %s211, %s212
      %p221 = scmp.eq.s32.totalorder %s33, 0
      %p222 = por %p220, %p221
      %p223 = scmp.ne.s32.totalorder %s211, %s212
      %p224 = scmp.eq.s32.totalorder %s34, 1
      %p225 = por %p223, %p224
      %p227 = scmp.ne.s32.totalorder %s212, %s226
      %p228 = scmp.eq.s32.totalorder %s34, 0
      %p229 = por %p227, %p228
      %s231 = sadd.s32 %s230, 1
      %p234 = scmp.eq.s32.totalorder %s28, 1
      %p235 = scmp.ne.s32.totalorder %s230, %s232
      %p236 = scmp.eq.s32.totalorder %s28, 0
      %p237 = por %p235, %p236
      %p238 = scmp.ne.s32.totalorder %s230, %s232
      %p239 = scmp.eq.s32.totalorder %s33, 1
      %p240 = por %p238, %p239
      %p241 = scmp.ne.s32.totalorder %s232, %s233
      %p242 = scmp.eq.s32.totalorder %s33, 0
      %p243 = por %p241, %p242
      %p244 = scmp.ne.s32.totalorder %s232, %s233
      %p245 = scmp.eq.s32.totalorder %s34, 1
      %p246 = por %p244, %p245
      %p248 = scmp.ne.s32.totalorder %s233, %s247
      %p249 = scmp.eq.s32.totalorder %s34, 0
      %p250 = por %p248, %p249
      %s252 = sadd.s32 %s251, 1
      %p255 = scmp.eq.s32.totalorder %s28, 1
      %p256 = scmp.ne.s32.totalorder %s251, %s253
      %p257 = scmp.eq.s32.totalorder %s28, 0
      %p258 = por %p256, %p257
      %p259 = scmp.ne.s32.totalorder %s251, %s253
      %p260 = scmp.eq.s32.totalorder %s33, 1
      %p261 = por %p259, %p260
      %p262 = scmp.ne.s32.totalorder %s253, %s254
      %p263 = scmp.eq.s32.totalorder %s33, 0
      %p264 = por %p262, %p263
      %p265 = scmp.ne.s32.totalorder %s253, %s254
      %p266 = scmp.eq.s32.totalorder %s34, 1
      %p267 = por %p265, %p266
      %p269 = scmp.ne.s32.totalorder %s254, %s268
      %p270 = scmp.eq.s32.totalorder %s34, 0
      %p271 = por %p269, %p270
      %s272 = ssub.s32 %s28, %s35
      %p273 = scmp.eq.s32.totalorder %s272, 0
      %s275 = sadd.s32 %s274, 1
      %s276 = scalar_select %p273, %s274, %s275
      %p279 = pneg %p273
      %p280 = scmp.eq.s32.totalorder %s28, 1
      %p281 = por %p279, %p280
      %p282 = scmp.ne.s32.totalorder %s274, %s277
      %p283 = scmp.eq.s32.totalorder %s28, 0
      %p284 = por %p282, %p283
      %p285 = scmp.ne.s32.totalorder %s274, %s277
      %p286 = scmp.eq.s32.totalorder %s33, 1
      %p287 = por %p285, %p286
      %p288 = scmp.ne.s32.totalorder %s277, %s278
      %p289 = scmp.eq.s32.totalorder %s33, 0
      %p290 = por %p288, %p289
      %p291 = scmp.ne.s32.totalorder %s277, %s278
      %p292 = scmp.eq.s32.totalorder %s34, 1
      %p293 = por %p291, %p292
      %p295 = scmp.ne.s32.totalorder %s278, %s294
      %p296 = scmp.eq.s32.totalorder %s34, 0
      %p297 = por %p295, %p296
      %p298 = scmp.le.s32.totalorder 1, %s28
      %p299 = scmp.lt.s32.totalorder %s28, 3
      %p300 = pnand %p298, %p299
      %p301 = pneg %p300
      // Predicated region
      $region9: #{up_block_3d.1} parent=5 // pred_check
        _
      $region10: #{up_block_3d.1} parent=5 // pred_check_branch
        %303 = sbr.rel (%p300) target = $region12
      $region11: #{up_block_3d.1} parent=5 // pred_region
        %s304 = ssub.s32 %s28, 1
        // Predicated region
        $region13: #{up_block_3d.1} parent=11 // pred_check
          %p305 = pneg %p75
        $region14: #{up_block_3d.1} parent=11 // pred_check_branch
          %307 = sbr.rel (%p305) target = $region16
        $region15: #{up_block_3d.1} parent=11 // pred_region
          %s309 = ssub.s32 128, 128
          %310 = vsyncadd [#allocation7], %s309
          %s312 = sshll.u32 [#allocation6], 4
          %s313 = int_to_ptr.vmem [resolvable:$true] %s312
          %315 = dma.hbm_to_vmem [thread:$0]  %s1, 128, %s313, [#allocation7]
        $region16: #{up_block_3d.1} parent=11 // pred_fallthru
          _
        // Predicated region
        $region17: #{up_block_3d.1} parent=11 // pred_check
          %p316 = pneg %p96
        $region18: #{up_block_3d.1} parent=11 // pred_check_branch
          %318 = sbr.rel (%p316) target = $region20
        $region19: #{up_block_3d.1} parent=11 // pred_region
          %s320 = ssub.s32 128, 128
          %321 = vsyncadd [#allocation7], %s320
          %s323 = sshll.u32 [#allocation8], 4
          %s324 = int_to_ptr.vmem [resolvable:$true] %s323
          %326 = dma.hbm_to_vmem [thread:$0]  %s2, 128, %s324, [#allocation7]
        $region20: #{up_block_3d.1} parent=11 // pred_fallthru
          _
        // Predicated region
        $region21: #{up_block_3d.1} parent=11 // pred_check
          %p327 = pneg %p117
        $region22: #{up_block_3d.1} parent=11 // pred_check_branch
          %329 = sbr.rel (%p327) target = $region24
        $region23: #{up_block_3d.1} parent=11 // pred_region
          %s331 = ssub.s32 384, 384
          %332 = vsyncadd [#allocation10], %s331
          %s333 = sshll.u32 [#allocation9], 4
          %s334 = int_to_ptr.vmem [resolvable:$true] %s333
          %339 = dma.hbm_to_vmem [thread:$0]  %s3, 384, %s334, [#allocation10], 128, 128, 8
        $region24: #{up_block_3d.1} parent=11 // pred_fallthru
          _
        // Predicated region
        $region25: #{up_block_3d.1} parent=11 // pred_check
          %p340 = pneg %p138
        $region26: #{up_block_3d.1} parent=11 // pred_check_branch
          %342 = sbr.rel (%p340) target = $region28
        $region27: #{up_block_3d.1} parent=11 // pred_region
          %s344 = ssub.s32 128, 128
          %345 = vsyncadd [#allocation10], %s344
          %s347 = sshll.u32 [#allocation11], 4
          %s348 = int_to_ptr.vmem [resolvable:$true] %s347
          %350 = dma.hbm_to_vmem [thread:$0]  %s4, 128, %s348, [#allocation10]
        $region28: #{up_block_3d.1} parent=11 // pred_fallthru
          _
        // Predicated region
        $region29: #{up_block_3d.1} parent=11 // pred_check
          %p351 = pneg %p159
        $region30: #{up_block_3d.1} parent=11 // pred_check_branch
          %353 = sbr.rel (%p351) target = $region32
        $region31: #{up_block_3d.1} parent=11 // pred_region
          %s355 = ssub.s32 128, 128
          %356 = vsyncadd [#allocation13], %s355
          %s358 = sshll.u32 [#allocation12], 4
          %s359 = int_to_ptr.vmem [resolvable:$true] %s358
          %361 = dma.hbm_to_vmem [thread:$0]  %s5, 128, %s359, [#allocation13]
        $region32: #{up_block_3d.1} parent=11 // pred_fallthru
          _
        // Predicated region
        $region33: #{up_block_3d.1} parent=11 // pred_check
          %p362 = pneg %p180
        $region34: #{up_block_3d.1} parent=11 // pred_check_branch
          %364 = sbr.rel (%p362) target = $region36
        $region35: #{up_block_3d.1} parent=11 // pred_region
          %s366 = ssub.s32 128, 128
          %367 = vsyncadd [#allocation13], %s366
          %s369 = sshll.u32 [#allocation14], 4
          %s370 = int_to_ptr.vmem [resolvable:$true] %s369
          %372 = dma.hbm_to_vmem [thread:$0]  %s6, 128, %s370, [#allocation13]
        $region36: #{up_block_3d.1} parent=11 // pred_fallthru
          _
        // Predicated region
        $region37: #{up_block_3d.1} parent=11 // pred_check
          %p373 = pneg %p201
        $region38: #{up_block_3d.1} parent=11 // pred_check_branch
          %375 = sbr.rel (%p373) target = $region40
        $region39: #{up_block_3d.1} parent=11 // pred_region
          %s377 = ssub.s32 192, 192
          %378 = vsyncadd [#allocation16], %s377
          %s379 = sshll.u32 [#allocation15], 4
          %s380 = int_to_ptr.vmem [resolvable:$true] %s379
          %385 = dma.hbm_to_vmem [thread:$0]  %s7, 192, %s380, [#allocation16], 64, 64, 4
        $region40: #{up_block_3d.1} parent=11 // pred_fallthru
          _
        // Predicated region
        $region41: #{up_block_3d.1} parent=11 // pred_check
          %p386 = pneg %p222
        $region42: #{up_block_3d.1} parent=11 // pred_check_branch
          %388 = sbr.rel (%p386) target = $region44
        $region43: #{up_block_3d.1} parent=11 // pred_region
          %s390 = ssub.s32 128, 128
          %391 = vsyncadd [#allocation16], %s390
          %s393 = sshll.u32 [#allocation17], 4
          %s394 = int_to_ptr.vmem [resolvable:$true] %s393
          %396 = dma.hbm_to_vmem [thread:$0]  %s8, 128, %s394, [#allocation16]
        $region44: #{up_block_3d.1} parent=11 // pred_fallthru
          _
        // Predicated region
        $region45: #{up_block_3d.1} parent=11 // pred_check
          %p397 = pneg %p243
        $region46: #{up_block_3d.1} parent=11 // pred_check_branch
          %399 = sbr.rel (%p397) target = $region48
        $region47: #{up_block_3d.1} parent=11 // pred_region
          %s401 = ssub.s32 128, 128
          %402 = vsyncadd [#allocation19], %s401
          %s404 = sshll.u32 [#allocation18], 4
          %s405 = int_to_ptr.vmem [resolvable:$true] %s404
          %407 = dma.hbm_to_vmem [thread:$0]  %s9, 128, %s405, [#allocation19]
        $region48: #{up_block_3d.1} parent=11 // pred_fallthru
          _
        // Predicated region
        $region49: #{up_block_3d.1} parent=11 // pred_check
          %p408 = pneg %p264
        $region50: #{up_block_3d.1} parent=11 // pred_check_branch
          %410 = sbr.rel (%p408) target = $region52
        $region51: #{up_block_3d.1} parent=11 // pred_region
          %s412 = ssub.s32 128, 128
          %413 = vsyncadd [#allocation19], %s412
          %s415 = sshll.u32 [#allocation20], 4
          %s416 = int_to_ptr.vmem [resolvable:$true] %s415
          %418 = dma.hbm_to_vmem [thread:$0]  %s10, 128, %s416, [#allocation19]
        $region52: #{up_block_3d.1} parent=11 // pred_fallthru
          _
      $region12: #{up_block_3d.1} parent=5 // pred_fallthru
        _
      %p419 = scmp.lt.s32.totalorder %s28, 2
      // Predicated region
      $region53: #{up_block_3d.1} parent=5 // pred_check
        %p420 = pneg %p419
      $region54: #{up_block_3d.1} parent=5 // pred_check_branch
        %422 = sbr.rel (%p420) target = $region56
      $region55: #{up_block_3d.1} parent=5 // pred_region
        // Predicated region
        $region57: #{up_block_3d.1} parent=55 // pred_check
          %p423 = pneg %p48
        $region58: #{up_block_3d.1} parent=55 // pred_check_branch
          %425 = sbr.rel (%p423) target = $region60
        $region59: #{up_block_3d.1} parent=55 // pred_region
          %s426 = sand.u32 %s38, 1
          %s427 = scalar_lea.sflag [#allocation4], %s426
          %s428 = sand.u32 %s38, 1
          %s429 = smul.addr %s428, 80
          %s430 = scalar_lea.vmem [#allocation3], %s429
          %s432 = ssub.s32 1280, 1280
          %433 = vsyncadd %s427, %s432
          %s434 = smul.addr %s28, 20
          %s435 = smul.addr %s434, 64
          %s436 = scalar_lea.hbm %s0, %s435
          %s437 = sshll.u32 %s430, 4
          %s438 = int_to_ptr.vmem [resolvable:$true] %s437
          %443 = dma.hbm_to_vmem [thread:$0]  %s436, 1280, %s438, %s427, 640, 640, 40
        $region60: #{up_block_3d.1} parent=55 // pred_fallthru
          _
      $region56: #{up_block_3d.1} parent=5 // pred_fallthru
        _
      %p444 = scmp.le.s32.totalorder 1, %s28
      %p445 = scmp.lt.s32.totalorder %s28, 3
      %p446 = pnand %p444, %p445
      %p447 = pneg %p446
      // Predicated region
      $region61: #{up_block_3d.1} parent=5 // pred_check
        _
      $region62: #{up_block_3d.1} parent=5 // pred_check_branch
        %449 = sbr.rel (%p446) target = $region64
      $region63: #{up_block_3d.1} parent=5 // pred_region
        %s450 = ssub.s32 %s28, 1
        %s451 = sand.u32 %s41, 1
        %s452 = scalar_lea.sflag [#allocation4], %s451
        %s453 = sand.u32 %s41, 1
        %s454 = smul.addr %s453, 80
        %s455 = scalar_lea.vmem [#allocation3], %s454
        // Predicated region
        $region65: #{up_block_3d.1} parent=63 // pred_check
          %p456 = pneg %p54
        $region66: #{up_block_3d.1} parent=63 // pred_check_branch
          %458 = sbr.rel (%p456) target = $region68
        $region67: #{up_block_3d.1} parent=63 // pred_region
          %459 = dma.done %s452, 1280
        $region68: #{up_block_3d.1} parent=63 // pred_fallthru
          _
        // Predicated region
        $region69: #{up_block_3d.1} parent=63 // pred_check
          %p460 = pneg %p75
        $region70: #{up_block_3d.1} parent=63 // pred_check_branch
          %462 = sbr.rel (%p460) target = $region72
        $region71: #{up_block_3d.1} parent=63 // pred_region
          %463 = dma.done [#allocation7], 128
        $region72: #{up_block_3d.1} parent=63 // pred_fallthru
          _
        // Predicated region
        $region73: #{up_block_3d.1} parent=63 // pred_check
          %p464 = pneg %p96
        $region74: #{up_block_3d.1} parent=63 // pred_check_branch
          %466 = sbr.rel (%p464) target = $region76
        $region75: #{up_block_3d.1} parent=63 // pred_region
          %467 = dma.done [#allocation7], 128
        $region76: #{up_block_3d.1} parent=63 // pred_fallthru
          _
        // Predicated region
        $region77: #{up_block_3d.1} parent=63 // pred_check
          %p468 = pneg %p117
        $region78: #{up_block_3d.1} parent=63 // pred_check_branch
          %470 = sbr.rel (%p468) target = $region80
        $region79: #{up_block_3d.1} parent=63 // pred_region
          %471 = dma.done [#allocation10], 384
        $region80: #{up_block_3d.1} parent=63 // pred_fallthru
          _
        // Predicated region
        $region81: #{up_block_3d.1} parent=63 // pred_check
          %p472 = pneg %p138
        $region82: #{up_block_3d.1} parent=63 // pred_check_branch
          %474 = sbr.rel (%p472) target = $region84
        $region83: #{up_block_3d.1} parent=63 // pred_region
          %475 = dma.done [#allocation10], 128
        $region84: #{up_block_3d.1} parent=63 // pred_fallthru
          _
        // Predicated region
        $region85: #{up_block_3d.1} parent=63 // pred_check
          %p476 = pneg %p159
        $region86: #{up_block_3d.1} parent=63 // pred_check_branch
          %478 = sbr.rel (%p476) target = $region88
        $region87: #{up_block_3d.1} parent=63 // pred_region
          %479 = dma.done [#allocation13], 128
        $region88: #{up_block_3d.1} parent=63 // pred_fallthru
          _
        // Predicated region
        $region89: #{up_block_3d.1} parent=63 // pred_check
          %p480 = pneg %p180
        $region90: #{up_block_3d.1} parent=63 // pred_check_branch
          %482 = sbr.rel (%p480) target = $region92
        $region91: #{up_block_3d.1} parent=63 // pred_region
          %483 = dma.done [#allocation13], 128
        $region92: #{up_block_3d.1} parent=63 // pred_fallthru
          _
        // Predicated region
        $region93: #{up_block_3d.1} parent=63 // pred_check
          %p484 = pneg %p201
        $region94: #{up_block_3d.1} parent=63 // pred_check_branch
          %486 = sbr.rel (%p484) target = $region96
        $region95: #{up_block_3d.1} parent=63 // pred_region
          %487 = dma.done [#allocation16], 192
        $region96: #{up_block_3d.1} parent=63 // pred_fallthru
          _
        // Predicated region
        $region97: #{up_block_3d.1} parent=63 // pred_check
          %p488 = pneg %p222
        $region98: #{up_block_3d.1} parent=63 // pred_check_branch
          %490 = sbr.rel (%p488) target = $region100
        $region99: #{up_block_3d.1} parent=63 // pred_region
          %491 = dma.done [#allocation16], 128
        $region100: #{up_block_3d.1} parent=63 // pred_fallthru
          _
        // Predicated region
        $region101: #{up_block_3d.1} parent=63 // pred_check
          %p492 = pneg %p243
        $region102: #{up_block_3d.1} parent=63 // pred_check_branch
          %494 = sbr.rel (%p492) target = $region104
        $region103: #{up_block_3d.1} parent=63 // pred_region
          %495 = dma.done [#allocation19], 128
        $region104: #{up_block_3d.1} parent=63 // pred_fallthru
          _
        // Predicated region
        $region105: #{up_block_3d.1} parent=63 // pred_check
          %p496 = pneg %p264
        $region106: #{up_block_3d.1} parent=63 // pred_check_branch
          %498 = sbr.rel (%p496) target = $region108
        $region107: #{up_block_3d.1} parent=63 // pred_region
          %499 = dma.done [#allocation19], 128
        $region108: #{up_block_3d.1} parent=63 // pred_fallthru
          _
        %s500 = sand.u32 %s41, 1
        %s501 = scalar_lea.sflag [#allocation4], %s500
        %s502 = sand.u32 %s41, 1
        %s503 = smul.addr %s502, 80
        %s504 = scalar_lea.vmem [#allocation3], %s503
        %p505 = pneg %p54
        %p506 = pneg %p51
        %p507 = pneg %p75
        %p508 = pneg %p72
        %p509 = pneg %p96
        %p510 = pneg %p93
        %p511 = pneg %p117
        %p512 = pneg %p114
        %p513 = pneg %p138
        %p514 = pneg %p135
        %p515 = pneg %p159
        %p516 = pneg %p156
        %p517 = pneg %p180
        %p518 = pneg %p177
        %p519 = pneg %p201
        %p520 = pneg %p198
        %p521 = pneg %p222
        %p522 = pneg %p219
        %p523 = pneg %p243
        %p524 = pneg %p240
        %p525 = pneg %p264
        %p526 = pneg %p261
        %p527 = pneg %p290
        %p528 = pneg %p287
        %s529 = sand.u32 %s277, 1
        %s530 = scalar_lea.sflag [#allocation5], %s529
        %s531 = sand.u32 %s277, 1
        %s532 = smul.addr %s531, 32
        %s533 = scalar_lea.vmem [#allocation21], %s532
        %535 = vst [vmem:[#allocation2] sm:$0xf] 0
        %536 = vst [vmem:[#allocation2 + $0x24] sm:$0xf] 0
        %v537 = vld [vmem:[%s455] sm:$0xff]
        %v538 = vld [vmem:[%s455 + $0x8] sm:$0xff]
        %v539 = vld [vmem:[%s455 + $0x10] sm:$0xff]
        %v540 = vld [vmem:[%s455 + $0x18] sm:$0xff]
        %v541 = vld [vmem:[%s455 + $0x20] sm:$0xf]
        %v542 = vld [vmem:[%s455 + $0x28] sm:$0xff]
        %v543 = vld [vmem:[%s455 + $0x30] sm:$0xff]
        %v544 = vld [vmem:[%s455 + $0x38] sm:$0xff]
        %v545 = vld [vmem:[%s455 + $0x40] sm:$0xff]
        %v546 = vld [vmem:[%s455 + $0x48] sm:$0xf]
        %v557 = vunpack.c.l.b16 %v537
        %v558 = vunpack.c.h.b16 %v537
        %v559 = vunpack.c.l.b16 %v538
        %v560 = vunpack.c.h.b16 %v538
        %v561 = vunpack.c.l.b16 %v539
        %v562 = vunpack.c.h.b16 %v539
        %v563 = vunpack.c.l.b16 %v540
        %v564 = vunpack.c.h.b16 %v540
        %v565 = vunpack.c.l.b16 %v541
        %v566 = vunpack.c.l.b16 %v542
        %v567 = vunpack.c.h.b16 %v542
        %v568 = vunpack.c.l.b16 %v543
        %v569 = vunpack.c.h.b16 %v543
        %v570 = vunpack.c.l.b16 %v544
        %v571 = vunpack.c.h.b16 %v544
        %v572 = vunpack.c.l.b16 %v545
        %v573 = vunpack.c.h.b16 %v545
        %v574 = vunpack.c.l.b16 %v546
        %v575 = vpack.c.b16 %v566, %v557
        %v576 = vpack.c.b16 %v567, %v558
        %v577 = vpack.c.b16 %v568, %v559
        %v578 = vpack.c.b16 %v569, %v560
        %v579 = vpack.c.b16 %v570, %v561
        %v580 = vpack.c.b16 %v571, %v562
        %v581 = vpack.c.b16 %v572, %v563
        %v582 = vpack.c.b16 %v573, %v564
        %v583 = vpack.c.b16 %v574, %v565
        %584 = vrot.lane.b32.xlu0 %v575, 127
        %v585 = vpop.permute.xlu0 %584
        %586 = vrot.lane.b32.xlu0 %v576, 127
        %v587 = vpop.permute.xlu0 %586
        %588 = vrot.lane.b32.xlu0 %v577, 127
        %v589 = vpop.permute.xlu0 %588
        %590 = vrot.lane.b32.xlu0 %v578, 127
        %v591 = vpop.permute.xlu0 %590
        %592 = vrot.lane.b32.xlu0 %v579, 127
        %v593 = vpop.permute.xlu0 %592
        %594 = vrot.lane.b32.xlu0 %v580, 127
        %v595 = vpop.permute.xlu0 %594
        %596 = vrot.lane.b32.xlu0 %v581, 127
        %v597 = vpop.permute.xlu0 %596
        %598 = vrot.lane.b32.xlu0 %v582, 127
        %v599 = vpop.permute.xlu0 %598
        %600 = vrot.lane.b32.xlu0 %v583, 127
        %v601 = vpop.permute.xlu0 %600
        %vm602 = vcmask 1039360
        %v603 = vsel %vm602, %v585, %v587
        %v604 = vsel %vm602, %v587, %v589
        %v605 = vsel %vm602, %v589, %v591
        %v606 = vsel %vm602, %v591, %v593
        %v607 = vsel %vm602, %v593, %v595
        %v608 = vsel %vm602, %v595, %v597
        %v609 = vsel %vm602, %v597, %v599
        %v610 = vsel %vm602, %v599, %v601
        %611 = vrot.lane.b32.xlu0 %v575, 126
        %v612 = vpop.permute.xlu0 %611
        %613 = vrot.lane.b32.xlu0 %v576, 126
        %v614 = vpop.permute.xlu0 %613
        %615 = vrot.lane.b32.xlu0 %v577, 126
        %v616 = vpop.permute.xlu0 %615
        %617 = vrot.lane.b32.xlu0 %v578, 126
        %v618 = vpop.permute.xlu0 %617
        %619 = vrot.lane.b32.xlu0 %v579, 126
        %v620 = vpop.permute.xlu0 %619
        %621 = vrot.lane.b32.xlu0 %v580, 126
        %v622 = vpop.permute.xlu0 %621
        %623 = vrot.lane.b32.xlu0 %v581, 126
        %v624 = vpop.permute.xlu0 %623
        %625 = vrot.lane.b32.xlu0 %v582, 126
        %v626 = vpop.permute.xlu0 %625
        %627 = vrot.lane.b32.xlu0 %v583, 126
        %v628 = vpop.permute.xlu0 %627
        %vm629 = vcmask 1031168
        %v630 = vsel %vm629, %v612, %v614
        %v631 = vsel %vm629, %v614, %v616
        %v632 = vsel %vm629, %v616, %v618
        %v633 = vsel %vm629, %v618, %v620
        %v634 = vsel %vm629, %v620, %v622
        %v635 = vsel %vm629, %v622, %v624
        %v636 = vsel %vm629, %v624, %v626
        %v637 = vsel %vm629, %v626, %v628
        %638 = vrot.lane.b32.xlu0 %v575, 118
        %v639 = vpop.permute.xlu0 %638
        %640 = vrot.lane.b32.xlu0 %v576, 118
        %v641 = vpop.permute.xlu0 %640
        %642 = vrot.lane.b32.xlu0 %v577, 118
        %v643 = vpop.permute.xlu0 %642
        %644 = vrot.lane.b32.xlu0 %v578, 118
        %v645 = vpop.permute.xlu0 %644
        %646 = vrot.lane.b32.xlu0 %v579, 118
        %v647 = vpop.permute.xlu0 %646
        %648 = vrot.lane.b32.xlu0 %v580, 118
        %v649 = vpop.permute.xlu0 %648
        %650 = vrot.lane.b32.xlu0 %v581, 118
        %v651 = vpop.permute.xlu0 %650
        %652 = vrot.lane.b32.xlu0 %v582, 118
        %v653 = vpop.permute.xlu0 %652
        %654 = vrot.lane.b32.xlu0 %v583, 118
        %v655 = vpop.permute.xlu0 %654
        %vm656 = vcmask 965632
        %v657 = vsel %vm656, %v639, %v641
        %v658 = vsel %vm656, %v641, %v643
        %v659 = vsel %vm656, %v643, %v645
        %v660 = vsel %vm656, %v645, %v647
        %v661 = vsel %vm656, %v647, %v649
        %v662 = vsel %vm656, %v649, %v651
        %v663 = vsel %vm656, %v651, %v653
        %v664 = vsel %vm656, %v653, %v655
        %665 = vrot.lane.b32.xlu0 %v575, 117
        %v666 = vpop.permute.xlu0 %665
        %667 = vrot.lane.b32.xlu0 %v576, 117
        %v668 = vpop.permute.xlu0 %667
        %669 = vrot.lane.b32.xlu0 %v577, 117
        %v670 = vpop.permute.xlu0 %669
        %671 = vrot.lane.b32.xlu0 %v578, 117
        %v672 = vpop.permute.xlu0 %671
        %673 = vrot.lane.b32.xlu0 %v579, 117
        %v674 = vpop.permute.xlu0 %673
        %675 = vrot.lane.b32.xlu0 %v580, 117
        %v676 = vpop.permute.xlu0 %675
        %677 = vrot.lane.b32.xlu0 %v581, 117
        %v678 = vpop.permute.xlu0 %677
        %679 = vrot.lane.b32.xlu0 %v582, 117
        %v680 = vpop.permute.xlu0 %679
        %681 = vrot.lane.b32.xlu0 %v583, 117
        %v682 = vpop.permute.xlu0 %681
        %vm683 = vcmask 957440
        %v684 = vsel %vm683, %v666, %v668
        %v685 = vsel %vm683, %v668, %v670
        %v686 = vsel %vm683, %v670, %v672
        %v687 = vsel %vm683, %v672, %v674
        %v688 = vsel %vm683, %v674, %v676
        %v689 = vsel %vm683, %v676, %v678
        %v690 = vsel %vm683, %v678, %v680
        %v691 = vsel %vm683, %v680, %v682
        %692 = vrot.lane.b32.xlu0 %v575, 116
        %v693 = vpop.permute.xlu0 %692
        %694 = vrot.lane.b32.xlu0 %v576, 116
        %v695 = vpop.permute.xlu0 %694
        %696 = vrot.lane.b32.xlu0 %v577, 116
        %v697 = vpop.permute.xlu0 %696
        %698 = vrot.lane.b32.xlu0 %v578, 116
        %v699 = vpop.permute.xlu0 %698
        %700 = vrot.lane.b32.xlu0 %v579, 116
        %v701 = vpop.permute.xlu0 %700
        %702 = vrot.lane.b32.xlu0 %v580, 116
        %v703 = vpop.permute.xlu0 %702
        %704 = vrot.lane.b32.xlu0 %v581, 116
        %v705 = vpop.permute.xlu0 %704
        %706 = vrot.lane.b32.xlu0 %v582, 116
        %v707 = vpop.permute.xlu0 %706
        %708 = vrot.lane.b32.xlu0 %v583, 116
        %v709 = vpop.permute.xlu0 %708
        %vm710 = vcmask 949248
        %v711 = vsel %vm710, %v693, %v695
        %v712 = vsel %vm710, %v695, %v697
        %v713 = vsel %vm710, %v697, %v699
        %v714 = vsel %vm710, %v699, %v701
        %v715 = vsel %vm710, %v701, %v703
        %v716 = vsel %vm710, %v703, %v705
        %v717 = vsel %vm710, %v705, %v707
        %v718 = vsel %vm710, %v707, %v709
        %719 = vrot.lane.b32.xlu0 %v575, 108
        %v720 = vpop.permute.xlu0 %719
        %721 = vrot.lane.b32.xlu0 %v576, 108
        %v722 = vpop.permute.xlu0 %721
        %723 = vrot.lane.b32.xlu0 %v577, 108
        %v724 = vpop.permute.xlu0 %723
        %725 = vrot.lane.b32.xlu0 %v578, 108
        %v726 = vpop.permute.xlu0 %725
        %727 = vrot.lane.b32.xlu0 %v579, 108
        %v728 = vpop.permute.xlu0 %727
        %729 = vrot.lane.b32.xlu0 %v580, 108
        %v730 = vpop.permute.xlu0 %729
        %731 = vrot.lane.b32.xlu0 %v581, 108
        %v732 = vpop.permute.xlu0 %731
        %733 = vrot.lane.b32.xlu0 %v582, 108
        %v734 = vpop.permute.xlu0 %733
        %735 = vrot.lane.b32.xlu0 %v583, 108
        %v736 = vpop.permute.xlu0 %735
        %vm737 = vcmask 883712
        %v738 = vsel %vm737, %v720, %v722
        %v739 = vsel %vm737, %v722, %v724
        %v740 = vsel %vm737, %v724, %v726
        %v741 = vsel %vm737, %v726, %v728
        %v742 = vsel %vm737, %v728, %v730
        %v743 = vsel %vm737, %v730, %v732
        %v744 = vsel %vm737, %v732, %v734
        %v745 = vsel %vm737, %v734, %v736
        %746 = vrot.lane.b32.xlu0 %v575, 107
        %v747 = vpop.permute.xlu0 %746
        %748 = vrot.lane.b32.xlu0 %v576, 107
        %v749 = vpop.permute.xlu0 %748
        %750 = vrot.lane.b32.xlu0 %v577, 107
        %v751 = vpop.permute.xlu0 %750
        %752 = vrot.lane.b32.xlu0 %v578, 107
        %v753 = vpop.permute.xlu0 %752
        %754 = vrot.lane.b32.xlu0 %v579, 107
        %v755 = vpop.permute.xlu0 %754
        %756 = vrot.lane.b32.xlu0 %v580, 107
        %v757 = vpop.permute.xlu0 %756
        %758 = vrot.lane.b32.xlu0 %v581, 107
        %v759 = vpop.permute.xlu0 %758
        %760 = vrot.lane.b32.xlu0 %v582, 107
        %v761 = vpop.permute.xlu0 %760
        %762 = vrot.lane.b32.xlu0 %v583, 107
        %v763 = vpop.permute.xlu0 %762
        %vm764 = vcmask 875520
        %v765 = vsel %vm764, %v747, %v749
        %v766 = vsel %vm764, %v749, %v751
        %v767 = vsel %vm764, %v751, %v753
        %v768 = vsel %vm764, %v753, %v755
        %v769 = vsel %vm764, %v755, %v757
        %v770 = vsel %vm764, %v757, %v759
        %v771 = vsel %vm764, %v759, %v761
        %v772 = vsel %vm764, %v761, %v763
        %773 = vrot.lane.b32.xlu0 %v575, 106
        %v774 = vpop.permute.xlu0 %773
        %775 = vrot.lane.b32.xlu0 %v576, 106
        %v776 = vpop.permute.xlu0 %775
        %777 = vrot.lane.b32.xlu0 %v577, 106
        %v778 = vpop.permute.xlu0 %777
        %779 = vrot.lane.b32.xlu0 %v578, 106
        %v780 = vpop.permute.xlu0 %779
        %781 = vrot.lane.b32.xlu0 %v579, 106
        %v782 = vpop.permute.xlu0 %781
        %783 = vrot.lane.b32.xlu0 %v580, 106
        %v784 = vpop.permute.xlu0 %783
        %785 = vrot.lane.b32.xlu0 %v581, 106
        %v786 = vpop.permute.xlu0 %785
        %787 = vrot.lane.b32.xlu0 %v582, 106
        %v788 = vpop.permute.xlu0 %787
        %789 = vrot.lane.b32.xlu0 %v583, 106
        %v790 = vpop.permute.xlu0 %789
        %vm791 = vcmask 867328
        %v792 = vsel %vm791, %v774, %v776
        %v793 = vsel %vm791, %v776, %v778
        %v794 = vsel %vm791, %v778, %v780
        %v795 = vsel %vm791, %v780, %v782
        %v796 = vsel %vm791, %v782, %v784
        %v797 = vsel %vm791, %v784, %v786
        %v798 = vsel %vm791, %v786, %v788
        %v799 = vsel %vm791, %v788, %v790
        %v800 = vld [vmem:[#allocation9] sm:$0xff]
        %v801 = vld [vmem:[%s455 + $0x4] sm:$0xff]
        %v802 = vld [vmem:[%s455 + $0xc] sm:$0xff]
        %v803 = vld [vmem:[%s455 + $0x14] sm:$0xff]
        %v804 = vld [vmem:[%s455 + $0x1c] sm:$0xff]
        %v805 = vld [vmem:[%s455 + $0x2c] sm:$0xff]
        %v806 = vld [vmem:[%s455 + $0x34] sm:$0xff]
        %v807 = vld [vmem:[%s455 + $0x3c] sm:$0xff]
        %v808 = vld [vmem:[%s455 + $0x44] sm:$0xff]
        %v809 = vld [vmem:[%s455 + $0x4] sm:$0xff]
        %v810 = vld [vmem:[%s455 + $0xc] sm:$0xff]
        %v811 = vld [vmem:[%s455 + $0x14] sm:$0xff]
        %v812 = vld [vmem:[%s455 + $0x1c] sm:$0xff]
        %v813 = vld [vmem:[%s455 + $0x24] sm:$0xf]
        %v814 = vld [vmem:[%s455 + $0x2c] sm:$0xff]
        %v815 = vld [vmem:[%s455 + $0x34] sm:$0xff]
        %v816 = vld [vmem:[%s455 + $0x3c] sm:$0xff]
        %v817 = vld [vmem:[%s455 + $0x44] sm:$0xff]
        %v818 = vld [vmem:[%s455 + $0x4c] sm:$0xf]
        %v827 = vunpack.c.l.b16 %v801
        %v828 = vunpack.c.h.b16 %v801
        %v829 = vunpack.c.l.b16 %v802
        %v830 = vunpack.c.h.b16 %v802
        %v831 = vunpack.c.l.b16 %v803
        %v832 = vunpack.c.h.b16 %v803
        %v833 = vunpack.c.l.b16 %v804
        %v834 = vunpack.c.h.b16 %v804
        %v835 = vunpack.c.l.b16 %v805
        %v836 = vunpack.c.h.b16 %v805
        %v837 = vunpack.c.l.b16 %v806
        %v838 = vunpack.c.h.b16 %v806
        %v839 = vunpack.c.l.b16 %v807
        %v840 = vunpack.c.h.b16 %v807
        %v841 = vunpack.c.l.b16 %v808
        %v842 = vunpack.c.h.b16 %v808
        %v843 = vpack.c.b16 %v835, %v827
        %v844 = vpack.c.b16 %v836, %v828
        %v845 = vpack.c.b16 %v837, %v829
        %v846 = vpack.c.b16 %v838, %v830
        %v847 = vpack.c.b16 %v839, %v831
        %v848 = vpack.c.b16 %v840, %v832
        %v849 = vpack.c.b16 %v841, %v833
        %v850 = vpack.c.b16 %v842, %v834
        %851 = vrot.lane.b32.xlu0 %v843, 117
        %v852 = vpop.permute.xlu0 %851
        %853 = vrot.lane.b32.xlu0 %v844, 117
        %v854 = vpop.permute.xlu0 %853
        %855 = vrot.lane.b32.xlu0 %v845, 117
        %v856 = vpop.permute.xlu0 %855
        %857 = vrot.lane.b32.xlu0 %v846, 117
        %v858 = vpop.permute.xlu0 %857
        %859 = vrot.lane.b32.xlu0 %v847, 117
        %v860 = vpop.permute.xlu0 %859
        %861 = vrot.lane.b32.xlu0 %v848, 117
        %v862 = vpop.permute.xlu0 %861
        %863 = vrot.lane.b32.xlu0 %v849, 117
        %v864 = vpop.permute.xlu0 %863
        %865 = vrot.lane.b32.xlu0 %v850, 117
        %v866 = vpop.permute.xlu0 %865
        %v867 = vsel %vm683, %v852, %v854
        %v868 = vsel %vm683, %v854, %v856
        %v869 = vsel %vm683, %v856, %v858
        %v870 = vsel %vm683, %v858, %v860
        %v871 = vsel %vm683, %v860, %v862
        %v872 = vsel %vm683, %v862, %v864
        %v873 = vsel %vm683, %v864, %v866
        %v884 = vunpack.c.l.b16 %v809
        %v885 = vunpack.c.h.b16 %v809
        %v886 = vunpack.c.l.b16 %v810
        %v887 = vunpack.c.h.b16 %v810
        %v888 = vunpack.c.l.b16 %v811
        %v889 = vunpack.c.h.b16 %v811
        %v890 = vunpack.c.l.b16 %v812
        %v891 = vunpack.c.h.b16 %v812
        %v892 = vunpack.c.l.b16 %v813
        %v893 = vunpack.c.l.b16 %v814
        %v894 = vunpack.c.h.b16 %v814
        %v895 = vunpack.c.l.b16 %v815
        %v896 = vunpack.c.h.b16 %v815
        %v897 = vunpack.c.l.b16 %v816
        %v898 = vunpack.c.h.b16 %v816
        %v899 = vunpack.c.l.b16 %v817
        %v900 = vunpack.c.h.b16 %v817
        %v901 = vunpack.c.l.b16 %v818
        %v902 = vpack.c.b16 %v893, %v884
        %v903 = vpack.c.b16 %v894, %v885
        %v904 = vpack.c.b16 %v895, %v886
        %v905 = vpack.c.b16 %v896, %v887
        %v906 = vpack.c.b16 %v897, %v888
        %v907 = vpack.c.b16 %v898, %v889
        %v908 = vpack.c.b16 %v899, %v890
        %v909 = vpack.c.b16 %v900, %v891
        %v910 = vpack.c.b16 %v901, %v892
        %911 = vrot.lane.b32.xlu0 %v902, 116
        %v912 = vpop.permute.xlu0 %911
        %913 = vrot.lane.b32.xlu0 %v903, 116
        %v914 = vpop.permute.xlu0 %913
        %915 = vrot.lane.b32.xlu0 %v904, 116
        %v916 = vpop.permute.xlu0 %915
        %917 = vrot.lane.b32.xlu0 %v905, 116
        %v918 = vpop.permute.xlu0 %917
        %919 = vrot.lane.b32.xlu0 %v906, 116
        %v920 = vpop.permute.xlu0 %919
        %921 = vrot.lane.b32.xlu0 %v907, 116
        %v922 = vpop.permute.xlu0 %921
        %923 = vrot.lane.b32.xlu0 %v908, 116
        %v924 = vpop.permute.xlu0 %923
        %925 = vrot.lane.b32.xlu0 %v909, 116
        %v926 = vpop.permute.xlu0 %925
        %927 = vrot.lane.b32.xlu0 %v910, 116
        %v928 = vpop.permute.xlu0 %927
        %v929 = vsel %vm710, %v912, %v914
        %v930 = vsel %vm710, %v914, %v916
        %v931 = vsel %vm710, %v916, %v918
        %v932 = vsel %vm710, %v918, %v920
        %v933 = vsel %vm710, %v920, %v922
        %v934 = vsel %vm710, %v922, %v924
        %v935 = vsel %vm710, %v924, %v926
        %v936 = vsel %vm710, %v926, %v928
        %937 = vrot.lane.b32.xlu0 %v902, 108
        %v938 = vpop.permute.xlu0 %937
        %939 = vrot.lane.b32.xlu0 %v903, 108
        %v940 = vpop.permute.xlu0 %939
        %941 = vrot.lane.b32.xlu0 %v904, 108
        %v942 = vpop.permute.xlu0 %941
        %943 = vrot.lane.b32.xlu0 %v905, 108
        %v944 = vpop.permute.xlu0 %943
        %945 = vrot.lane.b32.xlu0 %v906, 108
        %v946 = vpop.permute.xlu0 %945
        %947 = vrot.lane.b32.xlu0 %v907, 108
        %v948 = vpop.permute.xlu0 %947
        %949 = vrot.lane.b32.xlu0 %v908, 108
        %v950 = vpop.permute.xlu0 %949
        %951 = vrot.lane.b32.xlu0 %v909, 108
        %v952 = vpop.permute.xlu0 %951
        %953 = vrot.lane.b32.xlu0 %v910, 108
        %v954 = vpop.permute.xlu0 %953
        %v955 = vsel %vm737, %v938, %v940
        %v956 = vsel %vm737, %v940, %v942
        %v957 = vsel %vm737, %v942, %v944
        %v958 = vsel %vm737, %v944, %v946
        %v959 = vsel %vm737, %v946, %v948
        %v960 = vsel %vm737, %v948, %v950
        %v961 = vsel %vm737, %v950, %v952
        %v962 = vsel %vm737, %v952, %v954
        %963 = vrot.lane.b32.xlu0 %v902, 107
        %v964 = vpop.permute.xlu0 %963
        %965 = vrot.lane.b32.xlu0 %v903, 107
        %v966 = vpop.permute.xlu0 %965
        %967 = vrot.lane.b32.xlu0 %v904, 107
        %v968 = vpop.permute.xlu0 %967
        %969 = vrot.lane.b32.xlu0 %v905, 107
        %v970 = vpop.permute.xlu0 %969
        %971 = vrot.lane.b32.xlu0 %v906, 107
        %v972 = vpop.permute.xlu0 %971
        %973 = vrot.lane.b32.xlu0 %v907, 107
        %v974 = vpop.permute.xlu0 %973
        %975 = vrot.lane.b32.xlu0 %v908, 107
        %v976 = vpop.permute.xlu0 %975
        %977 = vrot.lane.b32.xlu0 %v909, 107
        %v978 = vpop.permute.xlu0 %977
        %979 = vrot.lane.b32.xlu0 %v910, 107
        %v980 = vpop.permute.xlu0 %979
        %v981 = vsel %vm764, %v964, %v966
        %v982 = vsel %vm764, %v966, %v968
        %v983 = vsel %vm764, %v968, %v970
        %v984 = vsel %vm764, %v970, %v972
        %v985 = vsel %vm764, %v972, %v974
        %v986 = vsel %vm764, %v974, %v976
        %v987 = vsel %vm764, %v976, %v978
        %v988 = vsel %vm764, %v978, %v980
        %989 = vrot.lane.b32.xlu0 %v902, 106
        %v990 = vpop.permute.xlu0 %989
        %991 = vrot.lane.b32.xlu0 %v903, 106
        %v992 = vpop.permute.xlu0 %991
        %993 = vrot.lane.b32.xlu0 %v904, 106
        %v994 = vpop.permute.xlu0 %993
        %995 = vrot.lane.b32.xlu0 %v905, 106
        %v996 = vpop.permute.xlu0 %995
        %997 = vrot.lane.b32.xlu0 %v906, 106
        %v998 = vpop.permute.xlu0 %997
        %999 = vrot.lane.b32.xlu0 %v907, 106
        %v1000 = vpop.permute.xlu0 %999
        %1001 = vrot.lane.b32.xlu0 %v908, 106
        %v1002 = vpop.permute.xlu0 %1001
        %1003 = vrot.lane.b32.xlu0 %v909, 106
        %v1004 = vpop.permute.xlu0 %1003
        %1005 = vrot.lane.b32.xlu0 %v910, 106
        %v1006 = vpop.permute.xlu0 %1005
        %v1007 = vsel %vm791, %v990, %v992
        %v1008 = vsel %vm791, %v992, %v994
        %v1009 = vsel %vm791, %v994, %v996
        %v1010 = vsel %vm791, %v996, %v998
        %v1011 = vsel %vm791, %v998, %v1000
        %v1012 = vsel %vm791, %v1000, %v1002
        %v1013 = vsel %vm791, %v1002, %v1004
        %v1014 = vsel %vm791, %v1004, %v1006
        %s1015 = scalar_lea.vmem [#allocation9], 8
        %v1016 = vld [vmem:[%s1015] sm:$0xff]
        %v1018 = vunpack.c.l.b16 %v1016
        %v1019 = vunpack.c.h.b16 %v1016
        %v1020 = vpack.c.b16 %v1018, %v1018
        %v1021 = vpack.c.b16 %v1019, %v1019
        %1023 = vrot.lane.b32.xlu0 %v575, 11
        %v1024 = vpop.permute.xlu0 %1023
        %1025 = vrot.lane.b32.xlu0 %v576, 11
        %v1026 = vpop.permute.xlu0 %1025
        %1027 = vrot.lane.b32.xlu0 %v577, 11
        %v1028 = vpop.permute.xlu0 %1027
        %1029 = vrot.lane.b32.xlu0 %v578, 11
        %v1030 = vpop.permute.xlu0 %1029
        %1031 = vrot.lane.b32.xlu0 %v579, 11
        %v1032 = vpop.permute.xlu0 %1031
        %1033 = vrot.lane.b32.xlu0 %v580, 11
        %v1034 = vpop.permute.xlu0 %1033
        %1035 = vrot.lane.b32.xlu0 %v581, 11
        %v1036 = vpop.permute.xlu0 %1035
        %1037 = vrot.lane.b32.xlu0 %v582, 11
        %v1038 = vpop.permute.xlu0 %1037
        %1039 = vrot.lane.b32.xlu0 %v583, 11
        %v1040 = vpop.permute.xlu0 %1039
        %1041 = vrot.lane.b32.xlu0 %v603, 11
        %v1042 = vpop.permute.xlu0 %1041
        %1043 = vrot.lane.b32.xlu0 %v604, 11
        %v1044 = vpop.permute.xlu0 %1043
        %1045 = vrot.lane.b32.xlu0 %v605, 11
        %v1046 = vpop.permute.xlu0 %1045
        %1047 = vrot.lane.b32.xlu0 %v606, 11
        %v1048 = vpop.permute.xlu0 %1047
        %1049 = vrot.lane.b32.xlu0 %v607, 11
        %v1050 = vpop.permute.xlu0 %1049
        %1051 = vrot.lane.b32.xlu0 %v608, 11
        %v1052 = vpop.permute.xlu0 %1051
        %1053 = vrot.lane.b32.xlu0 %v609, 11
        %v1054 = vpop.permute.xlu0 %1053
        %1055 = vrot.lane.b32.xlu0 %v610, 11
        %v1056 = vpop.permute.xlu0 %1055
        %1057 = vrot.lane.b32.xlu0 %v601, 11
        %v1058 = vpop.permute.xlu0 %1057
        %1059 = vrot.lane.b32.xlu0 %v630, 11
        %v1060 = vpop.permute.xlu0 %1059
        %1061 = vrot.lane.b32.xlu0 %v631, 11
        %v1062 = vpop.permute.xlu0 %1061
        %1063 = vrot.lane.b32.xlu0 %v632, 11
        %v1064 = vpop.permute.xlu0 %1063
        %1065 = vrot.lane.b32.xlu0 %v633, 11
        %v1066 = vpop.permute.xlu0 %1065
        %1067 = vrot.lane.b32.xlu0 %v634, 11
        %v1068 = vpop.permute.xlu0 %1067
        %1069 = vrot.lane.b32.xlu0 %v635, 11
        %v1070 = vpop.permute.xlu0 %1069
        %1071 = vrot.lane.b32.xlu0 %v636, 11
        %v1072 = vpop.permute.xlu0 %1071
        %1073 = vrot.lane.b32.xlu0 %v637, 11
        %v1074 = vpop.permute.xlu0 %1073
        %1075 = vrot.lane.b32.xlu0 %v628, 11
        %v1076 = vpop.permute.xlu0 %1075
        %1077 = vrot.lane.b32.xlu0 %v657, 11
        %v1078 = vpop.permute.xlu0 %1077
        %1079 = vrot.lane.b32.xlu0 %v658, 11
        %v1080 = vpop.permute.xlu0 %1079
        %1081 = vrot.lane.b32.xlu0 %v659, 11
        %v1082 = vpop.permute.xlu0 %1081
        %1083 = vrot.lane.b32.xlu0 %v660, 11
        %v1084 = vpop.permute.xlu0 %1083
        %1085 = vrot.lane.b32.xlu0 %v661, 11
        %v1086 = vpop.permute.xlu0 %1085
        %1087 = vrot.lane.b32.xlu0 %v662, 11
        %v1088 = vpop.permute.xlu0 %1087
        %1089 = vrot.lane.b32.xlu0 %v663, 11
        %v1090 = vpop.permute.xlu0 %1089
        %1091 = vrot.lane.b32.xlu0 %v664, 11
        %v1092 = vpop.permute.xlu0 %1091
        %1093 = vrot.lane.b32.xlu0 %v655, 11
        %v1094 = vpop.permute.xlu0 %1093
        %1095 = vrot.lane.b32.xlu0 %v852, 11
        %v1096 = vpop.permute.xlu0 %1095
        %1097 = vrot.lane.b32.xlu0 %v867, 11
        %v1098 = vpop.permute.xlu0 %1097
        %1099 = vrot.lane.b32.xlu0 %v868, 11
        %v1100 = vpop.permute.xlu0 %1099
        %1101 = vrot.lane.b32.xlu0 %v869, 11
        %v1102 = vpop.permute.xlu0 %1101
        %1103 = vrot.lane.b32.xlu0 %v870, 11
        %v1104 = vpop.permute.xlu0 %1103
        %1105 = vrot.lane.b32.xlu0 %v871, 11
        %v1106 = vpop.permute.xlu0 %1105
        %1107 = vrot.lane.b32.xlu0 %v872, 11
        %v1108 = vpop.permute.xlu0 %1107
        %1109 = vrot.lane.b32.xlu0 %v873, 11
        %v1110 = vpop.permute.xlu0 %1109
        %1111 = vrot.lane.b32.xlu0 %v866, 11
        %v1112 = vpop.permute.xlu0 %1111
        %1113 = vrot.lane.b32.xlu0 %v912, 11
        %v1114 = vpop.permute.xlu0 %1113
        %1115 = vrot.lane.b32.xlu0 %v929, 11
        %v1116 = vpop.permute.xlu0 %1115
        %1117 = vrot.lane.b32.xlu0 %v930, 11
        %v1118 = vpop.permute.xlu0 %1117
        %1119 = vrot.lane.b32.xlu0 %v931, 11
        %v1120 = vpop.permute.xlu0 %1119
        %1121 = vrot.lane.b32.xlu0 %v932, 11
        %v1122 = vpop.permute.xlu0 %1121
        %1123 = vrot.lane.b32.xlu0 %v933, 11
        %v1124 = vpop.permute.xlu0 %1123
        %1125 = vrot.lane.b32.xlu0 %v934, 11
        %v1126 = vpop.permute.xlu0 %1125
        %1127 = vrot.lane.b32.xlu0 %v935, 11
        %v1128 = vpop.permute.xlu0 %1127
        %1129 = vrot.lane.b32.xlu0 %v936, 11
        %v1130 = vpop.permute.xlu0 %1129
        %1131 = vrot.lane.b32.xlu0 %v938, 11
        %v1132 = vpop.permute.xlu0 %1131
        %1133 = vrot.lane.b32.xlu0 %v955, 11
        %v1134 = vpop.permute.xlu0 %1133
        %1135 = vrot.lane.b32.xlu0 %v956, 11
        %v1136 = vpop.permute.xlu0 %1135
        %1137 = vrot.lane.b32.xlu0 %v957, 11
        %v1138 = vpop.permute.xlu0 %1137
        %1139 = vrot.lane.b32.xlu0 %v958, 11
        %v1140 = vpop.permute.xlu0 %1139
        %1141 = vrot.lane.b32.xlu0 %v959, 11
        %v1142 = vpop.permute.xlu0 %1141
        %1143 = vrot.lane.b32.xlu0 %v960, 11
        %v1144 = vpop.permute.xlu0 %1143
        %1145 = vrot.lane.b32.xlu0 %v961, 11
        %v1146 = vpop.permute.xlu0 %1145
        %1147 = vrot.lane.b32.xlu0 %v962, 11
        %v1148 = vpop.permute.xlu0 %1147
        %1149 = vrot.lane.b32.xlu0 %v964, 11
        %v1150 = vpop.permute.xlu0 %1149
        %1151 = vrot.lane.b32.xlu0 %v981, 11
        %v1152 = vpop.permute.xlu0 %1151
        %1153 = vrot.lane.b32.xlu0 %v982, 11
        %v1154 = vpop.permute.xlu0 %1153
        %1155 = vrot.lane.b32.xlu0 %v983, 11
        %v1156 = vpop.permute.xlu0 %1155
        %1157 = vrot.lane.b32.xlu0 %v984, 11
        %v1158 = vpop.permute.xlu0 %1157
        %1159 = vrot.lane.b32.xlu0 %v985, 11
        %v1160 = vpop.permute.xlu0 %1159
        %1161 = vrot.lane.b32.xlu0 %v986, 11
        %v1162 = vpop.permute.xlu0 %1161
        %1163 = vrot.lane.b32.xlu0 %v987, 11
        %v1164 = vpop.permute.xlu0 %1163
        %1165 = vrot.lane.b32.xlu0 %v988, 11
        %v1166 = vpop.permute.xlu0 %1165
        %1167 = vrot.lane.b32.xlu0 %v990, 11
        %v1168 = vpop.permute.xlu0 %1167
        %1169 = vrot.lane.b32.xlu0 %v1007, 11
        %v1170 = vpop.permute.xlu0 %1169
        %1171 = vrot.lane.b32.xlu0 %v1008, 11
        %v1172 = vpop.permute.xlu0 %1171
        %1173 = vrot.lane.b32.xlu0 %v1009, 11
        %v1174 = vpop.permute.xlu0 %1173
        %1175 = vrot.lane.b32.xlu0 %v1010, 11
        %v1176 = vpop.permute.xlu0 %1175
        %1177 = vrot.lane.b32.xlu0 %v1011, 11
        %v1178 = vpop.permute.xlu0 %1177
        %1179 = vrot.lane.b32.xlu0 %v1012, 11
        %v1180 = vpop.permute.xlu0 %1179
        %1181 = vrot.lane.b32.xlu0 %v1013, 11
        %v1182 = vpop.permute.xlu0 %1181
        %1183 = vrot.lane.b32.xlu0 %v1014, 11
        %v1184 = vpop.permute.xlu0 %1183
        %vm1185 = vcmask 89088
        %v1186 = vsel %vm1185, %v1024, %v1026
        %v1187 = vsel %vm1185, %v1026, %v1028
        %v1188 = vsel %vm1185, %v1028, %v1030
        %v1189 = vsel %vm1185, %v1030, %v1032
        %v1190 = vsel %vm1185, %v1032, %v1034
        %v1191 = vsel %vm1185, %v1034, %v1036
        %v1192 = vsel %vm1185, %v1036, %v1038
        %v1193 = vsel %vm1185, %v1038, %v1040
        %v1194 = vsel %vm1185, %v1042, %v1044
        %v1195 = vsel %vm1185, %v1044, %v1046
        %v1196 = vsel %vm1185, %v1046, %v1048
        %v1197 = vsel %vm1185, %v1048, %v1050
        %v1198 = vsel %vm1185, %v1050, %v1052
        %v1199 = vsel %vm1185, %v1052, %v1054
        %v1200 = vsel %vm1185, %v1054, %v1056
        %v1201 = vsel %vm1185, %v1056, %v1058
        %v1202 = vsel %vm1185, %v1060, %v1062
        %v1203 = vsel %vm1185, %v1062, %v1064
        %v1204 = vsel %vm1185, %v1064, %v1066
        %v1205 = vsel %vm1185, %v1066, %v1068
        %v1206 = vsel %vm1185, %v1068, %v1070
        %v1207 = vsel %vm1185, %v1070, %v1072
        %v1208 = vsel %vm1185, %v1072, %v1074
        %v1209 = vsel %vm1185, %v1074, %v1076
        %v1210 = vsel %vm1185, %v1078, %v1080
        %v1211 = vsel %vm1185, %v1080, %v1082
        %v1212 = vsel %vm1185, %v1082, %v1084
        %v1213 = vsel %vm1185, %v1084, %v1086
        %v1214 = vsel %vm1185, %v1086, %v1088
        %v1215 = vsel %vm1185, %v1088, %v1090
        %v1216 = vsel %vm1185, %v1090, %v1092
        %v1217 = vsel %vm1185, %v1092, %v1094
        %v1218 = vsel %vm1185, %v1096, %v1098
        %v1219 = vsel %vm1185, %v1098, %v1100
        %v1220 = vsel %vm1185, %v1100, %v1102
        %v1221 = vsel %vm1185, %v1102, %v1104
        %v1222 = vsel %vm1185, %v1104, %v1106
        %v1223 = vsel %vm1185, %v1106, %v1108
        %v1224 = vsel %vm1185, %v1108, %v1110
        %v1225 = vsel %vm1185, %v1110, %v1112
        %v1226 = vsel %vm1185, %v1114, %v1116
        %v1227 = vsel %vm1185, %v1116, %v1118
        %v1228 = vsel %vm1185, %v1118, %v1120
        %v1229 = vsel %vm1185, %v1120, %v1122
        %v1230 = vsel %vm1185, %v1122, %v1124
        %v1231 = vsel %vm1185, %v1124, %v1126
        %v1232 = vsel %vm1185, %v1126, %v1128
        %v1233 = vsel %vm1185, %v1128, %v1130
        %v1234 = vsel %vm1185, %v1132, %v1134
        %v1235 = vsel %vm1185, %v1134, %v1136
        %v1236 = vsel %vm1185, %v1136, %v1138
        %v1237 = vsel %vm1185, %v1138, %v1140
        %v1238 = vsel %vm1185, %v1140, %v1142
        %v1239 = vsel %vm1185, %v1142, %v1144
        %v1240 = vsel %vm1185, %v1144, %v1146
        %v1241 = vsel %vm1185, %v1146, %v1148
        %v1242 = vsel %vm1185, %v1150, %v1152
        %v1243 = vsel %vm1185, %v1152, %v1154
        %v1244 = vsel %vm1185, %v1154, %v1156
        %v1245 = vsel %vm1185, %v1156, %v1158
        %v1246 = vsel %vm1185, %v1158, %v1160
        %v1247 = vsel %vm1185, %v1160, %v1162
        %v1248 = vsel %vm1185, %v1162, %v1164
        %v1249 = vsel %vm1185, %v1164, %v1166
        %v1250 = vsel %vm1185, %v1168, %v1170
        %v1251 = vsel %vm1185, %v1170, %v1172
        %v1252 = vsel %vm1185, %v1172, %v1174
        %v1253 = vsel %vm1185, %v1174, %v1176
        %v1254 = vsel %vm1185, %v1176, %v1178
        %v1255 = vsel %vm1185, %v1178, %v1180
        %v1256 = vsel %vm1185, %v1180, %v1182
        %v1257 = vsel %vm1185, %v1182, %v1184
        %vm1330 = vcmask 130048
        %v1332 = vsel %vm1330, %v1021, 0
        %1334 = vmatprep.subr.bf16.mxu0 %v1187
        %1335 = vmatpush1.bf16.msra.mxu0 %v1186
        %1336 = vmatprep.subr.bf16.mxu0 %v1195
        %1337 = vmatpush1.bf16.msra.mxu0 %v1194
        %1338 = vmatprep.subr.bf16.mxu0 %v1203
        %1339 = vmatpush1.bf16.msra.mxu0 %v1202
        %1340 = vmatprep.subr.bf16.mxu0 %v1211
        %1341 = vmatpush1.bf16.msra.mxu0 %v1210
        %1342 = vmatprep.subr.bf16.mxu0 %v1219
        %1343 = vmatpush1.bf16.msra.mxu0 %v1218
        %1344 = vmatprep.subr.bf16.mxu0 %v1227
        %1345 = vmatpush1.bf16.msra.mxu0 %v1226
        %1346 = vmatprep.subr.bf16.mxu0 %v1235
        %1347 = vmatpush1.bf16.msra.mxu0 %v1234
        %1348 = vmatprep.subr.bf16.mxu0 %v1243
        %1349 = vmatpush1.bf16.msra.mxu0 %v1242
        %1350 = vmatprep.subr.bf16.mxu0 %v1251
        %1351 = vmatpush1.bf16.msra.mxu0 %v1250
        %1352 = vmatprep.subr.bf16.mxu0 0
        %1353 = vmatpush1.bf16.msra.mxu0 0
        %1354 = vmatprep.subr.bf16.mxu0 0
        %1355 = vmatpush1.bf16.msra.mxu0 0
        %1356 = vmatprep.subr.bf16.mxu0 0
        %1357 = vmatpush1.bf16.msra.mxu0 0
        %1358 = vmatprep.subr.bf16.mxu0 0
        %1359 = vmatpush1.bf16.msra.mxu0 0
        %1360 = vmatprep.subr.bf16.mxu0 0
        %1361 = vmatpush1.bf16.msra.mxu0 0
        %1362 = vmatprep.subr.bf16.mxu0 0
        %1363 = vmatpush1.bf16.msra.mxu0 0
        %1364 = vmatprep.subr.bf16.mxu0 0
        %1365 = vmatpush1.bf16.msra.mxu0 0
        %1366 = vmatprep.mubr.bf16.mxu0 %v1332
        %1367 = vmatmul.mubr.bf16.gmra.mrb[0].mxu0 %v1020
        %v1368 = vpop.f32.mrb[0].mxu0
        %v1369 = vadd.f32 0.0, %v1368
        %v1370 = vpop.f32.mrb[0].mxu0
        %v1371 = vadd.f32 0.0, %v1370
        %v1372 = vpop.f32.mrb[0].mxu0
        %v1373 = vpop.f32.mrb[0].mxu0
        %1374 = vdwg.mxu0
        %1375 = vmatprep.subr.bf16.mxu0 %v1189
        %1376 = vmatpush1.bf16.msra.mxu0 %v1188
        %1377 = vmatprep.subr.bf16.mxu0 %v1197
        %1378 = vmatpush1.bf16.msra.mxu0 %v1196
        %1379 = vmatprep.subr.bf16.mxu0 %v1205
        %1380 = vmatpush1.bf16.msra.mxu0 %v1204
        %1381 = vmatprep.subr.bf16.mxu0 %v1213
        %1382 = vmatpush1.bf16.msra.mxu0 %v1212
        %1383 = vmatprep.subr.bf16.mxu0 %v1221
        %1384 = vmatpush1.bf16.msra.mxu0 %v1220
        %1385 = vmatprep.subr.bf16.mxu0 %v1229
        %1386 = vmatpush1.bf16.msra.mxu0 %v1228
        %1387 = vmatprep.subr.bf16.mxu0 %v1237
        %1388 = vmatpush1.bf16.msra.mxu0 %v1236
        %1389 = vmatprep.subr.bf16.mxu0 %v1245
        %1390 = vmatpush1.bf16.msra.mxu0 %v1244
        %1391 = vmatprep.subr.bf16.mxu0 %v1253
        %1392 = vmatpush1.bf16.msra.mxu0 %v1252
        %1393 = vmatprep.subr.bf16.mxu0 0
        %1394 = vmatpush1.bf16.msra.mxu0 0
        %1395 = vmatprep.subr.bf16.mxu0 0
        %1396 = vmatpush1.bf16.msra.mxu0 0
        %1397 = vmatprep.subr.bf16.mxu0 0
        %1398 = vmatpush1.bf16.msra.mxu0 0
        %1399 = vmatprep.subr.bf16.mxu0 0
        %1400 = vmatpush1.bf16.msra.mxu0 0
        %1401 = vmatprep.subr.bf16.mxu0 0
        %1402 = vmatpush1.bf16.msra.mxu0 0
        %1403 = vmatprep.subr.bf16.mxu0 0
        %1404 = vmatpush1.bf16.msra.mxu0 0
        %1405 = vmatprep.subr.bf16.mxu0 0
        %1406 = vmatpush1.bf16.msra.mxu0 0
        %1407 = vmatprep.mubr.bf16.mxu0 %v1332
        %1408 = vmatmul.mubr.bf16.gmra.mrb[0].mxu0 %v1020
        %v1409 = vpop.f32.mrb[0].mxu0
        %v1410 = vadd.f32 0.0, %v1409
        %v1411 = vpop.f32.mrb[0].mxu0
        %v1412 = vadd.f32 0.0, %v1411
        %v1413 = vpop.f32.mrb[0].mxu0
        %v1414 = vpop.f32.mrb[0].mxu0
        %1415 = vdwg.mxu0
        %1416 = vmatprep.subr.bf16.mxu0 %v1191
        %1417 = vmatpush1.bf16.msra.mxu0 %v1190
        %1418 = vmatprep.subr.bf16.mxu0 %v1199
        %1419 = vmatpush1.bf16.msra.mxu0 %v1198
        %1420 = vmatprep.subr.bf16.mxu0 %v1207
        %1421 = vmatpush1.bf16.msra.mxu0 %v1206
        %1422 = vmatprep.subr.bf16.mxu0 %v1215
        %1423 = vmatpush1.bf16.msra.mxu0 %v1214
        %1424 = vmatprep.subr.bf16.mxu0 %v1223
        %1425 = vmatpush1.bf16.msra.mxu0 %v1222
        %1426 = vmatprep.subr.bf16.mxu0 %v1231
        %1427 = vmatpush1.bf16.msra.mxu0 %v1230
        %1428 = vmatprep.subr.bf16.mxu0 %v1239
        %1429 = vmatpush1.bf16.msra.mxu0 %v1238
        %1430 = vmatprep.subr.bf16.mxu0 %v1247
        %1431 = vmatpush1.bf16.msra.mxu0 %v1246
        %1432 = vmatprep.subr.bf16.mxu0 %v1255
        %1433 = vmatpush1.bf16.msra.mxu0 %v1254
        %1434 = vmatprep.subr.bf16.mxu0 0
        %1435 = vmatpush1.bf16.msra.mxu0 0
        %1436 = vmatprep.subr.bf16.mxu0 0
        %1437 = vmatpush1.bf16.msra.mxu0 0
        %1438 = vmatprep.subr.bf16.mxu0 0
        %1439 = vmatpush1.bf16.msra.mxu0 0
        %1440 = vmatprep.subr.bf16.mxu0 0
        %1441 = vmatpush1.bf16.msra.mxu0 0
        %1442 = vmatprep.subr.bf16.mxu0 0
        %1443 = vmatpush1.bf16.msra.mxu0 0
        %1444 = vmatprep.subr.bf16.mxu0 0
        %1445 = vmatpush1.bf16.msra.mxu0 0
        %1446 = vmatprep.subr.bf16.mxu0 0
        %1447 = vmatpush1.bf16.msra.mxu0 0
        %1448 = vmatprep.mubr.bf16.mxu0 %v1332
        %1449 = vmatmul.mubr.bf16.gmra.mrb[0].mxu0 %v1020
        %v1450 = vpop.f32.mrb[0].mxu0
        %v1451 = vadd.f32 0.0, %v1450
        %v1452 = vpop.f32.mrb[0].mxu0
        %v1453 = vadd.f32 0.0, %v1452
        %v1454 = vpop.f32.mrb[0].mxu0
        %v1455 = vpop.f32.mrb[0].mxu0
        %1456 = vdwg.mxu0
        %1457 = vmatprep.subr.bf16.mxu0 %v1193
        %1458 = vmatpush1.bf16.msra.mxu0 %v1192
        %1459 = vmatprep.subr.bf16.mxu0 %v1201
        %1460 = vmatpush1.bf16.msra.mxu0 %v1200
        %1461 = vmatprep.subr.bf16.mxu0 %v1209
        %1462 = vmatpush1.bf16.msra.mxu0 %v1208
        %1463 = vmatprep.subr.bf16.mxu0 %v1217
        %1464 = vmatpush1.bf16.msra.mxu0 %v1216
        %1465 = vmatprep.subr.bf16.mxu0 %v1225
        %1466 = vmatpush1.bf16.msra.mxu0 %v1224
        %1467 = vmatprep.subr.bf16.mxu0 %v1233
        %1468 = vmatpush1.bf16.msra.mxu0 %v1232
        %1469 = vmatprep.subr.bf16.mxu0 %v1241
        %1470 = vmatpush1.bf16.msra.mxu0 %v1240
        %1471 = vmatprep.subr.bf16.mxu0 %v1249
        %1472 = vmatpush1.bf16.msra.mxu0 %v1248
        %1473 = vmatprep.subr.bf16.mxu0 %v1257
        %1474 = vmatpush1.bf16.msra.mxu0 %v1256
        %1475 = vmatprep.subr.bf16.mxu0 0
        %1476 = vmatpush1.bf16.msra.mxu0 0
        %1477 = vmatprep.subr.bf16.mxu0 0
        %1478 = vmatpush1.bf16.msra.mxu0 0
        %1479 = vmatprep.subr.bf16.mxu0 0
        %1480 = vmatpush1.bf16.msra.mxu0 0
        %1481 = vmatprep.subr.bf16.mxu0 0
        %1482 = vmatpush1.bf16.msra.mxu0 0
        %1483 = vmatprep.subr.bf16.mxu0 0
        %1484 = vmatpush1.bf16.msra.mxu0 0
        %1485 = vmatprep.subr.bf16.mxu0 0
        %1486 = vmatpush1.bf16.msra.mxu0 0
        %1487 = vmatprep.subr.bf16.mxu0 0
        %1488 = vmatpush1.bf16.msra.mxu0 0
        %1489 = vmatprep.mubr.bf16.mxu0 %v1332
        %1490 = vmatmul.mubr.bf16.gmra.mrb[0].mxu0 %v1020
        %v1491 = vpop.f32.mrb[0].mxu0
        %v1492 = vadd.f32 0.0, %v1491
        %v1493 = vpop.f32.mrb[0].mxu0
        %v1494 = vadd.f32 0.0, %v1493
        %v1495 = vpop.f32.mrb[0].mxu0
        %v1496 = vpop.f32.mrb[0].mxu0
        %1497 = vdwg.mxu0
        %v1499 = vunpack.c.l.b16 %v800
        %v1500 = vunpack.c.h.b16 %v800
        %v1501 = vpack.c.b16 %v1499, %v1499
        %v1502 = vpack.c.b16 %v1500, %v1500
        %1504 = vrot.lane.b32.xlu0 %v575, 111
        %v1505 = vpop.permute.xlu0 %1504
        %1506 = vrot.lane.b32.xlu0 %v576, 111
        %v1507 = vpop.permute.xlu0 %1506
        %1508 = vrot.lane.b32.xlu0 %v577, 111
        %v1509 = vpop.permute.xlu0 %1508
        %1510 = vrot.lane.b32.xlu0 %v578, 111
        %v1511 = vpop.permute.xlu0 %1510
        %1512 = vrot.lane.b32.xlu0 %v579, 111
        %v1513 = vpop.permute.xlu0 %1512
        %1514 = vrot.lane.b32.xlu0 %v580, 111
        %v1515 = vpop.permute.xlu0 %1514
        %1516 = vrot.lane.b32.xlu0 %v581, 111
        %v1517 = vpop.permute.xlu0 %1516
        %1518 = vrot.lane.b32.xlu0 %v582, 111
        %v1519 = vpop.permute.xlu0 %1518
        %1520 = vrot.lane.b32.xlu0 %v583, 111
        %v1521 = vpop.permute.xlu0 %1520
        %1522 = vrot.lane.b32.xlu0 %v603, 111
        %v1523 = vpop.permute.xlu0 %1522
        %1524 = vrot.lane.b32.xlu0 %v604, 111
        %v1525 = vpop.permute.xlu0 %1524
        %1526 = vrot.lane.b32.xlu0 %v605, 111
        %v1527 = vpop.permute.xlu0 %1526
        %1528 = vrot.lane.b32.xlu0 %v606, 111
        %v1529 = vpop.permute.xlu0 %1528
        %1530 = vrot.lane.b32.xlu0 %v607, 111
        %v1531 = vpop.permute.xlu0 %1530
        %1532 = vrot.lane.b32.xlu0 %v608, 111
        %v1533 = vpop.permute.xlu0 %1532
        %1534 = vrot.lane.b32.xlu0 %v609, 111
        %v1535 = vpop.permute.xlu0 %1534
        %1536 = vrot.lane.b32.xlu0 %v610, 111
        %v1537 = vpop.permute.xlu0 %1536
        %1538 = vrot.lane.b32.xlu0 %v601, 111
        %v1539 = vpop.permute.xlu0 %1538
        %1540 = vrot.lane.b32.xlu0 %v630, 111
        %v1541 = vpop.permute.xlu0 %1540
        %1542 = vrot.lane.b32.xlu0 %v631, 111
        %v1543 = vpop.permute.xlu0 %1542
        %1544 = vrot.lane.b32.xlu0 %v632, 111
        %v1545 = vpop.permute.xlu0 %1544
        %1546 = vrot.lane.b32.xlu0 %v633, 111
        %v1547 = vpop.permute.xlu0 %1546
        %1548 = vrot.lane.b32.xlu0 %v634, 111
        %v1549 = vpop.permute.xlu0 %1548
        %1550 = vrot.lane.b32.xlu0 %v635, 111
        %v1551 = vpop.permute.xlu0 %1550
        %1552 = vrot.lane.b32.xlu0 %v636, 111
        %v1553 = vpop.permute.xlu0 %1552
        %1554 = vrot.lane.b32.xlu0 %v637, 111
        %v1555 = vpop.permute.xlu0 %1554
        %1556 = vrot.lane.b32.xlu0 %v628, 111
        %v1557 = vpop.permute.xlu0 %1556
        %1558 = vrot.lane.b32.xlu0 %v657, 111
        %v1559 = vpop.permute.xlu0 %1558
        %1560 = vrot.lane.b32.xlu0 %v658, 111
        %v1561 = vpop.permute.xlu0 %1560
        %1562 = vrot.lane.b32.xlu0 %v659, 111
        %v1563 = vpop.permute.xlu0 %1562
        %1564 = vrot.lane.b32.xlu0 %v660, 111
        %v1565 = vpop.permute.xlu0 %1564
        %1566 = vrot.lane.b32.xlu0 %v661, 111
        %v1567 = vpop.permute.xlu0 %1566
        %1568 = vrot.lane.b32.xlu0 %v662, 111
        %v1569 = vpop.permute.xlu0 %1568
        %1570 = vrot.lane.b32.xlu0 %v663, 111
        %v1571 = vpop.permute.xlu0 %1570
        %1572 = vrot.lane.b32.xlu0 %v664, 111
        %v1573 = vpop.permute.xlu0 %1572
        %1574 = vrot.lane.b32.xlu0 %v655, 111
        %v1575 = vpop.permute.xlu0 %1574
        %1576 = vrot.lane.b32.xlu0 %v684, 111
        %v1577 = vpop.permute.xlu0 %1576
        %1578 = vrot.lane.b32.xlu0 %v685, 111
        %v1579 = vpop.permute.xlu0 %1578
        %1580 = vrot.lane.b32.xlu0 %v686, 111
        %v1581 = vpop.permute.xlu0 %1580
        %1582 = vrot.lane.b32.xlu0 %v687, 111
        %v1583 = vpop.permute.xlu0 %1582
        %1584 = vrot.lane.b32.xlu0 %v688, 111
        %v1585 = vpop.permute.xlu0 %1584
        %1586 = vrot.lane.b32.xlu0 %v689, 111
        %v1587 = vpop.permute.xlu0 %1586
        %1588 = vrot.lane.b32.xlu0 %v690, 111
        %v1589 = vpop.permute.xlu0 %1588
        %1590 = vrot.lane.b32.xlu0 %v691, 111
        %v1591 = vpop.permute.xlu0 %1590
        %1592 = vrot.lane.b32.xlu0 %v682, 111
        %v1593 = vpop.permute.xlu0 %1592
        %1594 = vrot.lane.b32.xlu0 %v711, 111
        %v1595 = vpop.permute.xlu0 %1594
        %1596 = vrot.lane.b32.xlu0 %v712, 111
        %v1597 = vpop.permute.xlu0 %1596
        %1598 = vrot.lane.b32.xlu0 %v713, 111
        %v1599 = vpop.permute.xlu0 %1598
        %1600 = vrot.lane.b32.xlu0 %v714, 111
        %v1601 = vpop.permute.xlu0 %1600
        %1602 = vrot.lane.b32.xlu0 %v715, 111
        %v1603 = vpop.permute.xlu0 %1602
        %1604 = vrot.lane.b32.xlu0 %v716, 111
        %v1605 = vpop.permute.xlu0 %1604
        %1606 = vrot.lane.b32.xlu0 %v717, 111
        %v1607 = vpop.permute.xlu0 %1606
        %1608 = vrot.lane.b32.xlu0 %v718, 111
        %v1609 = vpop.permute.xlu0 %1608
        %1610 = vrot.lane.b32.xlu0 %v709, 111
        %v1611 = vpop.permute.xlu0 %1610
        %1612 = vrot.lane.b32.xlu0 %v738, 111
        %v1613 = vpop.permute.xlu0 %1612
        %1614 = vrot.lane.b32.xlu0 %v739, 111
        %v1615 = vpop.permute.xlu0 %1614
        %1616 = vrot.lane.b32.xlu0 %v740, 111
        %v1617 = vpop.permute.xlu0 %1616
        %1618 = vrot.lane.b32.xlu0 %v741, 111
        %v1619 = vpop.permute.xlu0 %1618
        %1620 = vrot.lane.b32.xlu0 %v742, 111
        %v1621 = vpop.permute.xlu0 %1620
        %1622 = vrot.lane.b32.xlu0 %v743, 111
        %v1623 = vpop.permute.xlu0 %1622
        %1624 = vrot.lane.b32.xlu0 %v744, 111
        %v1625 = vpop.permute.xlu0 %1624
        %1626 = vrot.lane.b32.xlu0 %v745, 111
        %v1627 = vpop.permute.xlu0 %1626
        %1628 = vrot.lane.b32.xlu0 %v736, 111
        %v1629 = vpop.permute.xlu0 %1628
        %1630 = vrot.lane.b32.xlu0 %v765, 111
        %v1631 = vpop.permute.xlu0 %1630
        %1632 = vrot.lane.b32.xlu0 %v766, 111
        %v1633 = vpop.permute.xlu0 %1632
        %1634 = vrot.lane.b32.xlu0 %v767, 111
        %v1635 = vpop.permute.xlu0 %1634
        %1636 = vrot.lane.b32.xlu0 %v768, 111
        %v1637 = vpop.permute.xlu0 %1636
        %1638 = vrot.lane.b32.xlu0 %v769, 111
        %v1639 = vpop.permute.xlu0 %1638
        %1640 = vrot.lane.b32.xlu0 %v770, 111
        %v1641 = vpop.permute.xlu0 %1640
        %1642 = vrot.lane.b32.xlu0 %v771, 111
        %v1643 = vpop.permute.xlu0 %1642
        %1644 = vrot.lane.b32.xlu0 %v772, 111
        %v1645 = vpop.permute.xlu0 %1644
        %1646 = vrot.lane.b32.xlu0 %v763, 111
        %v1647 = vpop.permute.xlu0 %1646
        %1648 = vrot.lane.b32.xlu0 %v792, 111
        %v1649 = vpop.permute.xlu0 %1648
        %1650 = vrot.lane.b32.xlu0 %v793, 111
        %v1651 = vpop.permute.xlu0 %1650
        %1652 = vrot.lane.b32.xlu0 %v794, 111
        %v1653 = vpop.permute.xlu0 %1652
        %1654 = vrot.lane.b32.xlu0 %v795, 111
        %v1655 = vpop.permute.xlu0 %1654
        %1656 = vrot.lane.b32.xlu0 %v796, 111
        %v1657 = vpop.permute.xlu0 %1656
        %1658 = vrot.lane.b32.xlu0 %v797, 111
        %v1659 = vpop.permute.xlu0 %1658
        %1660 = vrot.lane.b32.xlu0 %v798, 111
        %v1661 = vpop.permute.xlu0 %1660
        %1662 = vrot.lane.b32.xlu0 %v799, 111
        %v1663 = vpop.permute.xlu0 %1662
        %1664 = vrot.lane.b32.xlu0 %v790, 111
        %v1665 = vpop.permute.xlu0 %1664
        %vm1666 = vcmask 908288
        %v1667 = vsel %vm1666, %v1505, %v1507
        %v1668 = vsel %vm1666, %v1507, %v1509
        %v1669 = vsel %vm1666, %v1509, %v1511
        %v1670 = vsel %vm1666, %v1511, %v1513
        %v1671 = vsel %vm1666, %v1513, %v1515
        %v1672 = vsel %vm1666, %v1515, %v1517
        %v1673 = vsel %vm1666, %v1517, %v1519
        %v1674 = vsel %vm1666, %v1519, %v1521
        %v1675 = vsel %vm1666, %v1523, %v1525
        %v1676 = vsel %vm1666, %v1525, %v1527
        %v1677 = vsel %vm1666, %v1527, %v1529
        %v1678 = vsel %vm1666, %v1529, %v1531
        %v1679 = vsel %vm1666, %v1531, %v1533
        %v1680 = vsel %vm1666, %v1533, %v1535
        %v1681 = vsel %vm1666, %v1535, %v1537
        %v1682 = vsel %vm1666, %v1537, %v1539
        %v1683 = vsel %vm1666, %v1541, %v1543
        %v1684 = vsel %vm1666, %v1543, %v1545
        %v1685 = vsel %vm1666, %v1545, %v1547
        %v1686 = vsel %vm1666, %v1547, %v1549
        %v1687 = vsel %vm1666, %v1549, %v1551
        %v1688 = vsel %vm1666, %v1551, %v1553
        %v1689 = vsel %vm1666, %v1553, %v1555
        %v1690 = vsel %vm1666, %v1555, %v1557
        %v1691 = vsel %vm1666, %v1559, %v1561
        %v1692 = vsel %vm1666, %v1561, %v1563
        %v1693 = vsel %vm1666, %v1563, %v1565
        %v1694 = vsel %vm1666, %v1565, %v1567
        %v1695 = vsel %vm1666, %v1567, %v1569
        %v1696 = vsel %vm1666, %v1569, %v1571
        %v1697 = vsel %vm1666, %v1571, %v1573
        %v1698 = vsel %vm1666, %v1573, %v1575
        %v1699 = vsel %vm1666, %v1577, %v1579
        %v1700 = vsel %vm1666, %v1579, %v1581
        %v1701 = vsel %vm1666, %v1581, %v1583
        %v1702 = vsel %vm1666, %v1583, %v1585
        %v1703 = vsel %vm1666, %v1585, %v1587
        %v1704 = vsel %vm1666, %v1587, %v1589
        %v1705 = vsel %vm1666, %v1589, %v1591
        %v1706 = vsel %vm1666, %v1591, %v1593
        %v1707 = vsel %vm1666, %v1595, %v1597
        %v1708 = vsel %vm1666, %v1597, %v1599
        %v1709 = vsel %vm1666, %v1599, %v1601
        %v1710 = vsel %vm1666, %v1601, %v1603
        %v1711 = vsel %vm1666, %v1603, %v1605
        %v1712 = vsel %vm1666, %v1605, %v1607
        %v1713 = vsel %vm1666, %v1607, %v1609
        %v1714 = vsel %vm1666, %v1609, %v1611
        %v1715 = vsel %vm1666, %v1613, %v1615
        %v1716 = vsel %vm1666, %v1615, %v1617
        %v1717 = vsel %vm1666, %v1617, %v1619
        %v1718 = vsel %vm1666, %v1619, %v1621
        %v1719 = vsel %vm1666, %v1621, %v1623
        %v1720 = vsel %vm1666, %v1623, %v1625
        %v1721 = vsel %vm1666, %v1625, %v1627
        %v1722 = vsel %vm1666, %v1627, %v1629
        %v1723 = vsel %vm1666, %v1631, %v1633
        %v1724 = vsel %vm1666, %v1633, %v1635
        %v1725 = vsel %vm1666, %v1635, %v1637
        %v1726 = vsel %vm1666, %v1637, %v1639
        %v1727 = vsel %vm1666, %v1639, %v1641
        %v1728 = vsel %vm1666, %v1641, %v1643
        %v1729 = vsel %vm1666, %v1643, %v1645
        %v1730 = vsel %vm1666, %v1645, %v1647
        %v1731 = vsel %vm1666, %v1649, %v1651
        %v1732 = vsel %vm1666, %v1651, %v1653
        %v1733 = vsel %vm1666, %v1653, %v1655
        %v1734 = vsel %vm1666, %v1655, %v1657
        %v1735 = vsel %vm1666, %v1657, %v1659
        %v1736 = vsel %vm1666, %v1659, %v1661
        %v1737 = vsel %vm1666, %v1661, %v1663
        %v1738 = vsel %vm1666, %v1663, %v1665
        %v1812 = vsel %vm1330, %v1502, 0
        %1814 = vmatprep.subr.bf16.mxu0 %v1668
        %1815 = vmatpush1.bf16.msra.mxu0 %v1667
        %1816 = vmatprep.subr.bf16.mxu0 %v1676
        %1817 = vmatpush1.bf16.msra.mxu0 %v1675
        %1818 = vmatprep.subr.bf16.mxu0 %v1684
        %1819 = vmatpush1.bf16.msra.mxu0 %v1683
        %1820 = vmatprep.subr.bf16.mxu0 %v1692
        %1821 = vmatpush1.bf16.msra.mxu0 %v1691
        %1822 = vmatprep.subr.bf16.mxu0 %v1700
        %1823 = vmatpush1.bf16.msra.mxu0 %v1699
        %1824 = vmatprep.subr.bf16.mxu0 %v1708
        %1825 = vmatpush1.bf16.msra.mxu0 %v1707
        %1826 = vmatprep.subr.bf16.mxu0 %v1716
        %1827 = vmatpush1.bf16.msra.mxu0 %v1715
        %1828 = vmatprep.subr.bf16.mxu0 %v1724
        %1829 = vmatpush1.bf16.msra.mxu0 %v1723
        %1830 = vmatprep.subr.bf16.mxu0 %v1732
        %1831 = vmatpush1.bf16.msra.mxu0 %v1731
        %1832 = vmatprep.subr.bf16.mxu0 0
        %1833 = vmatpush1.bf16.msra.mxu0 0
        %1834 = vmatprep.subr.bf16.mxu0 0
        %1835 = vmatpush1.bf16.msra.mxu0 0
        %1836 = vmatprep.subr.bf16.mxu0 0
        %1837 = vmatpush1.bf16.msra.mxu0 0
        %1838 = vmatprep.subr.bf16.mxu0 0
        %1839 = vmatpush1.bf16.msra.mxu0 0
        %1840 = vmatprep.subr.bf16.mxu0 0
        %1841 = vmatpush1.bf16.msra.mxu0 0
        %1842 = vmatprep.subr.bf16.mxu0 0
        %1843 = vmatpush1.bf16.msra.mxu0 0
        %1844 = vmatprep.subr.bf16.mxu0 0
        %1845 = vmatpush1.bf16.msra.mxu0 0
        %1846 = vmatprep.mubr.bf16.mxu0 %v1812
        %1847 = vmatmul.mubr.bf16.gmra.mrb[0].mxu0 %v1501
        %v1848 = vpop.f32.mrb[0].mxu0
        %v1849 = vadd.f32 %v1369, %v1848
        %v1850 = vpop.f32.mrb[0].mxu0
        %v1851 = vadd.f32 %v1371, %v1850
        %v1852 = vpop.f32.mrb[0].mxu0
        %v1853 = vpop.f32.mrb[0].mxu0
        %1854 = vdwg.mxu0
        %1855 = vmatprep.subr.bf16.mxu0 %v1670
        %1856 = vmatpush1.bf16.msra.mxu0 %v1669
        %1857 = vmatprep.subr.bf16.mxu0 %v1678
        %1858 = vmatpush1.bf16.msra.mxu0 %v1677
        %1859 = vmatprep.subr.bf16.mxu0 %v1686
        %1860 = vmatpush1.bf16.msra.mxu0 %v1685
        %1861 = vmatprep.subr.bf16.mxu0 %v1694
        %1862 = vmatpush1.bf16.msra.mxu0 %v1693
        %1863 = vmatprep.subr.bf16.mxu0 %v1702
        %1864 = vmatpush1.bf16.msra.mxu0 %v1701
        %1865 = vmatprep.subr.bf16.mxu0 %v1710
        %1866 = vmatpush1.bf16.msra.mxu0 %v1709
        %1867 = vmatprep.subr.bf16.mxu0 %v1718
        %1868 = vmatpush1.bf16.msra.mxu0 %v1717
        %1869 = vmatprep.subr.bf16.mxu0 %v1726
        %1870 = vmatpush1.bf16.msra.mxu0 %v1725
        %1871 = vmatprep.subr.bf16.mxu0 %v1734
        %1872 = vmatpush1.bf16.msra.mxu0 %v1733
        %1873 = vmatprep.subr.bf16.mxu0 0
        %1874 = vmatpush1.bf16.msra.mxu0 0
        %1875 = vmatprep.subr.bf16.mxu0 0
        %1876 = vmatpush1.bf16.msra.mxu0 0
        %1877 = vmatprep.subr.bf16.mxu0 0
        %1878 = vmatpush1.bf16.msra.mxu0 0
        %1879 = vmatprep.subr.bf16.mxu0 0
        %1880 = vmatpush1.bf16.msra.mxu0 0
        %1881 = vmatprep.subr.bf16.mxu0 0
        %1882 = vmatpush1.bf16.msra.mxu0 0
        %1883 = vmatprep.subr.bf16.mxu0 0
        %1884 = vmatpush1.bf16.msra.mxu0 0
        %1885 = vmatprep.subr.bf16.mxu0 0
        %1886 = vmatpush1.bf16.msra.mxu0 0
        %1887 = vmatprep.mubr.bf16.mxu0 %v1812
        %1888 = vmatmul.mubr.bf16.gmra.mrb[0].mxu0 %v1501
        %v1889 = vpop.f32.mrb[0].mxu0
        %v1890 = vadd.f32 %v1410, %v1889
        %v1891 = vpop.f32.mrb[0].mxu0
        %v1892 = vadd.f32 %v1412, %v1891
        %v1893 = vpop.f32.mrb[0].mxu0
        %v1894 = vpop.f32.mrb[0].mxu0
        %1895 = vdwg.mxu0
        %1896 = vmatprep.subr.bf16.mxu0 %v1672
        %1897 = vmatpush1.bf16.msra.mxu0 %v1671
        %1898 = vmatprep.subr.bf16.mxu0 %v1680
        %1899 = vmatpush1.bf16.msra.mxu0 %v1679
        %1900 = vmatprep.subr.bf16.mxu0 %v1688
        %1901 = vmatpush1.bf16.msra.mxu0 %v1687
        %1902 = vmatprep.subr.bf16.mxu0 %v1696
        %1903 = vmatpush1.bf16.msra.mxu0 %v1695
        %1904 = vmatprep.subr.bf16.mxu0 %v1704
        %1905 = vmatpush1.bf16.msra.mxu0 %v1703
        %1906 = vmatprep.subr.bf16.mxu0 %v1712
        %1907 = vmatpush1.bf16.msra.mxu0 %v1711
        %1908 = vmatprep.subr.bf16.mxu0 %v1720
        %1909 = vmatpush1.bf16.msra.mxu0 %v1719
        %1910 = vmatprep.subr.bf16.mxu0 %v1728
        %1911 = vmatpush1.bf16.msra.mxu0 %v1727
        %1912 = vmatprep.subr.bf16.mxu0 %v1736
        %1913 = vmatpush1.bf16.msra.mxu0 %v1735
        %1914 = vmatprep.subr.bf16.mxu0 0
        %1915 = vmatpush1.bf16.msra.mxu0 0
        %1916 = vmatprep.subr.bf16.mxu0 0
        %1917 = vmatpush1.bf16.msra.mxu0 0
        %1918 = vmatprep.subr.bf16.mxu0 0
        %1919 = vmatpush1.bf16.msra.mxu0 0
        %1920 = vmatprep.subr.bf16.mxu0 0
        %1921 = vmatpush1.bf16.msra.mxu0 0
        %1922 = vmatprep.subr.bf16.mxu0 0
        %1923 = vmatpush1.bf16.msra.mxu0 0
        %1924 = vmatprep.subr.bf16.mxu0 0
        %1925 = vmatpush1.bf16.msra.mxu0 0
        %1926 = vmatprep.subr.bf16.mxu0 0
        %1927 = vmatpush1.bf16.msra.mxu0 0
        %1928 = vmatprep.mubr.bf16.mxu0 %v1812
        %1929 = vmatmul.mubr.bf16.gmra.mrb[0].mxu0 %v1501
        %v1930 = vpop.f32.mrb[0].mxu0
        %v1931 = vadd.f32 %v1451, %v1930
        %v1932 = vpop.f32.mrb[0].mxu0
        %v1933 = vadd.f32 %v1453, %v1932
        %v1934 = vpop.f32.mrb[0].mxu0
        %v1935 = vpop.f32.mrb[0].mxu0
        %1936 = vdwg.mxu0
        %1937 = vmatprep.subr.bf16.mxu0 %v1674
        %1938 = vmatpush1.bf16.msra.mxu0 %v1673
        %1939 = vmatprep.subr.bf16.mxu0 %v1682
        %1940 = vmatpush1.bf16.msra.mxu0 %v1681
        %1941 = vmatprep.subr.bf16.mxu0 %v1690
        %1942 = vmatpush1.bf16.msra.mxu0 %v1689
        %1943 = vmatprep.subr.bf16.mxu0 %v1698
        %1944 = vmatpush1.bf16.msra.mxu0 %v1697
        %1945 = vmatprep.subr.bf16.mxu0 %v1706
        %1946 = vmatpush1.bf16.msra.mxu0 %v1705
        %1947 = vmatprep.subr.bf16.mxu0 %v1714
        %1948 = vmatpush1.bf16.msra.mxu0 %v1713
        %1949 = vmatprep.subr.bf16.mxu0 %v1722
        %1950 = vmatpush1.bf16.msra.mxu0 %v1721
        %1951 = vmatprep.subr.bf16.mxu0 %v1730
        %1952 = vmatpush1.bf16.msra.mxu0 %v1729
        %1953 = vmatprep.subr.bf16.mxu0 %v1738
        %1954 = vmatpush1.bf16.msra.mxu0 %v1737
        %1955 = vmatprep.subr.bf16.mxu0 0
        %1956 = vmatpush1.bf16.msra.mxu0 0
        %1957 = vmatprep.subr.bf16.mxu0 0
        %1958 = vmatpush1.bf16.msra.mxu0 0
        %1959 = vmatprep.subr.bf16.mxu0 0
        %1960 = vmatpush1.bf16.msra.mxu0 0
        %1961 = vmatprep.subr.bf16.mxu0 0
        %1962 = vmatpush1.bf16.msra.mxu0 0
        %1963 = vmatprep.subr.bf16.mxu0 0
        %1964 = vmatpush1.bf16.msra.mxu0 0
        %1965 = vmatprep.subr.bf16.mxu0 0
        %1966 = vmatpush1.bf16.msra.mxu0 0
        %1967 = vmatprep.subr.bf16.mxu0 0
        %1968 = vmatpush1.bf16.msra.mxu0 0
        %1969 = vmatprep.mubr.bf16.mxu0 %v1812
        %1970 = vmatmul.mubr.bf16.gmra.mrb[0].mxu0 %v1501
        %v1971 = vpop.f32.mrb[0].mxu0
        %v1972 = vadd.f32 %v1492, %v1971
        %v1973 = vpop.f32.mrb[0].mxu0
        %v1974 = vadd.f32 %v1494, %v1973
        %v1975 = vpop.f32.mrb[0].mxu0
        %v1976 = vpop.f32.mrb[0].mxu0
        %1977 = vdwg.mxu0
        %1978 = vrot.lane.b32.xlu0 %v902, 127
        %v1979 = vpop.permute.xlu0 %1978
        %1980 = vrot.lane.b32.xlu0 %v903, 127
        %v1981 = vpop.permute.xlu0 %1980
        %1982 = vrot.lane.b32.xlu0 %v904, 127
        %v1983 = vpop.permute.xlu0 %1982
        %1984 = vrot.lane.b32.xlu0 %v905, 127
        %v1985 = vpop.permute.xlu0 %1984
        %1986 = vrot.lane.b32.xlu0 %v906, 127
        %v1987 = vpop.permute.xlu0 %1986
        %1988 = vrot.lane.b32.xlu0 %v907, 127
        %v1989 = vpop.permute.xlu0 %1988
        %1990 = vrot.lane.b32.xlu0 %v908, 127
        %v1991 = vpop.permute.xlu0 %1990
        %1992 = vrot.lane.b32.xlu0 %v909, 127
        %v1993 = vpop.permute.xlu0 %1992
        %1994 = vrot.lane.b32.xlu0 %v910, 127
        %v1995 = vpop.permute.xlu0 %1994
        %v1996 = vsel %vm602, %v1979, %v1981
        %v1997 = vsel %vm602, %v1981, %v1983
        %v1998 = vsel %vm602, %v1983, %v1985
        %v1999 = vsel %vm602, %v1985, %v1987
        %v2000 = vsel %vm602, %v1987, %v1989
        %v2001 = vsel %vm602, %v1989, %v1991
        %v2002 = vsel %vm602, %v1991, %v1993
        %v2003 = vsel %vm602, %v1993, %v1995
        %2004 = vrot.lane.b32.xlu0 %v902, 126
        %v2005 = vpop.permute.xlu0 %2004
        %2006 = vrot.lane.b32.xlu0 %v903, 126
        %v2007 = vpop.permute.xlu0 %2006
        %2008 = vrot.lane.b32.xlu0 %v904, 126
        %v2009 = vpop.permute.xlu0 %2008
        %2010 = vrot.lane.b32.xlu0 %v905, 126
        %v2011 = vpop.permute.xlu0 %2010
        %2012 = vrot.lane.b32.xlu0 %v906, 126
        %v2013 = vpop.permute.xlu0 %2012
        %2014 = vrot.lane.b32.xlu0 %v907, 126
        %v2015 = vpop.permute.xlu0 %2014
        %2016 = vrot.lane.b32.xlu0 %v908, 126
        %v2017 = vpop.permute.xlu0 %2016
        %2018 = vrot.lane.b32.xlu0 %v909, 126
        %v2019 = vpop.permute.xlu0 %2018
        %2020 = vrot.lane.b32.xlu0 %v910, 126
        %v2021 = vpop.permute.xlu0 %2020
        %v2022 = vsel %vm629, %v2005, %v2007
        %v2023 = vsel %vm629, %v2007, %v2009
        %v2024 = vsel %vm629, %v2009, %v2011
        %v2025 = vsel %vm629, %v2011, %v2013
        %v2026 = vsel %vm629, %v2013, %v2015
        %v2027 = vsel %vm629, %v2015, %v2017
        %v2028 = vsel %vm629, %v2017, %v2019
        %v2029 = vsel %vm629, %v2019, %v2021
        %2030 = vrot.lane.b32.xlu0 %v902, 118
        %v2031 = vpop.permute.xlu0 %2030
        %2032 = vrot.lane.b32.xlu0 %v903, 118
        %v2033 = vpop.permute.xlu0 %2032
        %2034 = vrot.lane.b32.xlu0 %v904, 118
        %v2035 = vpop.permute.xlu0 %2034
        %2036 = vrot.lane.b32.xlu0 %v905, 118
        %v2037 = vpop.permute.xlu0 %2036
        %2038 = vrot.lane.b32.xlu0 %v906, 118
        %v2039 = vpop.permute.xlu0 %2038
        %2040 = vrot.lane.b32.xlu0 %v907, 118
        %v2041 = vpop.permute.xlu0 %2040
        %2042 = vrot.lane.b32.xlu0 %v908, 118
        %v2043 = vpop.permute.xlu0 %2042
        %2044 = vrot.lane.b32.xlu0 %v909, 118
        %v2045 = vpop.permute.xlu0 %2044
        %2046 = vrot.lane.b32.xlu0 %v910, 118
        %v2047 = vpop.permute.xlu0 %2046
        %v2048 = vsel %vm656, %v2031, %v2033
        %v2049 = vsel %vm656, %v2033, %v2035
        %v2050 = vsel %vm656, %v2035, %v2037
        %v2051 = vsel %vm656, %v2037, %v2039
        %v2052 = vsel %vm656, %v2039, %v2041
        %v2053 = vsel %vm656, %v2041, %v2043
        %v2054 = vsel %vm656, %v2043, %v2045
        %v2055 = vsel %vm656, %v2045, %v2047
        %2056 = vrot.lane.b32.xlu0 %v902, 117
        %v2057 = vpop.permute.xlu0 %2056
        %2058 = vrot.lane.b32.xlu0 %v903, 117
        %v2059 = vpop.permute.xlu0 %2058
        %2060 = vrot.lane.b32.xlu0 %v904, 117
        %v2061 = vpop.permute.xlu0 %2060
        %2062 = vrot.lane.b32.xlu0 %v905, 117
        %v2063 = vpop.permute.xlu0 %2062
        %2064 = vrot.lane.b32.xlu0 %v906, 117
        %v2065 = vpop.permute.xlu0 %2064
        %2066 = vrot.lane.b32.xlu0 %v907, 117
        %v2067 = vpop.permute.xlu0 %2066
        %2068 = vrot.lane.b32.xlu0 %v908, 117
        %v2069 = vpop.permute.xlu0 %2068
        %2070 = vrot.lane.b32.xlu0 %v909, 117
        %v2071 = vpop.permute.xlu0 %2070
        %2072 = vrot.lane.b32.xlu0 %v910, 117
        %v2073 = vpop.permute.xlu0 %2072
        %v2074 = vsel %vm683, %v2057, %v2059
        %v2075 = vsel %vm683, %v2059, %v2061
        %v2076 = vsel %vm683, %v2061, %v2063
        %v2077 = vsel %vm683, %v2063, %v2065
        %v2078 = vsel %vm683, %v2065, %v2067
        %v2079 = vsel %vm683, %v2067, %v2069
        %v2080 = vsel %vm683, %v2069, %v2071
        %v2081 = vsel %vm683, %v2071, %v2073
        %s2082 = scalar_lea.vmem [#allocation9], 16
        %v2083 = vld [vmem:[%s2082] sm:$0xff]
        %v2085 = vunpack.c.l.b16 %v2083
        %v2086 = vunpack.c.h.b16 %v2083
        %v2087 = vpack.c.b16 %v2085, %v2085
        %v2088 = vpack.c.b16 %v2086, %v2086
        %2090 = vrot.lane.b32.xlu0 %v902, 39
        %v2091 = vpop.permute.xlu0 %2090
        %2092 = vrot.lane.b32.xlu0 %v903, 39
        %v2093 = vpop.permute.xlu0 %2092
        %2094 = vrot.lane.b32.xlu0 %v904, 39
        %v2095 = vpop.permute.xlu0 %2094
        %2096 = vrot.lane.b32.xlu0 %v905, 39
        %v2097 = vpop.permute.xlu0 %2096
        %2098 = vrot.lane.b32.xlu0 %v906, 39
        %v2099 = vpop.permute.xlu0 %2098
        %2100 = vrot.lane.b32.xlu0 %v907, 39
        %v2101 = vpop.permute.xlu0 %2100
        %2102 = vrot.lane.b32.xlu0 %v908, 39
        %v2103 = vpop.permute.xlu0 %2102
        %2104 = vrot.lane.b32.xlu0 %v909, 39
        %v2105 = vpop.permute.xlu0 %2104
        %2106 = vrot.lane.b32.xlu0 %v910, 39
        %v2107 = vpop.permute.xlu0 %2106
        %2108 = vrot.lane.b32.xlu0 %v1996, 39
        %v2109 = vpop.permute.xlu0 %2108
        %2110 = vrot.lane.b32.xlu0 %v1997, 39
        %v2111 = vpop.permute.xlu0 %2110
        %2112 = vrot.lane.b32.xlu0 %v1998, 39
        %v2113 = vpop.permute.xlu0 %2112
        %2114 = vrot.lane.b32.xlu0 %v1999, 39
        %v2115 = vpop.permute.xlu0 %2114
        %2116 = vrot.lane.b32.xlu0 %v2000, 39
        %v2117 = vpop.permute.xlu0 %2116
        %2118 = vrot.lane.b32.xlu0 %v2001, 39
        %v2119 = vpop.permute.xlu0 %2118
        %2120 = vrot.lane.b32.xlu0 %v2002, 39
        %v2121 = vpop.permute.xlu0 %2120
        %2122 = vrot.lane.b32.xlu0 %v2003, 39
        %v2123 = vpop.permute.xlu0 %2122
        %2124 = vrot.lane.b32.xlu0 %v1995, 39
        %v2125 = vpop.permute.xlu0 %2124
        %2126 = vrot.lane.b32.xlu0 %v2022, 39
        %v2127 = vpop.permute.xlu0 %2126
        %2128 = vrot.lane.b32.xlu0 %v2023, 39
        %v2129 = vpop.permute.xlu0 %2128
        %2130 = vrot.lane.b32.xlu0 %v2024, 39
        %v2131 = vpop.permute.xlu0 %2130
        %2132 = vrot.lane.b32.xlu0 %v2025, 39
        %v2133 = vpop.permute.xlu0 %2132
        %2134 = vrot.lane.b32.xlu0 %v2026, 39
        %v2135 = vpop.permute.xlu0 %2134
        %2136 = vrot.lane.b32.xlu0 %v2027, 39
        %v2137 = vpop.permute.xlu0 %2136
        %2138 = vrot.lane.b32.xlu0 %v2028, 39
        %v2139 = vpop.permute.xlu0 %2138
        %2140 = vrot.lane.b32.xlu0 %v2029, 39
        %v2141 = vpop.permute.xlu0 %2140
        %2142 = vrot.lane.b32.xlu0 %v2021, 39
        %v2143 = vpop.permute.xlu0 %2142
        %2144 = vrot.lane.b32.xlu0 %v2048, 39
        %v2145 = vpop.permute.xlu0 %2144
        %2146 = vrot.lane.b32.xlu0 %v2049, 39
        %v2147 = vpop.permute.xlu0 %2146
        %2148 = vrot.lane.b32.xlu0 %v2050, 39
        %v2149 = vpop.permute.xlu0 %2148
        %2150 = vrot.lane.b32.xlu0 %v2051, 39
        %v2151 = vpop.permute.xlu0 %2150
        %2152 = vrot.lane.b32.xlu0 %v2052, 39
        %v2153 = vpop.permute.xlu0 %2152
        %2154 = vrot.lane.b32.xlu0 %v2053, 39
        %v2155 = vpop.permute.xlu0 %2154
        %2156 = vrot.lane.b32.xlu0 %v2054, 39
        %v2157 = vpop.permute.xlu0 %2156
        %2158 = vrot.lane.b32.xlu0 %v2055, 39
        %v2159 = vpop.permute.xlu0 %2158
        %2160 = vrot.lane.b32.xlu0 %v2047, 39
        %v2161 = vpop.permute.xlu0 %2160
        %2162 = vrot.lane.b32.xlu0 %v2074, 39
        %v2163 = vpop.permute.xlu0 %2162
        %2164 = vrot.lane.b32.xlu0 %v2075, 39
        %v2165 = vpop.permute.xlu0 %2164
        %2166 = vrot.lane.b32.xlu0 %v2076, 39
        %v2167 = vpop.permute.xlu0 %2166
        %2168 = vrot.lane.b32.xlu0 %v2077, 39
        %v2169 = vpop.permute.xlu0 %2168
        %2170 = vrot.lane.b32.xlu0 %v2078, 39
        %v2171 = vpop.permute.xlu0 %2170
        %2172 = vrot.lane.b32.xlu0 %v2079, 39
        %v2173 = vpop.permute.xlu0 %2172
        %2174 = vrot.lane.b32.xlu0 %v2080, 39
        %v2175 = vpop.permute.xlu0 %2174
        %2176 = vrot.lane.b32.xlu0 %v2081, 39
        %v2177 = vpop.permute.xlu0 %2176
        %2178 = vrot.lane.b32.xlu0 %v2073, 39
        %v2179 = vpop.permute.xlu0 %2178
        %2180 = vrot.lane.b32.xlu0 %v929, 39
        %v2181 = vpop.permute.xlu0 %2180
        %2182 = vrot.lane.b32.xlu0 %v930, 39
        %v2183 = vpop.permute.xlu0 %2182
        %2184 = vrot.lane.b32.xlu0 %v931, 39
        %v2185 = vpop.permute.xlu0 %2184
        %2186 = vrot.lane.b32.xlu0 %v932, 39
        %v2187 = vpop.permute.xlu0 %2186
        %2188 = vrot.lane.b32.xlu0 %v933, 39
        %v2189 = vpop.permute.xlu0 %2188
        %2190 = vrot.lane.b32.xlu0 %v934, 39
        %v2191 = vpop.permute.xlu0 %2190
        %2192 = vrot.lane.b32.xlu0 %v935, 39
        %v2193 = vpop.permute.xlu0 %2192
        %2194 = vrot.lane.b32.xlu0 %v936, 39
        %v2195 = vpop.permute.xlu0 %2194
        %2196 = vrot.lane.b32.xlu0 %v928, 39
        %v2197 = vpop.permute.xlu0 %2196
        %2198 = vrot.lane.b32.xlu0 %v955, 39
        %v2199 = vpop.permute.xlu0 %2198
        %2200 = vrot.lane.b32.xlu0 %v956, 39
        %v2201 = vpop.permute.xlu0 %2200
        %2202 = vrot.lane.b32.xlu0 %v957, 39
        %v2203 = vpop.permute.xlu0 %2202
        %2204 = vrot.lane.b32.xlu0 %v958, 39
        %v2205 = vpop.permute.xlu0 %2204
        %2206 = vrot.lane.b32.xlu0 %v959, 39
        %v2207 = vpop.permute.xlu0 %2206
        %2208 = vrot.lane.b32.xlu0 %v960, 39
        %v2209 = vpop.permute.xlu0 %2208
        %2210 = vrot.lane.b32.xlu0 %v961, 39
        %v2211 = vpop.permute.xlu0 %2210
        %2212 = vrot.lane.b32.xlu0 %v962, 39
        %v2213 = vpop.permute.xlu0 %2212
        %2214 = vrot.lane.b32.xlu0 %v954, 39
        %v2215 = vpop.permute.xlu0 %2214
        %2216 = vrot.lane.b32.xlu0 %v981, 39
        %v2217 = vpop.permute.xlu0 %2216
        %2218 = vrot.lane.b32.xlu0 %v982, 39
        %v2219 = vpop.permute.xlu0 %2218
        %2220 = vrot.lane.b32.xlu0 %v983, 39
        %v2221 = vpop.permute.xlu0 %2220
        %2222 = vrot.lane.b32.xlu0 %v984, 39
        %v2223 = vpop.permute.xlu0 %2222
        %2224 = vrot.lane.b32.xlu0 %v985, 39
        %v2225 = vpop.permute.xlu0 %2224
        %2226 = vrot.lane.b32.xlu0 %v986, 39
        %v2227 = vpop.permute.xlu0 %2226
        %2228 = vrot.lane.b32.xlu0 %v987, 39
        %v2229 = vpop.permute.xlu0 %2228
        %2230 = vrot.lane.b32.xlu0 %v988, 39
        %v2231 = vpop.permute.xlu0 %2230
        %2232 = vrot.lane.b32.xlu0 %v980, 39
        %v2233 = vpop.permute.xlu0 %2232
        %2234 = vrot.lane.b32.xlu0 %v1007, 39
        %v2235 = vpop.permute.xlu0 %2234
        %2236 = vrot.lane.b32.xlu0 %v1008, 39
        %v2237 = vpop.permute.xlu0 %2236
        %2238 = vrot.lane.b32.xlu0 %v1009, 39
        %v2239 = vpop.permute.xlu0 %2238
        %2240 = vrot.lane.b32.xlu0 %v1010, 39
        %v2241 = vpop.permute.xlu0 %2240
        %2242 = vrot.lane.b32.xlu0 %v1011, 39
        %v2243 = vpop.permute.xlu0 %2242
        %2244 = vrot.lane.b32.xlu0 %v1012, 39
        %v2245 = vpop.permute.xlu0 %2244
        %2246 = vrot.lane.b32.xlu0 %v1013, 39
        %v2247 = vpop.permute.xlu0 %2246
        %2248 = vrot.lane.b32.xlu0 %v1014, 39
        %v2249 = vpop.permute.xlu0 %2248
        %2250 = vrot.lane.b32.xlu0 %v1006, 39
        %v2251 = vpop.permute.xlu0 %2250
        %vm2252 = vcmask 318464
        %v2253 = vsel %vm2252, %v2091, %v2093
        %v2254 = vsel %vm2252, %v2093, %v2095
        %v2255 = vsel %vm2252, %v2095, %v2097
        %v2256 = vsel %vm2252, %v2097, %v2099
        %v2257 = vsel %vm2252, %v2099, %v2101
        %v2258 = vsel %vm2252, %v2101, %v2103
        %v2259 = vsel %vm2252, %v2103, %v2105
        %v2260 = vsel %vm2252, %v2105, %v2107
        %v2261 = vsel %vm2252, %v2109, %v2111
        %v2262 = vsel %vm2252, %v2111, %v2113
        %v2263 = vsel %vm2252, %v2113, %v2115
        %v2264 = vsel %vm2252, %v2115, %v2117
        %v2265 = vsel %vm2252, %v2117, %v2119
        %v2266 = vsel %vm2252, %v2119, %v2121
        %v2267 = vsel %vm2252, %v2121, %v2123
        %v2268 = vsel %vm2252, %v2123, %v2125
        %v2269 = vsel %vm2252, %v2127, %v2129
        %v2270 = vsel %vm2252, %v2129, %v2131
        %v2271 = vsel %vm2252, %v2131, %v2133
        %v2272 = vsel %vm2252, %v2133, %v2135
        %v2273 = vsel %vm2252, %v2135, %v2137
        %v2274 = vsel %vm2252, %v2137, %v2139
        %v2275 = vsel %vm2252, %v2139, %v2141
        %v2276 = vsel %vm2252, %v2141, %v2143
        %v2277 = vsel %vm2252, %v2145, %v2147
        %v2278 = vsel %vm2252, %v2147, %v2149
        %v2279 = vsel %vm2252, %v2149, %v2151
        %v2280 = vsel %vm2252, %v2151, %v2153
        %v2281 = vsel %vm2252, %v2153, %v2155
        %v2282 = vsel %vm2252, %v2155, %v2157
        %v2283 = vsel %vm2252, %v2157, %v2159
        %v2284 = vsel %vm2252, %v2159, %v2161
        %v2285 = vsel %vm2252, %v2163, %v2165
        %v2286 = vsel %vm2252, %v2165, %v2167
        %v2287 = vsel %vm2252, %v2167, %v2169
        %v2288 = vsel %vm2252, %v2169, %v2171
        %v2289 = vsel %vm2252, %v2171, %v2173
        %v2290 = vsel %vm2252, %v2173, %v2175
        %v2291 = vsel %vm2252, %v2175, %v2177
        %v2292 = vsel %vm2252, %v2177, %v2179
        %v2293 = vsel %vm2252, %v2181, %v2183
        %v2294 = vsel %vm2252, %v2183, %v2185
        %v2295 = vsel %vm2252, %v2185, %v2187
        %v2296 = vsel %vm2252, %v2187, %v2189
        %v2297 = vsel %vm2252, %v2189, %v2191
        %v2298 = vsel %vm2252, %v2191, %v2193
        %v2299 = vsel %vm2252, %v2193, %v2195
        %v2300 = vsel %vm2252, %v2195, %v2197
        %v2301 = vsel %vm2252, %v2199, %v2201
        %v2302 = vsel %vm2252, %v2201, %v2203
        %v2303 = vsel %vm2252, %v2203, %v2205
        %v2304 = vsel %vm2252, %v2205, %v2207
        %v2305 = vsel %vm2252, %v2207, %v2209
        %v2306 = vsel %vm2252, %v2209, %v2211
        %v2307 = vsel %vm2252, %v2211, %v2213
        %v2308 = vsel %vm2252, %v2213, %v2215
        %v2309 = vsel %vm2252, %v2217, %v2219
        %v2310 = vsel %vm2252, %v2219, %v2221
        %v2311 = vsel %vm2252, %v2221, %v2223
        %v2312 = vsel %vm2252, %v2223, %v2225
        %v2313 = vsel %vm2252, %v2225, %v2227
        %v2314 = vsel %vm2252, %v2227, %v2229
        %v2315 = vsel %vm2252, %v2229, %v2231
        %v2316 = vsel %vm2252, %v2231, %v2233
        %v2317 = vsel %vm2252, %v2235, %v2237
        %v2318 = vsel %vm2252, %v2237, %v2239
        %v2319 = vsel %vm2252, %v2239, %v2241
        %v2320 = vsel %vm2252, %v2241, %v2243
        %v2321 = vsel %vm2252, %v2243, %v2245
        %v2322 = vsel %vm2252, %v2245, %v2247
        %v2323 = vsel %vm2252, %v2247, %v2249
        %v2324 = vsel %vm2252, %v2249, %v2251
        %v2398 = vsel %vm1330, %v2088, 0
        %2400 = vmatprep.subr.bf16.mxu0 %v2254
        %2401 = vmatpush1.bf16.msra.mxu0 %v2253
        %2402 = vmatprep.subr.bf16.mxu0 %v2262
        %2403 = vmatpush1.bf16.msra.mxu0 %v2261
        %2404 = vmatprep.subr.bf16.mxu0 %v2270
        %2405 = vmatpush1.bf16.msra.mxu0 %v2269
        %2406 = vmatprep.subr.bf16.mxu0 %v2278
        %2407 = vmatpush1.bf16.msra.mxu0 %v2277
        %2408 = vmatprep.subr.bf16.mxu0 %v2286
        %2409 = vmatpush1.bf16.msra.mxu0 %v2285
        %2410 = vmatprep.subr.bf16.mxu0 %v2294
        %2411 = vmatpush1.bf16.msra.mxu0 %v2293
        %2412 = vmatprep.subr.bf16.mxu0 %v2302
        %2413 = vmatpush1.bf16.msra.mxu0 %v2301
        %2414 = vmatprep.subr.bf16.mxu0 %v2310
        %2415 = vmatpush1.bf16.msra.mxu0 %v2309
        %2416 = vmatprep.subr.bf16.mxu0 %v2318
        %2417 = vmatpush1.bf16.msra.mxu0 %v2317
        %2418 = vmatprep.subr.bf16.mxu0 0
        %2419 = vmatpush1.bf16.msra.mxu0 0
        %2420 = vmatprep.subr.bf16.mxu0 0
        %2421 = vmatpush1.bf16.msra.mxu0 0
        %2422 = vmatprep.subr.bf16.mxu0 0
        %2423 = vmatpush1.bf16.msra.mxu0 0
        %2424 = vmatprep.subr.bf16.mxu0 0
        %2425 = vmatpush1.bf16.msra.mxu0 0
        %2426 = vmatprep.subr.bf16.mxu0 0
        %2427 = vmatpush1.bf16.msra.mxu0 0
        %2428 = vmatprep.subr.bf16.mxu0 0
        %2429 = vmatpush1.bf16.msra.mxu0 0
        %2430 = vmatprep.subr.bf16.mxu0 0
        %2431 = vmatpush1.bf16.msra.mxu0 0
        %2432 = vmatprep.mubr.bf16.mxu0 %v2398
        %2433 = vmatmul.mubr.bf16.gmra.mrb[0].mxu0 %v2087
        %v2434 = vpop.f32.mrb[0].mxu0
        %v2435 = vadd.f32 0.0, %v2434
        %v2436 = vpop.f32.mrb[0].mxu0
        %v2437 = vadd.f32 0.0, %v2436
        %v2438 = vpop.f32.mrb[0].mxu0
        %v2439 = vpop.f32.mrb[0].mxu0
        %2440 = vdwg.mxu0
        %2441 = vmatprep.subr.bf16.mxu0 %v2256
        %2442 = vmatpush1.bf16.msra.mxu0 %v2255
        %2443 = vmatprep.subr.bf16.mxu0 %v2264
        %2444 = vmatpush1.bf16.msra.mxu0 %v2263
        %2445 = vmatprep.subr.bf16.mxu0 %v2272
        %2446 = vmatpush1.bf16.msra.mxu0 %v2271
        %2447 = vmatprep.subr.bf16.mxu0 %v2280
        %2448 = vmatpush1.bf16.msra.mxu0 %v2279
        %2449 = vmatprep.subr.bf16.mxu0 %v2288
        %2450 = vmatpush1.bf16.msra.mxu0 %v2287
        %2451 = vmatprep.subr.bf16.mxu0 %v2296
        %2452 = vmatpush1.bf16.msra.mxu0 %v2295
        %2453 = vmatprep.subr.bf16.mxu0 %v2304
        %2454 = vmatpush1.bf16.msra.mxu0 %v2303
        %2455 = vmatprep.subr.bf16.mxu0 %v2312
        %2456 = vmatpush1.bf16.msra.mxu0 %v2311
        %2457 = vmatprep.subr.bf16.mxu0 %v2320
        %2458 = vmatpush1.bf16.msra.mxu0 %v2319
        %2459 = vmatprep.subr.bf16.mxu0 0
        %2460 = vmatpush1.bf16.msra.mxu0 0
        %2461 = vmatprep.subr.bf16.mxu0 0
        %2462 = vmatpush1.bf16.msra.mxu0 0
        %2463 = vmatprep.subr.bf16.mxu0 0
        %2464 = vmatpush1.bf16.msra.mxu0 0
        %2465 = vmatprep.subr.bf16.mxu0 0
        %2466 = vmatpush1.bf16.msra.mxu0 0
        %2467 = vmatprep.subr.bf16.mxu0 0
        %2468 = vmatpush1.bf16.msra.mxu0 0
        %2469 = vmatprep.subr.bf16.mxu0 0
        %2470 = vmatpush1.bf16.msra.mxu0 0
        %2471 = vmatprep.subr.bf16.mxu0 0
        %2472 = vmatpush1.bf16.msra.mxu0 0
        %2473 = vmatprep.mubr.bf16.mxu0 %v2398
        %2474 = vmatmul.mubr.bf16.gmra.mrb[0].mxu0 %v2087
        %v2475 = vpop.f32.mrb[0].mxu0
        %v2476 = vadd.f32 0.0, %v2475
        %v2477 = vpop.f32.mrb[0].mxu0
        %v2478 = vadd.f32 0.0, %v2477
        %v2479 = vpop.f32.mrb[0].mxu0
        %v2480 = vpop.f32.mrb[0].mxu0
        %2481 = vdwg.mxu0
        %2482 = vmatprep.subr.bf16.mxu0 %v2258
        %2483 = vmatpush1.bf16.msra.mxu0 %v2257
        %2484 = vmatprep.subr.bf16.mxu0 %v2266
        %2485 = vmatpush1.bf16.msra.mxu0 %v2265
        %2486 = vmatprep.subr.bf16.mxu0 %v2274
        %2487 = vmatpush1.bf16.msra.mxu0 %v2273
        %2488 = vmatprep.subr.bf16.mxu0 %v2282
        %2489 = vmatpush1.bf16.msra.mxu0 %v2281
        %2490 = vmatprep.subr.bf16.mxu0 %v2290
        %2491 = vmatpush1.bf16.msra.mxu0 %v2289
        %2492 = vmatprep.subr.bf16.mxu0 %v2298
        %2493 = vmatpush1.bf16.msra.mxu0 %v2297
        %2494 = vmatprep.subr.bf16.mxu0 %v2306
        %2495 = vmatpush1.bf16.msra.mxu0 %v2305
        %2496 = vmatprep.subr.bf16.mxu0 %v2314
        %2497 = vmatpush1.bf16.msra.mxu0 %v2313
        %2498 = vmatprep.subr.bf16.mxu0 %v2322
        %2499 = vmatpush1.bf16.msra.mxu0 %v2321
        %2500 = vmatprep.subr.bf16.mxu0 0
        %2501 = vmatpush1.bf16.msra.mxu0 0
        %2502 = vmatprep.subr.bf16.mxu0 0
        %2503 = vmatpush1.bf16.msra.mxu0 0
        %2504 = vmatprep.subr.bf16.mxu0 0
        %2505 = vmatpush1.bf16.msra.mxu0 0
        %2506 = vmatprep.subr.bf16.mxu0 0
        %2507 = vmatpush1.bf16.msra.mxu0 0
        %2508 = vmatprep.subr.bf16.mxu0 0
        %2509 = vmatpush1.bf16.msra.mxu0 0
        %2510 = vmatprep.subr.bf16.mxu0 0
        %2511 = vmatpush1.bf16.msra.mxu0 0
        %2512 = vmatprep.subr.bf16.mxu0 0
        %2513 = vmatpush1.bf16.msra.mxu0 0
        %2514 = vmatprep.mubr.bf16.mxu0 %v2398
        %2515 = vmatmul.mubr.bf16.gmra.mrb[0].mxu0 %v2087
        %v2516 = vpop.f32.mrb[0].mxu0
        %v2517 = vadd.f32 0.0, %v2516
        %v2518 = vpop.f32.mrb[0].mxu0
        %v2519 = vadd.f32 0.0, %v2518
        %v2520 = vpop.f32.mrb[0].mxu0
        %v2521 = vpop.f32.mrb[0].mxu0
        %2522 = vdwg.mxu0
        %2523 = vmatprep.subr.bf16.mxu0 %v2260
        %2524 = vmatpush1.bf16.msra.mxu0 %v2259
        %2525 = vmatprep.subr.bf16.mxu0 %v2268
        %2526 = vmatpush1.bf16.msra.mxu0 %v2267
        %2527 = vmatprep.subr.bf16.mxu0 %v2276
        %2528 = vmatpush1.bf16.msra.mxu0 %v2275
        %2529 = vmatprep.subr.bf16.mxu0 %v2284
        %2530 = vmatpush1.bf16.msra.mxu0 %v2283
        %2531 = vmatprep.subr.bf16.mxu0 %v2292
        %2532 = vmatpush1.bf16.msra.mxu0 %v2291
        %2533 = vmatprep.subr.bf16.mxu0 %v2300
        %2534 = vmatpush1.bf16.msra.mxu0 %v2299
        %2535 = vmatprep.subr.bf16.mxu0 %v2308
        %2536 = vmatpush1.bf16.msra.mxu0 %v2307
        %2537 = vmatprep.subr.bf16.mxu0 %v2316
        %2538 = vmatpush1.bf16.msra.mxu0 %v2315
        %2539 = vmatprep.subr.bf16.mxu0 %v2324
        %2540 = vmatpush1.bf16.msra.mxu0 %v2323
        %2541 = vmatprep.subr.bf16.mxu0 0
        %2542 = vmatpush1.bf16.msra.mxu0 0
        %2543 = vmatprep.subr.bf16.mxu0 0
        %2544 = vmatpush1.bf16.msra.mxu0 0
        %2545 = vmatprep.subr.bf16.mxu0 0
        %2546 = vmatpush1.bf16.msra.mxu0 0
        %2547 = vmatprep.subr.bf16.mxu0 0
        %2548 = vmatpush1.bf16.msra.mxu0 0
        %2549 = vmatprep.subr.bf16.mxu0 0
        %2550 = vmatpush1.bf16.msra.mxu0 0
        %2551 = vmatprep.subr.bf16.mxu0 0
        %2552 = vmatpush1.bf16.msra.mxu0 0
        %2553 = vmatprep.subr.bf16.mxu0 0
        %2554 = vmatpush1.bf16.msra.mxu0 0
        %2555 = vmatprep.mubr.bf16.mxu0 %v2398
        %2556 = vmatmul.mubr.bf16.gmra.mrb[0].mxu0 %v2087
        %v2557 = vpop.f32.mrb[0].mxu0
        %v2558 = vadd.f32 0.0, %v2557
        %v2559 = vpop.f32.mrb[0].mxu0
        %v2560 = vadd.f32 0.0, %v2559
        %v2561 = vpop.f32.mrb[0].mxu0
        %v2562 = vpop.f32.mrb[0].mxu0
        %2563 = vdwg.mxu0
        %v2564 = vadd.f32 %v1849, %v2435
        %v2565 = vadd.f32 %v1851, %v2437
        %v2566 = vadd.f32 %v1890, %v2476
        %v2567 = vadd.f32 %v1892, %v2478
        %v2568 = vadd.f32 %v1931, %v2517
        %v2569 = vadd.f32 %v1933, %v2519
        %v2570 = vadd.f32 %v1972, %v2558
        %v2571 = vadd.f32 %v1974, %v2560
        %v2572 = vld [vmem:[#allocation11] sm:$0xff]
        %2574 = vset.pattern.permute.xlu0 0
        %2575 = vperm.xlu0 %2574, %v2572
        %v2576 = vpop.permute.xlu0 %2575
        %v2578 = vadd.f32 %v2564, %v2576
        %v2579 = vadd.f32 %v2565, %v2576
        %v2580 = vadd.f32 %v2566, %v2576
        %v2581 = vadd.f32 %v2567, %v2576
        %v2582 = vadd.f32 %v2568, %v2576
        %v2583 = vadd.f32 %v2569, %v2576
        %v2584 = vadd.f32 %v2570, %v2576
        %v2585 = vadd.f32 %v2571, %v2576
        %v2586 = vld [vmem:[#allocation6] sm:$0xff]
        %v2587 = vunpack.c.l.bf16 %v2586
        %v2588 = vunpack.c.h.bf16 %v2586
        %v2591 = vlaneseq
        %v2592 = vshrl.u32 %v2591, 7
        %v2593 = vsub.s32 0, %v2592
        %v2594 = vrot.slane %v2587, %v2593
        %v2595 = vlaneseq
        %v2596 = vshrl.u32 %v2595, 7
        %v2597 = vsub.s32 2, %v2596
        %v2598 = vrot.slane %v2587, %v2597
        %v2599 = vlaneseq
        %v2600 = vshrl.u32 %v2599, 7
        %v2601 = vsub.s32 4, %v2600
        %v2602 = vrot.slane %v2587, %v2601
        %v2603 = vlaneseq
        %v2604 = vshrl.u32 %v2603, 7
        %v2605 = vsub.s32 6, %v2604
        %v2606 = vrot.slane %v2587, %v2605
        %v2607 = vlaneseq
        %v2608 = vshrl.u32 %v2607, 7
        %v2609 = vsub.s32 0, %v2608
        %v2610 = vrot.slane %v2588, %v2609
        %v2611 = vlaneseq
        %v2612 = vshrl.u32 %v2611, 7
        %v2613 = vsub.s32 2, %v2612
        %v2614 = vrot.slane %v2588, %v2613
        %v2615 = vlaneseq
        %v2616 = vshrl.u32 %v2615, 7
        %v2617 = vsub.s32 4, %v2616
        %v2618 = vrot.slane %v2588, %v2617
        %v2619 = vlaneseq
        %v2620 = vshrl.u32 %v2619, 7
        %v2621 = vsub.s32 6, %v2620
        %v2622 = vrot.slane %v2588, %v2621
        %v2631 = vlaneseq
        %v2632 = vshrl.u32 %v2631, 7
        %v2633 = vsub.s32 0, %v2632
        %v2634 = vrot.slane %v2594, %v2633
        %v2635 = vlaneseq
        %v2636 = vshrl.u32 %v2635, 7
        %v2637 = vsub.s32 0, %v2636
        %v2638 = vrot.slane %v2598, %v2637
        %v2639 = vlaneseq
        %v2640 = vshrl.u32 %v2639, 7
        %v2641 = vsub.s32 0, %v2640
        %v2642 = vrot.slane %v2602, %v2641
        %v2643 = vlaneseq
        %v2644 = vshrl.u32 %v2643, 7
        %v2645 = vsub.s32 0, %v2644
        %v2646 = vrot.slane %v2606, %v2645
        %v2647 = vlaneseq
        %v2648 = vshrl.u32 %v2647, 7
        %v2649 = vsub.s32 0, %v2648
        %v2650 = vrot.slane %v2610, %v2649
        %v2651 = vlaneseq
        %v2652 = vshrl.u32 %v2651, 7
        %v2653 = vsub.s32 0, %v2652
        %v2654 = vrot.slane %v2614, %v2653
        %v2655 = vlaneseq
        %v2656 = vshrl.u32 %v2655, 7
        %v2657 = vsub.s32 0, %v2656
        %v2658 = vrot.slane %v2618, %v2657
        %v2659 = vlaneseq
        %v2660 = vshrl.u32 %v2659, 7
        %v2661 = vsub.s32 0, %v2660
        %v2662 = vrot.slane %v2622, %v2661
        %v2663 = vmul.f32 %v2578, %v2634
        %v2664 = vmul.f32 %v2579, %v2638
        %v2665 = vmul.f32 %v2580, %v2642
        %v2666 = vmul.f32 %v2581, %v2646
        %v2667 = vmul.f32 %v2582, %v2650
        %v2668 = vmul.f32 %v2583, %v2654
        %v2669 = vmul.f32 %v2584, %v2658
        %v2670 = vmul.f32 %v2585, %v2662
        %v2671 = vadd.f32 %v2663, %v2664
        %v2672 = vadd.f32 %v2671, %v2665
        %v2673 = vadd.f32 %v2672, %v2666
        %v2674 = vadd.f32 %v2673, %v2667
        %v2675 = vadd.f32 %v2674, %v2668
        %v2676 = vadd.f32 %v2675, %v2669
        %v2677 = vadd.f32 %v2676, %v2670
        %2678 = vadd.xlane.f32.xlu0 %v2677
        %v2679 = vpop.xlane.xlu0 %2678
        %v2680 = vadd.f32 %v2679, 0.0
        %v2681 = vmul.f32 %v2663, %v2578
        %v2682 = vmul.f32 %v2664, %v2579
        %v2683 = vmul.f32 %v2665, %v2580
        %v2684 = vmul.f32 %v2666, %v2581
        %v2685 = vmul.f32 %v2667, %v2582
        %v2686 = vmul.f32 %v2668, %v2583
        %v2687 = vmul.f32 %v2669, %v2584
        %v2688 = vmul.f32 %v2670, %v2585
        %v2689 = vadd.f32 %v2681, %v2682
        %v2690 = vadd.f32 %v2689, %v2683
        %v2691 = vadd.f32 %v2690, %v2684
        %v2692 = vadd.f32 %v2691, %v2685
        %v2693 = vadd.f32 %v2692, %v2686
        %v2694 = vadd.f32 %v2693, %v2687
        %v2695 = vadd.f32 %v2694, %v2688
        %2696 = vadd.xlane.f32.xlu0 %v2695
        %v2697 = vpop.xlane.xlu0 %2696
        %v2698 = vadd.f32 %v2697, 0.0
        %v2699 = vpack.c.bf16 %v2578, %v2578
        %v2700 = vpack.c.bf16 %v2579, %v2579
        %v2701 = vpack.c.bf16 %v2580, %v2580
        %v2702 = vpack.c.bf16 %v2581, %v2581
        %v2703 = vpack.c.bf16 %v2582, %v2582
        %v2704 = vpack.c.bf16 %v2583, %v2583
        %v2705 = vpack.c.bf16 %v2584, %v2584
        %v2706 = vpack.c.bf16 %v2585, %v2585
        %v2715 = vunpack.c.l.b16 %v2699
        %v2716 = vunpack.c.l.b16 %v2700
        %v2717 = vunpack.c.l.b16 %v2701
        %v2718 = vunpack.c.l.b16 %v2702
        %v2719 = vunpack.c.l.b16 %v2703
        %v2720 = vunpack.c.l.b16 %v2704
        %v2721 = vunpack.c.l.b16 %v2705
        %v2722 = vunpack.c.l.b16 %v2706
        %v2723 = vpack.c.b16 %v2716, %v2715
        %v2724 = vpack.c.b16 %v2718, %v2717
        %v2725 = vpack.c.b16 %v2720, %v2719
        %v2726 = vpack.c.b16 %v2722, %v2721
        %2731 = vst [vmem:[#allocation2 + $0x4] sm:$0xff] %v2723
        %2732 = vst [vmem:[#allocation2 + $0xc] sm:$0xff] %v2724
        %2733 = vst [vmem:[#allocation2 + $0x14] sm:$0xff] %v2725
        %2734 = vst [vmem:[#allocation2 + $0x1c] sm:$0xff] %v2726
        %v2735 = vld [vmem:[#allocation8] sm:$0xff]
        %vm2736 = vcmask 7168
        %v2737 = vsel %vm2736, %v2680, %v2698
        %vm2738 = vcmask 64512
        %v2740 = vsel %vm2738, %v2735, 0
        %2742 = vmatprep.subr.mxu0 0.0
        %2743 = vmatpush1.msra.mxu0 %v2737
        %2744 = vmatprep.subr.mxu0 0.0
        %2745 = vmatpush1.msra.mxu0 0.0
        %2746 = vmatprep.subr.mxu0 0.0
        %2747 = vmatpush1.msra.mxu0 0.0
        %2748 = vmatprep.subr.mxu0 0.0
        %2749 = vmatpush1.msra.mxu0 0.0
        %2750 = vmatprep.subr.mxu0 0.0
        %2751 = vmatpush1.msra.mxu0 0.0
        %2752 = vmatprep.subr.mxu0 0.0
        %2753 = vmatpush1.msra.mxu0 0.0
        %2754 = vmatprep.subr.mxu0 0.0
        %2755 = vmatpush1.msra.mxu0 0.0
        %2756 = vmatprep.subr.mxu0 0.0
        %2757 = vmatpush1.msra.mxu0 0.0
        %2758 = vmatprep.subr.mxu0 0.0
        %2759 = vmatpush1.msra.mxu0 0.0
        %2760 = vmatprep.subr.mxu0 0.0
        %2761 = vmatpush1.msra.mxu0 0.0
        %2762 = vmatprep.subr.mxu0 0.0
        %2763 = vmatpush1.msra.mxu0 0.0
        %2764 = vmatprep.subr.mxu0 0.0
        %2765 = vmatpush1.msra.mxu0 0.0
        %2766 = vmatprep.subr.mxu0 0.0
        %2767 = vmatpush1.msra.mxu0 0.0
        %2768 = vmatprep.subr.mxu0 0.0
        %2769 = vmatpush1.msra.mxu0 0.0
        %2770 = vmatprep.subr.mxu0 0.0
        %2771 = vmatpush1.msra.mxu0 0.0
        %2772 = vmatprep.subr.mxu0 0.0
        %2773 = vmatpush1.msra.mxu0 0.0
        %2774 = vmatprep.subr.mxu0 0.0
        %2775 = vmatpush1.msra.mxu0 0.0
        %2776 = vmatprep.subr.mxu0 0.0
        %2777 = vmatpush1.msra.mxu0 0.0
        %2778 = vmatprep.subr.mxu0 0.0
        %2779 = vmatpush1.msra.mxu0 0.0
        %2780 = vmatprep.subr.mxu0 0.0
        %2781 = vmatpush1.msra.mxu0 0.0
        %2782 = vmatprep.subr.mxu0 0.0
        %2783 = vmatpush1.msra.mxu0 0.0
        %2784 = vmatprep.subr.mxu0 0.0
        %2785 = vmatpush1.msra.mxu0 0.0
        %2786 = vmatprep.subr.mxu0 0.0
        %2787 = vmatpush1.msra.mxu0 0.0
        %2788 = vmatprep.subr.mxu0 0.0
        %2789 = vmatpush1.msra.mxu0 0.0
        %2790 = vmatprep.subr.mxu0 0.0
        %2791 = vmatpush1.msra.mxu0 0.0
        %2792 = vmatprep.subr.mxu0 0.0
        %2793 = vmatpush1.msra.mxu0 0.0
        %2794 = vmatprep.subr.mxu0 0.0
        %2795 = vmatpush1.msra.mxu0 0.0
        %2796 = vmatprep.subr.mxu0 0.0
        %2797 = vmatpush1.msra.mxu0 0.0
        %2798 = vmatprep.subr.mxu0 0.0
        %2799 = vmatpush1.msra.mxu0 0.0
        %2800 = vmatprep.subr.mxu0 0.0
        %2801 = vmatpush1.msra.mxu0 0.0
        %2802 = vmatprep.subr.mxu0 0.0
        %2803 = vmatpush1.msra.mxu0 0.0
        %2804 = vmatprep.subr.mxu0 0.0
        %2805 = vmatpush1.msra.mxu0 0.0
        %2806 = vmatprep.mubr.f32.mxu0 0.0
        %2807 = vmatmul.mubr.f32.gmra.mrb[0].mxu0 %v2740
        %v2808 = vpop.f32.mrb[0].mxu0
        %v2809 = vadd.f32 0.0, %v2808
        %v2810 = vpop.f32.mrb[0].mxu0
        %2811 = vdwg.mxu0
        %v2812 = vmul.f32 %v2809, %v2809
        %2814 = vrot.lane.b32.xlu0 %v2812, 1
        %v2815 = vpop.permute.xlu0 %2814
        %v2817 = vsub.f32 %v2809, %v2815
        %v2818 = vld [vmem:[#allocation12] sm:$0xff]
        %v2819 = vadd.f32 %v2817, 1e-05
        %v2820 = vrsqrt.pop %v2819
        %2822 = vrot.lane.b32.xlu0 %v2820, 127
        %v2823 = vpop.permute.xlu0 %2822
        %v2825 = vmul.f32 %v2818, %v2823
        %v2826 = vld [vmem:[#allocation14] sm:$0xff]
        %v2827 = vmul.f32 %v2809, %v2825
        %v2828 = vsub.f32 %v2826, %v2827
        %v2829 = vld [vmem:[#allocation2 + $0x4] sm:$0xff]
        %v2830 = vld [vmem:[#allocation2 + $0xc] sm:$0xff]
        %v2831 = vld [vmem:[#allocation2 + $0x14] sm:$0xff]
        %v2832 = vld [vmem:[#allocation2 + $0x1c] sm:$0xff]
        %v2833 = vunpack.c.l.bf16 %v2829
        %v2834 = vunpack.c.h.bf16 %v2829
        %v2835 = vunpack.c.l.bf16 %v2830
        %v2836 = vunpack.c.h.bf16 %v2830
        %v2837 = vunpack.c.l.bf16 %v2831
        %v2838 = vunpack.c.h.bf16 %v2831
        %v2839 = vunpack.c.l.bf16 %v2832
        %v2840 = vunpack.c.h.bf16 %v2832
        %v2841 = vld [vmem:[#allocation6] sm:$0xff]
        %v2842 = vunpack.c.l.bf16 %v2841
        %v2843 = vunpack.c.h.bf16 %v2841
        %2845 = vset.pattern.permute.xlu0 0
        %2846 = vperm.xlu0 %2845, %v2825
        %v2847 = vpop.permute.xlu0 %2846
        %v2849 = vmul.f32 %v2833, %v2847
        %v2850 = vmul.f32 %v2834, %v2847
        %v2851 = vmul.f32 %v2835, %v2847
        %v2852 = vmul.f32 %v2836, %v2847
        %v2853 = vmul.f32 %v2837, %v2847
        %v2854 = vmul.f32 %v2838, %v2847
        %v2855 = vmul.f32 %v2839, %v2847
        %v2856 = vmul.f32 %v2840, %v2847
        %2858 = vset.pattern.permute.xlu0 0
        %2859 = vperm.xlu0 %2858, %v2828
        %v2860 = vpop.permute.xlu0 %2859
        %v2862 = vadd.f32 %v2849, %v2860
        %v2863 = vadd.f32 %v2850, %v2860
        %v2864 = vadd.f32 %v2851, %v2860
        %v2865 = vadd.f32 %v2852, %v2860
        %v2866 = vadd.f32 %v2853, %v2860
        %v2867 = vadd.f32 %v2854, %v2860
        %v2868 = vadd.f32 %v2855, %v2860
        %v2869 = vadd.f32 %v2856, %v2860
        %v2870 = vmax.f32 %v2862, 0.0
        %v2871 = vmax.f32 %v2863, 0.0
        %v2872 = vmax.f32 %v2864, 0.0
        %v2873 = vmax.f32 %v2865, 0.0
        %v2874 = vmax.f32 %v2866, 0.0
        %v2875 = vmax.f32 %v2867, 0.0
        %v2876 = vmax.f32 %v2868, 0.0
        %v2877 = vmax.f32 %v2869, 0.0
        %v2880 = vlaneseq
        %v2881 = vshrl.u32 %v2880, 7
        %v2882 = vsub.s32 0, %v2881
        %v2883 = vrot.slane %v2842, %v2882
        %v2884 = vlaneseq
        %v2885 = vshrl.u32 %v2884, 7
        %v2886 = vsub.s32 2, %v2885
        %v2887 = vrot.slane %v2842, %v2886
        %v2888 = vlaneseq
        %v2889 = vshrl.u32 %v2888, 7
        %v2890 = vsub.s32 4, %v2889
        %v2891 = vrot.slane %v2842, %v2890
        %v2892 = vlaneseq
        %v2893 = vshrl.u32 %v2892, 7
        %v2894 = vsub.s32 6, %v2893
        %v2895 = vrot.slane %v2842, %v2894
        %v2896 = vlaneseq
        %v2897 = vshrl.u32 %v2896, 7
        %v2898 = vsub.s32 0, %v2897
        %v2899 = vrot.slane %v2843, %v2898
        %v2900 = vlaneseq
        %v2901 = vshrl.u32 %v2900, 7
        %v2902 = vsub.s32 2, %v2901
        %v2903 = vrot.slane %v2843, %v2902
        %v2904 = vlaneseq
        %v2905 = vshrl.u32 %v2904, 7
        %v2906 = vsub.s32 4, %v2905
        %v2907 = vrot.slane %v2843, %v2906
        %v2908 = vlaneseq
        %v2909 = vshrl.u32 %v2908, 7
        %v2910 = vsub.s32 6, %v2909
        %v2911 = vrot.slane %v2843, %v2910
        %v2920 = vlaneseq
        %v2921 = vshrl.u32 %v2920, 7
        %v2922 = vsub.s32 0, %v2921
        %v2923 = vrot.slane %v2883, %v2922
        %v2924 = vlaneseq
        %v2925 = vshrl.u32 %v2924, 7
        %v2926 = vsub.s32 0, %v2925
        %v2927 = vrot.slane %v2887, %v2926
        %v2928 = vlaneseq
        %v2929 = vshrl.u32 %v2928, 7
        %v2930 = vsub.s32 0, %v2929
        %v2931 = vrot.slane %v2891, %v2930
        %v2932 = vlaneseq
        %v2933 = vshrl.u32 %v2932, 7
        %v2934 = vsub.s32 0, %v2933
        %v2935 = vrot.slane %v2895, %v2934
        %v2936 = vlaneseq
        %v2937 = vshrl.u32 %v2936, 7
        %v2938 = vsub.s32 0, %v2937
        %v2939 = vrot.slane %v2899, %v2938
        %v2940 = vlaneseq
        %v2941 = vshrl.u32 %v2940, 7
        %v2942 = vsub.s32 0, %v2941
        %v2943 = vrot.slane %v2903, %v2942
        %v2944 = vlaneseq
        %v2945 = vshrl.u32 %v2944, 7
        %v2946 = vsub.s32 0, %v2945
        %v2947 = vrot.slane %v2907, %v2946
        %v2948 = vlaneseq
        %v2949 = vshrl.u32 %v2948, 7
        %v2950 = vsub.s32 0, %v2949
        %v2951 = vrot.slane %v2911, %v2950
        %v2952 = vmul.f32 %v2870, %v2923
        %v2953 = vmul.f32 %v2871, %v2927
        %v2954 = vmul.f32 %v2872, %v2931
        %v2955 = vmul.f32 %v2873, %v2935
        %v2956 = vmul.f32 %v2874, %v2939
        %v2957 = vmul.f32 %v2875, %v2943
        %v2958 = vmul.f32 %v2876, %v2947
        %v2959 = vmul.f32 %v2877, %v2951
        %v2960 = vpack.c.bf16 %v2952, %v2952
        %v2961 = vpack.c.bf16 %v2953, %v2953
        %v2962 = vpack.c.bf16 %v2954, %v2954
        %v2963 = vpack.c.bf16 %v2955, %v2955
        %v2964 = vpack.c.bf16 %v2956, %v2956
        %v2965 = vpack.c.bf16 %v2957, %v2957
        %v2966 = vpack.c.bf16 %v2958, %v2958
        %v2967 = vpack.c.bf16 %v2959, %v2959
        %v2976 = vunpack.c.l.b16 %v2960
        %v2977 = vunpack.c.l.b16 %v2961
        %v2978 = vunpack.c.l.b16 %v2962
        %v2979 = vunpack.c.l.b16 %v2963
        %v2980 = vunpack.c.l.b16 %v2964
        %v2981 = vunpack.c.l.b16 %v2965
        %v2982 = vunpack.c.l.b16 %v2966
        %v2983 = vunpack.c.l.b16 %v2967
        %v2984 = vpack.c.b16 %v2977, %v2976
        %v2985 = vpack.c.b16 %v2979, %v2978
        %v2986 = vpack.c.b16 %v2981, %v2980
        %v2987 = vpack.c.b16 %v2983, %v2982
        %2992 = vst [vmem:[#allocation2 + $0x4] sm:$0xff] %v2984
        %2993 = vst [vmem:[#allocation2 + $0xc] sm:$0xff] %v2985
        %2994 = vst [vmem:[#allocation2 + $0x14] sm:$0xff] %v2986
        %2995 = vst [vmem:[#allocation2 + $0x1c] sm:$0xff] %v2987
        %v2996 = vld [vmem:[#allocation2] sm:$0xff]
        %v2997 = vld [vmem:[#allocation2 + $0x8] sm:$0xff]
        %v2998 = vld [vmem:[#allocation2 + $0x10] sm:$0xff]
        %v2999 = vld [vmem:[#allocation2 + $0x18] sm:$0xff]
        %v3000 = vld [vmem:[#allocation2 + $0x20] sm:$0xf]
        %v3006 = vunpack.c.l.b16 %v2996
        %v3007 = vunpack.c.h.b16 %v2996
        %v3008 = vunpack.c.l.b16 %v2997
        %v3009 = vunpack.c.h.b16 %v2997
        %v3010 = vunpack.c.l.b16 %v2998
        %v3011 = vunpack.c.h.b16 %v2998
        %v3012 = vunpack.c.l.b16 %v2999
        %v3013 = vunpack.c.h.b16 %v2999
        %v3014 = vunpack.c.l.b16 %v3000
        %v3015 = vpack.c.b16 %v3006, %v3006
        %v3016 = vpack.c.b16 %v3007, %v3007
        %v3017 = vpack.c.b16 %v3008, %v3008
        %v3018 = vpack.c.b16 %v3009, %v3009
        %v3019 = vpack.c.b16 %v3010, %v3010
        %v3020 = vpack.c.b16 %v3011, %v3011
        %v3021 = vpack.c.b16 %v3012, %v3012
        %v3022 = vpack.c.b16 %v3013, %v3013
        %v3023 = vpack.c.b16 %v3014, %v3014
        %3024 = vrot.lane.b32.xlu0 %v3015, 127
        %v3025 = vpop.permute.xlu0 %3024
        %3026 = vrot.lane.b32.xlu0 %v3016, 127
        %v3027 = vpop.permute.xlu0 %3026
        %3028 = vrot.lane.b32.xlu0 %v3017, 127
        %v3029 = vpop.permute.xlu0 %3028
        %3030 = vrot.lane.b32.xlu0 %v3018, 127
        %v3031 = vpop.permute.xlu0 %3030
        %3032 = vrot.lane.b32.xlu0 %v3019, 127
        %v3033 = vpop.permute.xlu0 %3032
        %3034 = vrot.lane.b32.xlu0 %v3020, 127
        %v3035 = vpop.permute.xlu0 %3034
        %3036 = vrot.lane.b32.xlu0 %v3021, 127
        %v3037 = vpop.permute.xlu0 %3036
        %3038 = vrot.lane.b32.xlu0 %v3022, 127
        %v3039 = vpop.permute.xlu0 %3038
        %3040 = vrot.lane.b32.xlu0 %v3023, 127
        %v3041 = vpop.permute.xlu0 %3040
        %v3042 = vsel %vm602, %v3025, %v3027
        %v3043 = vsel %vm602, %v3027, %v3029
        %v3044 = vsel %vm602, %v3029, %v3031
        %v3045 = vsel %vm602, %v3031, %v3033
        %v3046 = vsel %vm602, %v3033, %v3035
        %v3047 = vsel %vm602, %v3035, %v3037
        %v3048 = vsel %vm602, %v3037, %v3039
        %v3049 = vsel %vm602, %v3039, %v3041
        %3050 = vrot.lane.b32.xlu0 %v3015, 126
        %v3051 = vpop.permute.xlu0 %3050
        %3052 = vrot.lane.b32.xlu0 %v3016, 126
        %v3053 = vpop.permute.xlu0 %3052
        %3054 = vrot.lane.b32.xlu0 %v3017, 126
        %v3055 = vpop.permute.xlu0 %3054
        %3056 = vrot.lane.b32.xlu0 %v3018, 126
        %v3057 = vpop.permute.xlu0 %3056
        %3058 = vrot.lane.b32.xlu0 %v3019, 126
        %v3059 = vpop.permute.xlu0 %3058
        %3060 = vrot.lane.b32.xlu0 %v3020, 126
        %v3061 = vpop.permute.xlu0 %3060
        %3062 = vrot.lane.b32.xlu0 %v3021, 126
        %v3063 = vpop.permute.xlu0 %3062
        %3064 = vrot.lane.b32.xlu0 %v3022, 126
        %v3065 = vpop.permute.xlu0 %3064
        %3066 = vrot.lane.b32.xlu0 %v3023, 126
        %v3067 = vpop.permute.xlu0 %3066
        %v3068 = vsel %vm629, %v3051, %v3053
        %v3069 = vsel %vm629, %v3053, %v3055
        %v3070 = vsel %vm629, %v3055, %v3057
        %v3071 = vsel %vm629, %v3057, %v3059
        %v3072 = vsel %vm629, %v3059, %v3061
        %v3073 = vsel %vm629, %v3061, %v3063
        %v3074 = vsel %vm629, %v3063, %v3065
        %v3075 = vsel %vm629, %v3065, %v3067
        %3076 = vrot.lane.b32.xlu0 %v3015, 118
        %v3077 = vpop.permute.xlu0 %3076
        %3078 = vrot.lane.b32.xlu0 %v3016, 118
        %v3079 = vpop.permute.xlu0 %3078
        %3080 = vrot.lane.b32.xlu0 %v3017, 118
        %v3081 = vpop.permute.xlu0 %3080
        %3082 = vrot.lane.b32.xlu0 %v3018, 118
        %v3083 = vpop.permute.xlu0 %3082
        %3084 = vrot.lane.b32.xlu0 %v3019, 118
        %v3085 = vpop.permute.xlu0 %3084
        %3086 = vrot.lane.b32.xlu0 %v3020, 118
        %v3087 = vpop.permute.xlu0 %3086
        %3088 = vrot.lane.b32.xlu0 %v3021, 118
        %v3089 = vpop.permute.xlu0 %3088
        %3090 = vrot.lane.b32.xlu0 %v3022, 118
        %v3091 = vpop.permute.xlu0 %3090
        %3092 = vrot.lane.b32.xlu0 %v3023, 118
        %v3093 = vpop.permute.xlu0 %3092
        %v3094 = vsel %vm656, %v3077, %v3079
        %v3095 = vsel %vm656, %v3079, %v3081
        %v3096 = vsel %vm656, %v3081, %v3083
        %v3097 = vsel %vm656, %v3083, %v3085
        %v3098 = vsel %vm656, %v3085, %v3087
        %v3099 = vsel %vm656, %v3087, %v3089
        %v3100 = vsel %vm656, %v3089, %v3091
        %v3101 = vsel %vm656, %v3091, %v3093
        %3102 = vrot.lane.b32.xlu0 %v3015, 117
        %v3103 = vpop.permute.xlu0 %3102
        %3104 = vrot.lane.b32.xlu0 %v3016, 117
        %v3105 = vpop.permute.xlu0 %3104
        %3106 = vrot.lane.b32.xlu0 %v3017, 117
        %v3107 = vpop.permute.xlu0 %3106
        %3108 = vrot.lane.b32.xlu0 %v3018, 117
        %v3109 = vpop.permute.xlu0 %3108
        %3110 = vrot.lane.b32.xlu0 %v3019, 117
        %v3111 = vpop.permute.xlu0 %3110
        %3112 = vrot.lane.b32.xlu0 %v3020, 117
        %v3113 = vpop.permute.xlu0 %3112
        %3114 = vrot.lane.b32.xlu0 %v3021, 117
        %v3115 = vpop.permute.xlu0 %3114
        %3116 = vrot.lane.b32.xlu0 %v3022, 117
        %v3117 = vpop.permute.xlu0 %3116
        %3118 = vrot.lane.b32.xlu0 %v3023, 117
        %v3119 = vpop.permute.xlu0 %3118
        %v3120 = vsel %vm683, %v3103, %v3105
        %v3121 = vsel %vm683, %v3105, %v3107
        %v3122 = vsel %vm683, %v3107, %v3109
        %v3123 = vsel %vm683, %v3109, %v3111
        %v3124 = vsel %vm683, %v3111, %v3113
        %v3125 = vsel %vm683, %v3113, %v3115
        %v3126 = vsel %vm683, %v3115, %v3117
        %v3127 = vsel %vm683, %v3117, %v3119
        %3128 = vrot.lane.b32.xlu0 %v3015, 116
        %v3129 = vpop.permute.xlu0 %3128
        %3130 = vrot.lane.b32.xlu0 %v3016, 116
        %v3131 = vpop.permute.xlu0 %3130
        %3132 = vrot.lane.b32.xlu0 %v3017, 116
        %v3133 = vpop.permute.xlu0 %3132
        %3134 = vrot.lane.b32.xlu0 %v3018, 116
        %v3135 = vpop.permute.xlu0 %3134
        %3136 = vrot.lane.b32.xlu0 %v3019, 116
        %v3137 = vpop.permute.xlu0 %3136
        %3138 = vrot.lane.b32.xlu0 %v3020, 116
        %v3139 = vpop.permute.xlu0 %3138
        %3140 = vrot.lane.b32.xlu0 %v3021, 116
        %v3141 = vpop.permute.xlu0 %3140
        %3142 = vrot.lane.b32.xlu0 %v3022, 116
        %v3143 = vpop.permute.xlu0 %3142
        %3144 = vrot.lane.b32.xlu0 %v3023, 116
        %v3145 = vpop.permute.xlu0 %3144
        %v3146 = vsel %vm710, %v3129, %v3131
        %v3147 = vsel %vm710, %v3131, %v3133
        %v3148 = vsel %vm710, %v3133, %v3135
        %v3149 = vsel %vm710, %v3135, %v3137
        %v3150 = vsel %vm710, %v3137, %v3139
        %v3151 = vsel %vm710, %v3139, %v3141
        %v3152 = vsel %vm710, %v3141, %v3143
        %v3153 = vsel %vm710, %v3143, %v3145
        %3154 = vrot.lane.b32.xlu0 %v3015, 108
        %v3155 = vpop.permute.xlu0 %3154
        %3156 = vrot.lane.b32.xlu0 %v3016, 108
        %v3157 = vpop.permute.xlu0 %3156
        %3158 = vrot.lane.b32.xlu0 %v3017, 108
        %v3159 = vpop.permute.xlu0 %3158
        %3160 = vrot.lane.b32.xlu0 %v3018, 108
        %v3161 = vpop.permute.xlu0 %3160
        %3162 = vrot.lane.b32.xlu0 %v3019, 108
        %v3163 = vpop.permute.xlu0 %3162
        %3164 = vrot.lane.b32.xlu0 %v3020, 108
        %v3165 = vpop.permute.xlu0 %3164
        %3166 = vrot.lane.b32.xlu0 %v3021, 108
        %v3167 = vpop.permute.xlu0 %3166
        %3168 = vrot.lane.b32.xlu0 %v3022, 108
        %v3169 = vpop.permute.xlu0 %3168
        %3170 = vrot.lane.b32.xlu0 %v3023, 108
        %v3171 = vpop.permute.xlu0 %3170
        %v3172 = vsel %vm737, %v3155, %v3157
        %v3173 = vsel %vm737, %v3157, %v3159
        %v3174 = vsel %vm737, %v3159, %v3161
        %v3175 = vsel %vm737, %v3161, %v3163
        %v3176 = vsel %vm737, %v3163, %v3165
        %v3177 = vsel %vm737, %v3165, %v3167
        %v3178 = vsel %vm737, %v3167, %v3169
        %v3179 = vsel %vm737, %v3169, %v3171
        %3180 = vrot.lane.b32.xlu0 %v3015, 107
        %v3181 = vpop.permute.xlu0 %3180
        %3182 = vrot.lane.b32.xlu0 %v3016, 107
        %v3183 = vpop.permute.xlu0 %3182
        %3184 = vrot.lane.b32.xlu0 %v3017, 107
        %v3185 = vpop.permute.xlu0 %3184
        %3186 = vrot.lane.b32.xlu0 %v3018, 107
        %v3187 = vpop.permute.xlu0 %3186
        %3188 = vrot.lane.b32.xlu0 %v3019, 107
        %v3189 = vpop.permute.xlu0 %3188
        %3190 = vrot.lane.b32.xlu0 %v3020, 107
        %v3191 = vpop.permute.xlu0 %3190
        %3192 = vrot.lane.b32.xlu0 %v3021, 107
        %v3193 = vpop.permute.xlu0 %3192
        %3194 = vrot.lane.b32.xlu0 %v3022, 107
        %v3195 = vpop.permute.xlu0 %3194
        %3196 = vrot.lane.b32.xlu0 %v3023, 107
        %v3197 = vpop.permute.xlu0 %3196
        %v3198 = vsel %vm764, %v3181, %v3183
        %v3199 = vsel %vm764, %v3183, %v3185
        %v3200 = vsel %vm764, %v3185, %v3187
        %v3201 = vsel %vm764, %v3187, %v3189
        %v3202 = vsel %vm764, %v3189, %v3191
        %v3203 = vsel %vm764, %v3191, %v3193
        %v3204 = vsel %vm764, %v3193, %v3195
        %v3205 = vsel %vm764, %v3195, %v3197
        %3206 = vrot.lane.b32.xlu0 %v3015, 106
        %v3207 = vpop.permute.xlu0 %3206
        %3208 = vrot.lane.b32.xlu0 %v3016, 106
        %v3209 = vpop.permute.xlu0 %3208
        %3210 = vrot.lane.b32.xlu0 %v3017, 106
        %v3211 = vpop.permute.xlu0 %3210
        %3212 = vrot.lane.b32.xlu0 %v3018, 106
        %v3213 = vpop.permute.xlu0 %3212
        %3214 = vrot.lane.b32.xlu0 %v3019, 106
        %v3215 = vpop.permute.xlu0 %3214
        %3216 = vrot.lane.b32.xlu0 %v3020, 106
        %v3217 = vpop.permute.xlu0 %3216
        %3218 = vrot.lane.b32.xlu0 %v3021, 106
        %v3219 = vpop.permute.xlu0 %3218
        %3220 = vrot.lane.b32.xlu0 %v3022, 106
        %v3221 = vpop.permute.xlu0 %3220
        %3222 = vrot.lane.b32.xlu0 %v3023, 106
        %v3223 = vpop.permute.xlu0 %3222
        %v3224 = vsel %vm791, %v3207, %v3209
        %v3225 = vsel %vm791, %v3209, %v3211
        %v3226 = vsel %vm791, %v3211, %v3213
        %v3227 = vsel %vm791, %v3213, %v3215
        %v3228 = vsel %vm791, %v3215, %v3217
        %v3229 = vsel %vm791, %v3217, %v3219
        %v3230 = vsel %vm791, %v3219, %v3221
        %v3231 = vsel %vm791, %v3221, %v3223
        %vm3232 = vcmask 1043456
        %v3235 = vsel %vm3232, %v3015, %v3042
        %v3238 = vsel %vm3232, %v3016, %v3043
        %v3241 = vsel %vm3232, %v3017, %v3044
        %v3244 = vsel %vm3232, %v3018, %v3045
        %v3247 = vsel %vm3232, %v3019, %v3046
        %v3250 = vsel %vm3232, %v3020, %v3047
        %v3253 = vsel %vm3232, %v3021, %v3048
        %v3256 = vsel %vm3232, %v3022, %v3049
        %v3259 = vsel %vm3232, %v3023, %v3041
        %v3262 = vsel %vm3232, %v3068, %v3094
        %v3265 = vsel %vm3232, %v3069, %v3095
        %v3268 = vsel %vm3232, %v3070, %v3096
        %v3271 = vsel %vm3232, %v3071, %v3097
        %v3274 = vsel %vm3232, %v3072, %v3098
        %v3277 = vsel %vm3232, %v3073, %v3099
        %v3280 = vsel %vm3232, %v3074, %v3100
        %v3283 = vsel %vm3232, %v3075, %v3101
        %v3286 = vsel %vm3232, %v3067, %v3093
        %v3289 = vsel %vm3232, %v3120, %v3146
        %v3292 = vsel %vm3232, %v3121, %v3147
        %v3295 = vsel %vm3232, %v3122, %v3148
        %v3298 = vsel %vm3232, %v3123, %v3149
        %v3301 = vsel %vm3232, %v3124, %v3150
        %v3304 = vsel %vm3232, %v3125, %v3151
        %v3307 = vsel %vm3232, %v3126, %v3152
        %v3310 = vsel %vm3232, %v3127, %v3153
        %v3313 = vsel %vm3232, %v3119, %v3145
        %v3316 = vsel %vm3232, %v3172, %v3198
        %v3319 = vsel %vm3232, %v3173, %v3199
        %v3322 = vsel %vm3232, %v3174, %v3200
        %v3325 = vsel %vm3232, %v3175, %v3201
        %v3328 = vsel %vm3232, %v3176, %v3202
        %v3331 = vsel %vm3232, %v3177, %v3203
        %v3334 = vsel %vm3232, %v3178, %v3204
        %v3337 = vsel %vm3232, %v3179, %v3205
        %v3340 = vsel %vm3232, %v3171, %v3197
        %v3341 = vld [vmem:[#allocation15] sm:$0xf]
        %v3342 = vld [vmem:[#allocation2 + $0x4] sm:$0xff]
        %v3343 = vld [vmem:[#allocation2 + $0xc] sm:$0xff]
        %v3344 = vld [vmem:[#allocation2 + $0x14] sm:$0xff]
        %v3345 = vld [vmem:[#allocation2 + $0x1c] sm:$0xff]
        %v3346 = vld [vmem:[#allocation2 + $0x4] sm:$0xff]
        %v3347 = vld [vmem:[#allocation2 + $0xc] sm:$0xff]
        %v3348 = vld [vmem:[#allocation2 + $0x14] sm:$0xff]
        %v3349 = vld [vmem:[#allocation2 + $0x1c] sm:$0xff]
        %v3350 = vld [vmem:[#allocation2 + $0x24] sm:$0xf]
        %v3355 = vunpack.c.l.b16 %v3342
        %v3356 = vunpack.c.h.b16 %v3342
        %v3357 = vunpack.c.l.b16 %v3343
        %v3358 = vunpack.c.h.b16 %v3343
        %v3359 = vunpack.c.l.b16 %v3344
        %v3360 = vunpack.c.h.b16 %v3344
        %v3361 = vunpack.c.l.b16 %v3345
        %v3362 = vunpack.c.h.b16 %v3345
        %v3363 = vpack.c.b16 %v3355, %v3355
        %v3364 = vpack.c.b16 %v3356, %v3356
        %v3365 = vpack.c.b16 %v3357, %v3357
        %v3366 = vpack.c.b16 %v3358, %v3358
        %v3367 = vpack.c.b16 %v3359, %v3359
        %v3368 = vpack.c.b16 %v3360, %v3360
        %v3369 = vpack.c.b16 %v3361, %v3361
        %v3370 = vpack.c.b16 %v3362, %v3362
        %3371 = vrot.lane.b32.xlu0 %v3363, 117
        %v3372 = vpop.permute.xlu0 %3371
        %3373 = vrot.lane.b32.xlu0 %v3364, 117
        %v3374 = vpop.permute.xlu0 %3373
        %3375 = vrot.lane.b32.xlu0 %v3365, 117
        %v3376 = vpop.permute.xlu0 %3375
        %3377 = vrot.lane.b32.xlu0 %v3366, 117
        %v3378 = vpop.permute.xlu0 %3377
        %3379 = vrot.lane.b32.xlu0 %v3367, 117
        %v3380 = vpop.permute.xlu0 %3379
        %3381 = vrot.lane.b32.xlu0 %v3368, 117
        %v3382 = vpop.permute.xlu0 %3381
        %3383 = vrot.lane.b32.xlu0 %v3369, 117
        %v3384 = vpop.permute.xlu0 %3383
        %3385 = vrot.lane.b32.xlu0 %v3370, 117
        %v3386 = vpop.permute.xlu0 %3385
        %v3387 = vsel %vm683, %v3372, %v3374
        %v3388 = vsel %vm683, %v3374, %v3376
        %v3389 = vsel %vm683, %v3376, %v3378
        %v3390 = vsel %vm683, %v3378, %v3380
        %v3391 = vsel %vm683, %v3380, %v3382
        %v3392 = vsel %vm683, %v3382, %v3384
        %v3393 = vsel %vm683, %v3384, %v3386
        %v3399 = vunpack.c.l.b16 %v3346
        %v3400 = vunpack.c.h.b16 %v3346
        %v3401 = vunpack.c.l.b16 %v3347
        %v3402 = vunpack.c.h.b16 %v3347
        %v3403 = vunpack.c.l.b16 %v3348
        %v3404 = vunpack.c.h.b16 %v3348
        %v3405 = vunpack.c.l.b16 %v3349
        %v3406 = vunpack.c.h.b16 %v3349
        %v3407 = vunpack.c.l.b16 %v3350
        %v3408 = vpack.c.b16 %v3399, %v3399
        %v3409 = vpack.c.b16 %v3400, %v3400
        %v3410 = vpack.c.b16 %v3401, %v3401
        %v3411 = vpack.c.b16 %v3402, %v3402
        %v3412 = vpack.c.b16 %v3403, %v3403
        %v3413 = vpack.c.b16 %v3404, %v3404
        %v3414 = vpack.c.b16 %v3405, %v3405
        %v3415 = vpack.c.b16 %v3406, %v3406
        %v3416 = vpack.c.b16 %v3407, %v3407
        %3417 = vrot.lane.b32.xlu0 %v3408, 116
        %v3418 = vpop.permute.xlu0 %3417
        %3419 = vrot.lane.b32.xlu0 %v3409, 116
        %v3420 = vpop.permute.xlu0 %3419
        %3421 = vrot.lane.b32.xlu0 %v3410, 116
        %v3422 = vpop.permute.xlu0 %3421
        %3423 = vrot.lane.b32.xlu0 %v3411, 116
        %v3424 = vpop.permute.xlu0 %3423
        %3425 = vrot.lane.b32.xlu0 %v3412, 116
        %v3426 = vpop.permute.xlu0 %3425
        %3427 = vrot.lane.b32.xlu0 %v3413, 116
        %v3428 = vpop.permute.xlu0 %3427
        %3429 = vrot.lane.b32.xlu0 %v3414, 116
        %v3430 = vpop.permute.xlu0 %3429
        %3431 = vrot.lane.b32.xlu0 %v3415, 116
        %v3432 = vpop.permute.xlu0 %3431
        %3433 = vrot.lane.b32.xlu0 %v3416, 116
        %v3434 = vpop.permute.xlu0 %3433
        %v3435 = vsel %vm710, %v3418, %v3420
        %v3436 = vsel %vm710, %v3420, %v3422
        %v3437 = vsel %vm710, %v3422, %v3424
        %v3438 = vsel %vm710, %v3424, %v3426
        %v3439 = vsel %vm710, %v3426, %v3428
        %v3440 = vsel %vm710, %v3428, %v3430
        %v3441 = vsel %vm710, %v3430, %v3432
        %v3442 = vsel %vm710, %v3432, %v3434
        %3443 = vrot.lane.b32.xlu0 %v3408, 108
        %v3444 = vpop.permute.xlu0 %3443
        %3445 = vrot.lane.b32.xlu0 %v3409, 108
        %v3446 = vpop.permute.xlu0 %3445
        %3447 = vrot.lane.b32.xlu0 %v3410, 108
        %v3448 = vpop.permute.xlu0 %3447
        %3449 = vrot.lane.b32.xlu0 %v3411, 108
        %v3450 = vpop.permute.xlu0 %3449
        %3451 = vrot.lane.b32.xlu0 %v3412, 108
        %v3452 = vpop.permute.xlu0 %3451
        %3453 = vrot.lane.b32.xlu0 %v3413, 108
        %v3454 = vpop.permute.xlu0 %3453
        %3455 = vrot.lane.b32.xlu0 %v3414, 108
        %v3456 = vpop.permute.xlu0 %3455
        %3457 = vrot.lane.b32.xlu0 %v3415, 108
        %v3458 = vpop.permute.xlu0 %3457
        %3459 = vrot.lane.b32.xlu0 %v3416, 108
        %v3460 = vpop.permute.xlu0 %3459
        %v3461 = vsel %vm737, %v3444, %v3446
        %v3462 = vsel %vm737, %v3446, %v3448
        %v3463 = vsel %vm737, %v3448, %v3450
        %v3464 = vsel %vm737, %v3450, %v3452
        %v3465 = vsel %vm737, %v3452, %v3454
        %v3466 = vsel %vm737, %v3454, %v3456
        %v3467 = vsel %vm737, %v3456, %v3458
        %v3468 = vsel %vm737, %v3458, %v3460
        %3469 = vrot.lane.b32.xlu0 %v3408, 107
        %v3470 = vpop.permute.xlu0 %3469
        %3471 = vrot.lane.b32.xlu0 %v3409, 107
        %v3472 = vpop.permute.xlu0 %3471
        %3473 = vrot.lane.b32.xlu0 %v3410, 107
        %v3474 = vpop.permute.xlu0 %3473
        %3475 = vrot.lane.b32.xlu0 %v3411, 107
        %v3476 = vpop.permute.xlu0 %3475
        %3477 = vrot.lane.b32.xlu0 %v3412, 107
        %v3478 = vpop.permute.xlu0 %3477
        %3479 = vrot.lane.b32.xlu0 %v3413, 107
        %v3480 = vpop.permute.xlu0 %3479
        %3481 = vrot.lane.b32.xlu0 %v3414, 107
        %v3482 = vpop.permute.xlu0 %3481
        %3483 = vrot.lane.b32.xlu0 %v3415, 107
        %v3484 = vpop.permute.xlu0 %3483
        %3485 = vrot.lane.b32.xlu0 %v3416, 107
        %v3486 = vpop.permute.xlu0 %3485
        %v3487 = vsel %vm764, %v3470, %v3472
        %v3488 = vsel %vm764, %v3472, %v3474
        %v3489 = vsel %vm764, %v3474, %v3476
        %v3490 = vsel %vm764, %v3476, %v3478
        %v3491 = vsel %vm764, %v3478, %v3480
        %v3492 = vsel %vm764, %v3480, %v3482
        %v3493 = vsel %vm764, %v3482, %v3484
        %v3494 = vsel %vm764, %v3484, %v3486
        %3495 = vrot.lane.b32.xlu0 %v3408, 106
        %v3496 = vpop.permute.xlu0 %3495
        %3497 = vrot.lane.b32.xlu0 %v3409, 106
        %v3498 = vpop.permute.xlu0 %3497
        %3499 = vrot.lane.b32.xlu0 %v3410, 106
        %v3500 = vpop.permute.xlu0 %3499
        %3501 = vrot.lane.b32.xlu0 %v3411, 106
        %v3502 = vpop.permute.xlu0 %3501
        %3503 = vrot.lane.b32.xlu0 %v3412, 106
        %v3504 = vpop.permute.xlu0 %3503
        %3505 = vrot.lane.b32.xlu0 %v3413, 106
        %v3506 = vpop.permute.xlu0 %3505
        %3507 = vrot.lane.b32.xlu0 %v3414, 106
        %v3508 = vpop.permute.xlu0 %3507
        %3509 = vrot.lane.b32.xlu0 %v3415, 106
        %v3510 = vpop.permute.xlu0 %3509
        %3511 = vrot.lane.b32.xlu0 %v3416, 106
        %v3512 = vpop.permute.xlu0 %3511
        %v3513 = vsel %vm791, %v3496, %v3498
        %v3514 = vsel %vm791, %v3498, %v3500
        %v3515 = vsel %vm791, %v3500, %v3502
        %v3516 = vsel %vm791, %v3502, %v3504
        %v3517 = vsel %vm791, %v3504, %v3506
        %v3518 = vsel %vm791, %v3506, %v3508
        %v3519 = vsel %vm791, %v3508, %v3510
        %v3520 = vsel %vm791, %v3510, %v3512
        %v3523 = vsel %vm3232, %v3372, %v3418
        %v3526 = vsel %vm3232, %v3387, %v3435
        %v3529 = vsel %vm3232, %v3388, %v3436
        %v3532 = vsel %vm3232, %v3389, %v3437
        %v3535 = vsel %vm3232, %v3390, %v3438
        %v3538 = vsel %vm3232, %v3391, %v3439
        %v3541 = vsel %vm3232, %v3392, %v3440
        %v3544 = vsel %vm3232, %v3393, %v3441
        %v3547 = vsel %vm3232, %v3386, %v3442
        %v3550 = vsel %vm3232, %v3444, %v3470
        %v3553 = vsel %vm3232, %v3461, %v3487
        %v3556 = vsel %vm3232, %v3462, %v3488
        %v3559 = vsel %vm3232, %v3463, %v3489
        %v3562 = vsel %vm3232, %v3464, %v3490
        %v3565 = vsel %vm3232, %v3465, %v3491
        %v3568 = vsel %vm3232, %v3466, %v3492
        %v3571 = vsel %vm3232, %v3467, %v3493
        %v3574 = vsel %vm3232, %v3468, %v3494
        %s3575 = scalar_lea.vmem [#allocation15], 4
        %v3576 = vld [vmem:[%s3575] sm:$0xf]
        %3613 = vrot.lane.b32.xlu0 %v3235, 11
        %v3614 = vpop.permute.xlu0 %3613
        %3615 = vrot.lane.b32.xlu0 %v3238, 11
        %v3616 = vpop.permute.xlu0 %3615
        %3617 = vrot.lane.b32.xlu0 %v3241, 11
        %v3618 = vpop.permute.xlu0 %3617
        %3619 = vrot.lane.b32.xlu0 %v3244, 11
        %v3620 = vpop.permute.xlu0 %3619
        %3621 = vrot.lane.b32.xlu0 %v3247, 11
        %v3622 = vpop.permute.xlu0 %3621
        %3623 = vrot.lane.b32.xlu0 %v3250, 11
        %v3624 = vpop.permute.xlu0 %3623
        %3625 = vrot.lane.b32.xlu0 %v3253, 11
        %v3626 = vpop.permute.xlu0 %3625
        %3627 = vrot.lane.b32.xlu0 %v3256, 11
        %v3628 = vpop.permute.xlu0 %3627
        %3629 = vrot.lane.b32.xlu0 %v3259, 11
        %v3630 = vpop.permute.xlu0 %3629
        %3631 = vrot.lane.b32.xlu0 %v3262, 11
        %v3632 = vpop.permute.xlu0 %3631
        %3633 = vrot.lane.b32.xlu0 %v3265, 11
        %v3634 = vpop.permute.xlu0 %3633
        %3635 = vrot.lane.b32.xlu0 %v3268, 11
        %v3636 = vpop.permute.xlu0 %3635
        %3637 = vrot.lane.b32.xlu0 %v3271, 11
        %v3638 = vpop.permute.xlu0 %3637
        %3639 = vrot.lane.b32.xlu0 %v3274, 11
        %v3640 = vpop.permute.xlu0 %3639
        %3641 = vrot.lane.b32.xlu0 %v3277, 11
        %v3642 = vpop.permute.xlu0 %3641
        %3643 = vrot.lane.b32.xlu0 %v3280, 11
        %v3644 = vpop.permute.xlu0 %3643
        %3645 = vrot.lane.b32.xlu0 %v3283, 11
        %v3646 = vpop.permute.xlu0 %3645
        %3647 = vrot.lane.b32.xlu0 %v3286, 11
        %v3648 = vpop.permute.xlu0 %3647
        %3649 = vrot.lane.b32.xlu0 %v3523, 11
        %v3650 = vpop.permute.xlu0 %3649
        %3651 = vrot.lane.b32.xlu0 %v3526, 11
        %v3652 = vpop.permute.xlu0 %3651
        %3653 = vrot.lane.b32.xlu0 %v3529, 11
        %v3654 = vpop.permute.xlu0 %3653
        %3655 = vrot.lane.b32.xlu0 %v3532, 11
        %v3656 = vpop.permute.xlu0 %3655
        %3657 = vrot.lane.b32.xlu0 %v3535, 11
        %v3658 = vpop.permute.xlu0 %3657
        %3659 = vrot.lane.b32.xlu0 %v3538, 11
        %v3660 = vpop.permute.xlu0 %3659
        %3661 = vrot.lane.b32.xlu0 %v3541, 11
        %v3662 = vpop.permute.xlu0 %3661
        %3663 = vrot.lane.b32.xlu0 %v3544, 11
        %v3664 = vpop.permute.xlu0 %3663
        %3665 = vrot.lane.b32.xlu0 %v3547, 11
        %v3666 = vpop.permute.xlu0 %3665
        %3667 = vrot.lane.b32.xlu0 %v3550, 11
        %v3668 = vpop.permute.xlu0 %3667
        %3669 = vrot.lane.b32.xlu0 %v3553, 11
        %v3670 = vpop.permute.xlu0 %3669
        %3671 = vrot.lane.b32.xlu0 %v3556, 11
        %v3672 = vpop.permute.xlu0 %3671
        %3673 = vrot.lane.b32.xlu0 %v3559, 11
        %v3674 = vpop.permute.xlu0 %3673
        %3675 = vrot.lane.b32.xlu0 %v3562, 11
        %v3676 = vpop.permute.xlu0 %3675
        %3677 = vrot.lane.b32.xlu0 %v3565, 11
        %v3678 = vpop.permute.xlu0 %3677
        %3679 = vrot.lane.b32.xlu0 %v3568, 11
        %v3680 = vpop.permute.xlu0 %3679
        %3681 = vrot.lane.b32.xlu0 %v3571, 11
        %v3682 = vpop.permute.xlu0 %3681
        %3683 = vrot.lane.b32.xlu0 %v3574, 11
        %v3684 = vpop.permute.xlu0 %3683
        %3685 = vrot.lane.b32.xlu0 %v3496, 11
        %v3686 = vpop.permute.xlu0 %3685
        %3687 = vrot.lane.b32.xlu0 %v3513, 11
        %v3688 = vpop.permute.xlu0 %3687
        %3689 = vrot.lane.b32.xlu0 %v3514, 11
        %v3690 = vpop.permute.xlu0 %3689
        %3691 = vrot.lane.b32.xlu0 %v3515, 11
        %v3692 = vpop.permute.xlu0 %3691
        %3693 = vrot.lane.b32.xlu0 %v3516, 11
        %v3694 = vpop.permute.xlu0 %3693
        %3695 = vrot.lane.b32.xlu0 %v3517, 11
        %v3696 = vpop.permute.xlu0 %3695
        %3697 = vrot.lane.b32.xlu0 %v3518, 11
        %v3698 = vpop.permute.xlu0 %3697
        %3699 = vrot.lane.b32.xlu0 %v3519, 11
        %v3700 = vpop.permute.xlu0 %3699
        %3701 = vrot.lane.b32.xlu0 %v3520, 11
        %v3702 = vpop.permute.xlu0 %3701
        %v3703 = vsel %vm1185, %v3614, %v3616
        %v3704 = vsel %vm1185, %v3616, %v3618
        %v3705 = vsel %vm1185, %v3618, %v3620
        %v3706 = vsel %vm1185, %v3620, %v3622
        %v3707 = vsel %vm1185, %v3622, %v3624
        %v3708 = vsel %vm1185, %v3624, %v3626
        %v3709 = vsel %vm1185, %v3626, %v3628
        %v3710 = vsel %vm1185, %v3628, %v3630
        %v3711 = vsel %vm1185, %v3632, %v3634
        %v3712 = vsel %vm1185, %v3634, %v3636
        %v3713 = vsel %vm1185, %v3636, %v3638
        %v3714 = vsel %vm1185, %v3638, %v3640
        %v3715 = vsel %vm1185, %v3640, %v3642
        %v3716 = vsel %vm1185, %v3642, %v3644
        %v3717 = vsel %vm1185, %v3644, %v3646
        %v3718 = vsel %vm1185, %v3646, %v3648
        %v3719 = vsel %vm1185, %v3650, %v3652
        %v3720 = vsel %vm1185, %v3652, %v3654
        %v3721 = vsel %vm1185, %v3654, %v3656
        %v3722 = vsel %vm1185, %v3656, %v3658
        %v3723 = vsel %vm1185, %v3658, %v3660
        %v3724 = vsel %vm1185, %v3660, %v3662
        %v3725 = vsel %vm1185, %v3662, %v3664
        %v3726 = vsel %vm1185, %v3664, %v3666
        %v3727 = vsel %vm1185, %v3668, %v3670
        %v3728 = vsel %vm1185, %v3670, %v3672
        %v3729 = vsel %vm1185, %v3672, %v3674
        %v3730 = vsel %vm1185, %v3674, %v3676
        %v3731 = vsel %vm1185, %v3676, %v3678
        %v3732 = vsel %vm1185, %v3678, %v3680
        %v3733 = vsel %vm1185, %v3680, %v3682
        %v3734 = vsel %vm1185, %v3682, %v3684
        %v3735 = vsel %vm1185, %v3686, %v3688
        %v3736 = vsel %vm1185, %v3688, %v3690
        %v3737 = vsel %vm1185, %v3690, %v3692
        %v3738 = vsel %vm1185, %v3692, %v3694
        %v3739 = vsel %vm1185, %v3694, %v3696
        %v3740 = vsel %vm1185, %v3696, %v3698
        %v3741 = vsel %vm1185, %v3698, %v3700
        %v3742 = vsel %vm1185, %v3700, %v3702
        %vm3775 = vcmask 588800
        %v3777 = vsel %vm3775, %v3576, 0
        %v3780 = vsel %vm3232, %v3735, 0
        %v3783 = vsel %vm3232, %v3736, 0
        %v3786 = vsel %vm3232, %v3737, 0
        %v3789 = vsel %vm3232, %v3738, 0
        %v3792 = vsel %vm3232, %v3739, 0
        %v3795 = vsel %vm3232, %v3740, 0
        %v3798 = vsel %vm3232, %v3741, 0
        %v3801 = vsel %vm3232, %v3742, 0
        %3803 = vmatprep.subr.bf16.mxu0 %v3704
        %3804 = vmatpush1.bf16.msra.mxu0 %v3703
        %3805 = vmatprep.subr.bf16.mxu0 %v3712
        %3806 = vmatpush1.bf16.msra.mxu0 %v3711
        %3807 = vmatprep.subr.bf16.mxu0 %v3720
        %3808 = vmatpush1.bf16.msra.mxu0 %v3719
        %3809 = vmatprep.subr.bf16.mxu0 %v3728
        %3810 = vmatpush1.bf16.msra.mxu0 %v3727
        %3811 = vmatprep.subr.bf16.mxu0 %v3783
        %3812 = vmatpush1.bf16.msra.mxu0 %v3780
        %3813 = vmatprep.subr.bf16.mxu0 0
        %3814 = vmatpush1.bf16.msra.mxu0 0
        %3815 = vmatprep.subr.bf16.mxu0 0
        %3816 = vmatpush1.bf16.msra.mxu0 0
        %3817 = vmatprep.subr.bf16.mxu0 0
        %3818 = vmatpush1.bf16.msra.mxu0 0
        %3819 = vmatprep.subr.bf16.mxu0 0
        %3820 = vmatpush1.bf16.msra.mxu0 0
        %3821 = vmatprep.subr.bf16.mxu0 0
        %3822 = vmatpush1.bf16.msra.mxu0 0
        %3823 = vmatprep.subr.bf16.mxu0 0
        %3824 = vmatpush1.bf16.msra.mxu0 0
        %3825 = vmatprep.subr.bf16.mxu0 0
        %3826 = vmatpush1.bf16.msra.mxu0 0
        %3827 = vmatprep.subr.bf16.mxu0 0
        %3828 = vmatpush1.bf16.msra.mxu0 0
        %3829 = vmatprep.subr.bf16.mxu0 0
        %3830 = vmatpush1.bf16.msra.mxu0 0
        %3831 = vmatprep.subr.bf16.mxu0 0
        %3832 = vmatpush1.bf16.msra.mxu0 0
        %3833 = vmatprep.subr.bf16.mxu0 0
        %3834 = vmatpush1.bf16.msra.mxu0 0
        %3835 = vmatprep.mubr.bf16.mxu0 0
        %3836 = vmatmul.mubr.bf16.gmra.mrb[0].mxu0 %v3777
        %v3837 = vpop.f32.mrb[0].mxu0
        %v3838 = vadd.f32 0.0, %v3837
        %v3839 = vpop.f32.mrb[0].mxu0
        %v3840 = vadd.f32 0.0, %v3839
        %v3841 = vpop.f32.mrb[0].mxu0
        %v3842 = vpop.f32.mrb[0].mxu0
        %3843 = vdwg.mxu0
        %3844 = vmatprep.subr.bf16.mxu0 %v3706
        %3845 = vmatpush1.bf16.msra.mxu0 %v3705
        %3846 = vmatprep.subr.bf16.mxu0 %v3714
        %3847 = vmatpush1.bf16.msra.mxu0 %v3713
        %3848 = vmatprep.subr.bf16.mxu0 %v3722
        %3849 = vmatpush1.bf16.msra.mxu0 %v3721
        %3850 = vmatprep.subr.bf16.mxu0 %v3730
        %3851 = vmatpush1.bf16.msra.mxu0 %v3729
        %3852 = vmatprep.subr.bf16.mxu0 %v3789
        %3853 = vmatpush1.bf16.msra.mxu0 %v3786
        %3854 = vmatprep.subr.bf16.mxu0 0
        %3855 = vmatpush1.bf16.msra.mxu0 0
        %3856 = vmatprep.subr.bf16.mxu0 0
        %3857 = vmatpush1.bf16.msra.mxu0 0
        %3858 = vmatprep.subr.bf16.mxu0 0
        %3859 = vmatpush1.bf16.msra.mxu0 0
        %3860 = vmatprep.subr.bf16.mxu0 0
        %3861 = vmatpush1.bf16.msra.mxu0 0
        %3862 = vmatprep.subr.bf16.mxu0 0
        %3863 = vmatpush1.bf16.msra.mxu0 0
        %3864 = vmatprep.subr.bf16.mxu0 0
        %3865 = vmatpush1.bf16.msra.mxu0 0
        %3866 = vmatprep.subr.bf16.mxu0 0
        %3867 = vmatpush1.bf16.msra.mxu0 0
        %3868 = vmatprep.subr.bf16.mxu0 0
        %3869 = vmatpush1.bf16.msra.mxu0 0
        %3870 = vmatprep.subr.bf16.mxu0 0
        %3871 = vmatpush1.bf16.msra.mxu0 0
        %3872 = vmatprep.subr.bf16.mxu0 0
        %3873 = vmatpush1.bf16.msra.mxu0 0
        %3874 = vmatprep.subr.bf16.mxu0 0
        %3875 = vmatpush1.bf16.msra.mxu0 0
        %3876 = vmatprep.mubr.bf16.mxu0 0
        %3877 = vmatmul.mubr.bf16.gmra.mrb[0].mxu0 %v3777
        %v3878 = vpop.f32.mrb[0].mxu0
        %v3879 = vadd.f32 0.0, %v3878
        %v3880 = vpop.f32.mrb[0].mxu0
        %v3881 = vadd.f32 0.0, %v3880
        %v3882 = vpop.f32.mrb[0].mxu0
        %v3883 = vpop.f32.mrb[0].mxu0
        %3884 = vdwg.mxu0
        %3885 = vmatprep.subr.bf16.mxu0 %v3708
        %3886 = vmatpush1.bf16.msra.mxu0 %v3707
        %3887 = vmatprep.subr.bf16.mxu0 %v3716
        %3888 = vmatpush1.bf16.msra.mxu0 %v3715
        %3889 = vmatprep.subr.bf16.mxu0 %v3724
        %3890 = vmatpush1.bf16.msra.mxu0 %v3723
        %3891 = vmatprep.subr.bf16.mxu0 %v3732
        %3892 = vmatpush1.bf16.msra.mxu0 %v3731
        %3893 = vmatprep.subr.bf16.mxu0 %v3795
        %3894 = vmatpush1.bf16.msra.mxu0 %v3792
        %3895 = vmatprep.subr.bf16.mxu0 0
        %3896 = vmatpush1.bf16.msra.mxu0 0
        %3897 = vmatprep.subr.bf16.mxu0 0
        %3898 = vmatpush1.bf16.msra.mxu0 0
        %3899 = vmatprep.subr.bf16.mxu0 0
        %3900 = vmatpush1.bf16.msra.mxu0 0
        %3901 = vmatprep.subr.bf16.mxu0 0
        %3902 = vmatpush1.bf16.msra.mxu0 0
        %3903 = vmatprep.subr.bf16.mxu0 0
        %3904 = vmatpush1.bf16.msra.mxu0 0
        %3905 = vmatprep.subr.bf16.mxu0 0
        %3906 = vmatpush1.bf16.msra.mxu0 0
        %3907 = vmatprep.subr.bf16.mxu0 0
        %3908 = vmatpush1.bf16.msra.mxu0 0
        %3909 = vmatprep.subr.bf16.mxu0 0
        %3910 = vmatpush1.bf16.msra.mxu0 0
        %3911 = vmatprep.subr.bf16.mxu0 0
        %3912 = vmatpush1.bf16.msra.mxu0 0
        %3913 = vmatprep.subr.bf16.mxu0 0
        %3914 = vmatpush1.bf16.msra.mxu0 0
        %3915 = vmatprep.subr.bf16.mxu0 0
        %3916 = vmatpush1.bf16.msra.mxu0 0
        %3917 = vmatprep.mubr.bf16.mxu0 0
        %3918 = vmatmul.mubr.bf16.gmra.mrb[0].mxu0 %v3777
        %v3919 = vpop.f32.mrb[0].mxu0
        %v3920 = vadd.f32 0.0, %v3919
        %v3921 = vpop.f32.mrb[0].mxu0
        %v3922 = vadd.f32 0.0, %v3921
        %v3923 = vpop.f32.mrb[0].mxu0
        %v3924 = vpop.f32.mrb[0].mxu0
        %3925 = vdwg.mxu0
        %3926 = vmatprep.subr.bf16.mxu0 %v3710
        %3927 = vmatpush1.bf16.msra.mxu0 %v3709
        %3928 = vmatprep.subr.bf16.mxu0 %v3718
        %3929 = vmatpush1.bf16.msra.mxu0 %v3717
        %3930 = vmatprep.subr.bf16.mxu0 %v3726
        %3931 = vmatpush1.bf16.msra.mxu0 %v3725
        %3932 = vmatprep.subr.bf16.mxu0 %v3734
        %3933 = vmatpush1.bf16.msra.mxu0 %v3733
        %3934 = vmatprep.subr.bf16.mxu0 %v3801
        %3935 = vmatpush1.bf16.msra.mxu0 %v3798
        %3936 = vmatprep.subr.bf16.mxu0 0
        %3937 = vmatpush1.bf16.msra.mxu0 0
        %3938 = vmatprep.subr.bf16.mxu0 0
        %3939 = vmatpush1.bf16.msra.mxu0 0
        %3940 = vmatprep.subr.bf16.mxu0 0
        %3941 = vmatpush1.bf16.msra.mxu0 0
        %3942 = vmatprep.subr.bf16.mxu0 0
        %3943 = vmatpush1.bf16.msra.mxu0 0
        %3944 = vmatprep.subr.bf16.mxu0 0
        %3945 = vmatpush1.bf16.msra.mxu0 0
        %3946 = vmatprep.subr.bf16.mxu0 0
        %3947 = vmatpush1.bf16.msra.mxu0 0
        %3948 = vmatprep.subr.bf16.mxu0 0
        %3949 = vmatpush1.bf16.msra.mxu0 0
        %3950 = vmatprep.subr.bf16.mxu0 0
        %3951 = vmatpush1.bf16.msra.mxu0 0
        %3952 = vmatprep.subr.bf16.mxu0 0
        %3953 = vmatpush1.bf16.msra.mxu0 0
        %3954 = vmatprep.subr.bf16.mxu0 0
        %3955 = vmatpush1.bf16.msra.mxu0 0
        %3956 = vmatprep.subr.bf16.mxu0 0
        %3957 = vmatpush1.bf16.msra.mxu0 0
        %3958 = vmatprep.mubr.bf16.mxu0 0
        %3959 = vmatmul.mubr.bf16.gmra.mrb[0].mxu0 %v3777
        %v3960 = vpop.f32.mrb[0].mxu0
        %v3961 = vadd.f32 0.0, %v3960
        %v3962 = vpop.f32.mrb[0].mxu0
        %v3963 = vadd.f32 0.0, %v3962
        %v3964 = vpop.f32.mrb[0].mxu0
        %v3965 = vpop.f32.mrb[0].mxu0
        %3966 = vdwg.mxu0
        %3985 = vrot.lane.b32.xlu0 %v3235, 111
        %v3986 = vpop.permute.xlu0 %3985
        %3987 = vrot.lane.b32.xlu0 %v3238, 111
        %v3988 = vpop.permute.xlu0 %3987
        %3989 = vrot.lane.b32.xlu0 %v3241, 111
        %v3990 = vpop.permute.xlu0 %3989
        %3991 = vrot.lane.b32.xlu0 %v3244, 111
        %v3992 = vpop.permute.xlu0 %3991
        %3993 = vrot.lane.b32.xlu0 %v3247, 111
        %v3994 = vpop.permute.xlu0 %3993
        %3995 = vrot.lane.b32.xlu0 %v3250, 111
        %v3996 = vpop.permute.xlu0 %3995
        %3997 = vrot.lane.b32.xlu0 %v3253, 111
        %v3998 = vpop.permute.xlu0 %3997
        %3999 = vrot.lane.b32.xlu0 %v3256, 111
        %v4000 = vpop.permute.xlu0 %3999
        %4001 = vrot.lane.b32.xlu0 %v3259, 111
        %v4002 = vpop.permute.xlu0 %4001
        %4003 = vrot.lane.b32.xlu0 %v3262, 111
        %v4004 = vpop.permute.xlu0 %4003
        %4005 = vrot.lane.b32.xlu0 %v3265, 111
        %v4006 = vpop.permute.xlu0 %4005
        %4007 = vrot.lane.b32.xlu0 %v3268, 111
        %v4008 = vpop.permute.xlu0 %4007
        %4009 = vrot.lane.b32.xlu0 %v3271, 111
        %v4010 = vpop.permute.xlu0 %4009
        %4011 = vrot.lane.b32.xlu0 %v3274, 111
        %v4012 = vpop.permute.xlu0 %4011
        %4013 = vrot.lane.b32.xlu0 %v3277, 111
        %v4014 = vpop.permute.xlu0 %4013
        %4015 = vrot.lane.b32.xlu0 %v3280, 111
        %v4016 = vpop.permute.xlu0 %4015
        %4017 = vrot.lane.b32.xlu0 %v3283, 111
        %v4018 = vpop.permute.xlu0 %4017
        %4019 = vrot.lane.b32.xlu0 %v3286, 111
        %v4020 = vpop.permute.xlu0 %4019
        %4021 = vrot.lane.b32.xlu0 %v3289, 111
        %v4022 = vpop.permute.xlu0 %4021
        %4023 = vrot.lane.b32.xlu0 %v3292, 111
        %v4024 = vpop.permute.xlu0 %4023
        %4025 = vrot.lane.b32.xlu0 %v3295, 111
        %v4026 = vpop.permute.xlu0 %4025
        %4027 = vrot.lane.b32.xlu0 %v3298, 111
        %v4028 = vpop.permute.xlu0 %4027
        %4029 = vrot.lane.b32.xlu0 %v3301, 111
        %v4030 = vpop.permute.xlu0 %4029
        %4031 = vrot.lane.b32.xlu0 %v3304, 111
        %v4032 = vpop.permute.xlu0 %4031
        %4033 = vrot.lane.b32.xlu0 %v3307, 111
        %v4034 = vpop.permute.xlu0 %4033
        %4035 = vrot.lane.b32.xlu0 %v3310, 111
        %v4036 = vpop.permute.xlu0 %4035
        %4037 = vrot.lane.b32.xlu0 %v3313, 111
        %v4038 = vpop.permute.xlu0 %4037
        %4039 = vrot.lane.b32.xlu0 %v3316, 111
        %v4040 = vpop.permute.xlu0 %4039
        %4041 = vrot.lane.b32.xlu0 %v3319, 111
        %v4042 = vpop.permute.xlu0 %4041
        %4043 = vrot.lane.b32.xlu0 %v3322, 111
        %v4044 = vpop.permute.xlu0 %4043
        %4045 = vrot.lane.b32.xlu0 %v3325, 111
        %v4046 = vpop.permute.xlu0 %4045
        %4047 = vrot.lane.b32.xlu0 %v3328, 111
        %v4048 = vpop.permute.xlu0 %4047
        %4049 = vrot.lane.b32.xlu0 %v3331, 111
        %v4050 = vpop.permute.xlu0 %4049
        %4051 = vrot.lane.b32.xlu0 %v3334, 111
        %v4052 = vpop.permute.xlu0 %4051
        %4053 = vrot.lane.b32.xlu0 %v3337, 111
        %v4054 = vpop.permute.xlu0 %4053
        %4055 = vrot.lane.b32.xlu0 %v3340, 111
        %v4056 = vpop.permute.xlu0 %4055
        %4057 = vrot.lane.b32.xlu0 %v3224, 111
        %v4058 = vpop.permute.xlu0 %4057
        %4059 = vrot.lane.b32.xlu0 %v3225, 111
        %v4060 = vpop.permute.xlu0 %4059
        %4061 = vrot.lane.b32.xlu0 %v3226, 111
        %v4062 = vpop.permute.xlu0 %4061
        %4063 = vrot.lane.b32.xlu0 %v3227, 111
        %v4064 = vpop.permute.xlu0 %4063
        %4065 = vrot.lane.b32.xlu0 %v3228, 111
        %v4066 = vpop.permute.xlu0 %4065
        %4067 = vrot.lane.b32.xlu0 %v3229, 111
        %v4068 = vpop.permute.xlu0 %4067
        %4069 = vrot.lane.b32.xlu0 %v3230, 111
        %v4070 = vpop.permute.xlu0 %4069
        %4071 = vrot.lane.b32.xlu0 %v3231, 111
        %v4072 = vpop.permute.xlu0 %4071
        %4073 = vrot.lane.b32.xlu0 %v3223, 111
        %v4074 = vpop.permute.xlu0 %4073
        %v4075 = vsel %vm1666, %v3986, %v3988
        %v4076 = vsel %vm1666, %v3988, %v3990
        %v4077 = vsel %vm1666, %v3990, %v3992
        %v4078 = vsel %vm1666, %v3992, %v3994
        %v4079 = vsel %vm1666, %v3994, %v3996
        %v4080 = vsel %vm1666, %v3996, %v3998
        %v4081 = vsel %vm1666, %v3998, %v4000
        %v4082 = vsel %vm1666, %v4000, %v4002
        %v4083 = vsel %vm1666, %v4004, %v4006
        %v4084 = vsel %vm1666, %v4006, %v4008
        %v4085 = vsel %vm1666, %v4008, %v4010
        %v4086 = vsel %vm1666, %v4010, %v4012
        %v4087 = vsel %vm1666, %v4012, %v4014
        %v4088 = vsel %vm1666, %v4014, %v4016
        %v4089 = vsel %vm1666, %v4016, %v4018
        %v4090 = vsel %vm1666, %v4018, %v4020
        %v4091 = vsel %vm1666, %v4022, %v4024
        %v4092 = vsel %vm1666, %v4024, %v4026
        %v4093 = vsel %vm1666, %v4026, %v4028
        %v4094 = vsel %vm1666, %v4028, %v4030
        %v4095 = vsel %vm1666, %v4030, %v4032
        %v4096 = vsel %vm1666, %v4032, %v4034
        %v4097 = vsel %vm1666, %v4034, %v4036
        %v4098 = vsel %vm1666, %v4036, %v4038
        %v4099 = vsel %vm1666, %v4040, %v4042
        %v4100 = vsel %vm1666, %v4042, %v4044
        %v4101 = vsel %vm1666, %v4044, %v4046
        %v4102 = vsel %vm1666, %v4046, %v4048
        %v4103 = vsel %vm1666, %v4048, %v4050
        %v4104 = vsel %vm1666, %v4050, %v4052
        %v4105 = vsel %vm1666, %v4052, %v4054
        %v4106 = vsel %vm1666, %v4054, %v4056
        %v4107 = vsel %vm1666, %v4058, %v4060
        %v4108 = vsel %vm1666, %v4060, %v4062
        %v4109 = vsel %vm1666, %v4062, %v4064
        %v4110 = vsel %vm1666, %v4064, %v4066
        %v4111 = vsel %vm1666, %v4066, %v4068
        %v4112 = vsel %vm1666, %v4068, %v4070
        %v4113 = vsel %vm1666, %v4070, %v4072
        %v4114 = vsel %vm1666, %v4072, %v4074
        %v4148 = vsel %vm3775, %v3341, 0
        %v4151 = vsel %vm3232, %v4107, 0
        %v4154 = vsel %vm3232, %v4108, 0
        %v4157 = vsel %vm3232, %v4109, 0
        %v4160 = vsel %vm3232, %v4110, 0
        %v4163 = vsel %vm3232, %v4111, 0
        %v4166 = vsel %vm3232, %v4112, 0
        %v4169 = vsel %vm3232, %v4113, 0
        %v4172 = vsel %vm3232, %v4114, 0
        %4174 = vmatprep.subr.bf16.mxu0 %v4076
        %4175 = vmatpush1.bf16.msra.mxu0 %v4075
        %4176 = vmatprep.subr.bf16.mxu0 %v4084
        %4177 = vmatpush1.bf16.msra.mxu0 %v4083
        %4178 = vmatprep.subr.bf16.mxu0 %v4092
        %4179 = vmatpush1.bf16.msra.mxu0 %v4091
        %4180 = vmatprep.subr.bf16.mxu0 %v4100
        %4181 = vmatpush1.bf16.msra.mxu0 %v4099
        %4182 = vmatprep.subr.bf16.mxu0 %v4154
        %4183 = vmatpush1.bf16.msra.mxu0 %v4151
        %4184 = vmatprep.subr.bf16.mxu0 0
        %4185 = vmatpush1.bf16.msra.mxu0 0
        %4186 = vmatprep.subr.bf16.mxu0 0
        %4187 = vmatpush1.bf16.msra.mxu0 0
        %4188 = vmatprep.subr.bf16.mxu0 0
        %4189 = vmatpush1.bf16.msra.mxu0 0
        %4190 = vmatprep.subr.bf16.mxu0 0
        %4191 = vmatpush1.bf16.msra.mxu0 0
        %4192 = vmatprep.subr.bf16.mxu0 0
        %4193 = vmatpush1.bf16.msra.mxu0 0
        %4194 = vmatprep.subr.bf16.mxu0 0
        %4195 = vmatpush1.bf16.msra.mxu0 0
        %4196 = vmatprep.subr.bf16.mxu0 0
        %4197 = vmatpush1.bf16.msra.mxu0 0
        %4198 = vmatprep.subr.bf16.mxu0 0
        %4199 = vmatpush1.bf16.msra.mxu0 0
        %4200 = vmatprep.subr.bf16.mxu0 0
        %4201 = vmatpush1.bf16.msra.mxu0 0
        %4202 = vmatprep.subr.bf16.mxu0 0
        %4203 = vmatpush1.bf16.msra.mxu0 0
        %4204 = vmatprep.subr.bf16.mxu0 0
        %4205 = vmatpush1.bf16.msra.mxu0 0
        %4206 = vmatprep.mubr.bf16.mxu0 0
        %4207 = vmatmul.mubr.bf16.gmra.mrb[0].mxu0 %v4148
        %v4208 = vpop.f32.mrb[0].mxu0
        %v4209 = vadd.f32 %v3838, %v4208
        %v4210 = vpop.f32.mrb[0].mxu0
        %v4211 = vadd.f32 %v3840, %v4210
        %v4212 = vpop.f32.mrb[0].mxu0
        %v4213 = vpop.f32.mrb[0].mxu0
        %4214 = vdwg.mxu0
        %4215 = vmatprep.subr.bf16.mxu0 %v4078
        %4216 = vmatpush1.bf16.msra.mxu0 %v4077
        %4217 = vmatprep.subr.bf16.mxu0 %v4086
        %4218 = vmatpush1.bf16.msra.mxu0 %v4085
        %4219 = vmatprep.subr.bf16.mxu0 %v4094
        %4220 = vmatpush1.bf16.msra.mxu0 %v4093
        %4221 = vmatprep.subr.bf16.mxu0 %v4102
        %4222 = vmatpush1.bf16.msra.mxu0 %v4101
        %4223 = vmatprep.subr.bf16.mxu0 %v4160
        %4224 = vmatpush1.bf16.msra.mxu0 %v4157
        %4225 = vmatprep.subr.bf16.mxu0 0
        %4226 = vmatpush1.bf16.msra.mxu0 0
        %4227 = vmatprep.subr.bf16.mxu0 0
        %4228 = vmatpush1.bf16.msra.mxu0 0
        %4229 = vmatprep.subr.bf16.mxu0 0
        %4230 = vmatpush1.bf16.msra.mxu0 0
        %4231 = vmatprep.subr.bf16.mxu0 0
        %4232 = vmatpush1.bf16.msra.mxu0 0
        %4233 = vmatprep.subr.bf16.mxu0 0
        %4234 = vmatpush1.bf16.msra.mxu0 0
        %4235 = vmatprep.subr.bf16.mxu0 0
        %4236 = vmatpush1.bf16.msra.mxu0 0
        %4237 = vmatprep.subr.bf16.mxu0 0
        %4238 = vmatpush1.bf16.msra.mxu0 0
        %4239 = vmatprep.subr.bf16.mxu0 0
        %4240 = vmatpush1.bf16.msra.mxu0 0
        %4241 = vmatprep.subr.bf16.mxu0 0
        %4242 = vmatpush1.bf16.msra.mxu0 0
        %4243 = vmatprep.subr.bf16.mxu0 0
        %4244 = vmatpush1.bf16.msra.mxu0 0
        %4245 = vmatprep.subr.bf16.mxu0 0
        %4246 = vmatpush1.bf16.msra.mxu0 0
        %4247 = vmatprep.mubr.bf16.mxu0 0
        %4248 = vmatmul.mubr.bf16.gmra.mrb[0].mxu0 %v4148
        %v4249 = vpop.f32.mrb[0].mxu0
        %v4250 = vadd.f32 %v3879, %v4249
        %v4251 = vpop.f32.mrb[0].mxu0
        %v4252 = vadd.f32 %v3881, %v4251
        %v4253 = vpop.f32.mrb[0].mxu0
        %v4254 = vpop.f32.mrb[0].mxu0
        %4255 = vdwg.mxu0
        %4256 = vmatprep.subr.bf16.mxu0 %v4080
        %4257 = vmatpush1.bf16.msra.mxu0 %v4079
        %4258 = vmatprep.subr.bf16.mxu0 %v4088
        %4259 = vmatpush1.bf16.msra.mxu0 %v4087
        %4260 = vmatprep.subr.bf16.mxu0 %v4096
        %4261 = vmatpush1.bf16.msra.mxu0 %v4095
        %4262 = vmatprep.subr.bf16.mxu0 %v4104
        %4263 = vmatpush1.bf16.msra.mxu0 %v4103
        %4264 = vmatprep.subr.bf16.mxu0 %v4166
        %4265 = vmatpush1.bf16.msra.mxu0 %v4163
        %4266 = vmatprep.subr.bf16.mxu0 0
        %4267 = vmatpush1.bf16.msra.mxu0 0
        %4268 = vmatprep.subr.bf16.mxu0 0
        %4269 = vmatpush1.bf16.msra.mxu0 0
        %4270 = vmatprep.subr.bf16.mxu0 0
        %4271 = vmatpush1.bf16.msra.mxu0 0
        %4272 = vmatprep.subr.bf16.mxu0 0
        %4273 = vmatpush1.bf16.msra.mxu0 0
        %4274 = vmatprep.subr.bf16.mxu0 0
        %4275 = vmatpush1.bf16.msra.mxu0 0
        %4276 = vmatprep.subr.bf16.mxu0 0
        %4277 = vmatpush1.bf16.msra.mxu0 0
        %4278 = vmatprep.subr.bf16.mxu0 0
        %4279 = vmatpush1.bf16.msra.mxu0 0
        %4280 = vmatprep.subr.bf16.mxu0 0
        %4281 = vmatpush1.bf16.msra.mxu0 0
        %4282 = vmatprep.subr.bf16.mxu0 0
        %4283 = vmatpush1.bf16.msra.mxu0 0
        %4284 = vmatprep.subr.bf16.mxu0 0
        %4285 = vmatpush1.bf16.msra.mxu0 0
        %4286 = vmatprep.subr.bf16.mxu0 0
        %4287 = vmatpush1.bf16.msra.mxu0 0
        %4288 = vmatprep.mubr.bf16.mxu0 0
        %4289 = vmatmul.mubr.bf16.gmra.mrb[0].mxu0 %v4148
        %v4290 = vpop.f32.mrb[0].mxu0
        %v4291 = vadd.f32 %v3920, %v4290
        %v4292 = vpop.f32.mrb[0].mxu0
        %v4293 = vadd.f32 %v3922, %v4292
        %v4294 = vpop.f32.mrb[0].mxu0
        %v4295 = vpop.f32.mrb[0].mxu0
        %4296 = vdwg.mxu0
        %4297 = vmatprep.subr.bf16.mxu0 %v4082
        %4298 = vmatpush1.bf16.msra.mxu0 %v4081
        %4299 = vmatprep.subr.bf16.mxu0 %v4090
        %4300 = vmatpush1.bf16.msra.mxu0 %v4089
        %4301 = vmatprep.subr.bf16.mxu0 %v4098
        %4302 = vmatpush1.bf16.msra.mxu0 %v4097
        %4303 = vmatprep.subr.bf16.mxu0 %v4106
        %4304 = vmatpush1.bf16.msra.mxu0 %v4105
        %4305 = vmatprep.subr.bf16.mxu0 %v4172
        %4306 = vmatpush1.bf16.msra.mxu0 %v4169
        %4307 = vmatprep.subr.bf16.mxu0 0
        %4308 = vmatpush1.bf16.msra.mxu0 0
        %4309 = vmatprep.subr.bf16.mxu0 0
        %4310 = vmatpush1.bf16.msra.mxu0 0
        %4311 = vmatprep.subr.bf16.mxu0 0
        %4312 = vmatpush1.bf16.msra.mxu0 0
        %4313 = vmatprep.subr.bf16.mxu0 0
        %4314 = vmatpush1.bf16.msra.mxu0 0
        %4315 = vmatprep.subr.bf16.mxu0 0
        %4316 = vmatpush1.bf16.msra.mxu0 0
        %4317 = vmatprep.subr.bf16.mxu0 0
        %4318 = vmatpush1.bf16.msra.mxu0 0
        %4319 = vmatprep.subr.bf16.mxu0 0
        %4320 = vmatpush1.bf16.msra.mxu0 0
        %4321 = vmatprep.subr.bf16.mxu0 0
        %4322 = vmatpush1.bf16.msra.mxu0 0
        %4323 = vmatprep.subr.bf16.mxu0 0
        %4324 = vmatpush1.bf16.msra.mxu0 0
        %4325 = vmatprep.subr.bf16.mxu0 0
        %4326 = vmatpush1.bf16.msra.mxu0 0
        %4327 = vmatprep.subr.bf16.mxu0 0
        %4328 = vmatpush1.bf16.msra.mxu0 0
        %4329 = vmatprep.mubr.bf16.mxu0 0
        %4330 = vmatmul.mubr.bf16.gmra.mrb[0].mxu0 %v4148
        %v4331 = vpop.f32.mrb[0].mxu0
        %v4332 = vadd.f32 %v3961, %v4331
        %v4333 = vpop.f32.mrb[0].mxu0
        %v4334 = vadd.f32 %v3963, %v4333
        %v4335 = vpop.f32.mrb[0].mxu0
        %v4336 = vpop.f32.mrb[0].mxu0
        %4337 = vdwg.mxu0
        %4338 = vrot.lane.b32.xlu0 %v3408, 127
        %v4339 = vpop.permute.xlu0 %4338
        %4340 = vrot.lane.b32.xlu0 %v3409, 127
        %v4341 = vpop.permute.xlu0 %4340
        %4342 = vrot.lane.b32.xlu0 %v3410, 127
        %v4343 = vpop.permute.xlu0 %4342
        %4344 = vrot.lane.b32.xlu0 %v3411, 127
        %v4345 = vpop.permute.xlu0 %4344
        %4346 = vrot.lane.b32.xlu0 %v3412, 127
        %v4347 = vpop.permute.xlu0 %4346
        %4348 = vrot.lane.b32.xlu0 %v3413, 127
        %v4349 = vpop.permute.xlu0 %4348
        %4350 = vrot.lane.b32.xlu0 %v3414, 127
        %v4351 = vpop.permute.xlu0 %4350
        %4352 = vrot.lane.b32.xlu0 %v3415, 127
        %v4353 = vpop.permute.xlu0 %4352
        %4354 = vrot.lane.b32.xlu0 %v3416, 127
        %v4355 = vpop.permute.xlu0 %4354
        %v4356 = vsel %vm602, %v4339, %v4341
        %v4357 = vsel %vm602, %v4341, %v4343
        %v4358 = vsel %vm602, %v4343, %v4345
        %v4359 = vsel %vm602, %v4345, %v4347
        %v4360 = vsel %vm602, %v4347, %v4349
        %v4361 = vsel %vm602, %v4349, %v4351
        %v4362 = vsel %vm602, %v4351, %v4353
        %v4363 = vsel %vm602, %v4353, %v4355
        %4364 = vrot.lane.b32.xlu0 %v3408, 126
        %v4365 = vpop.permute.xlu0 %4364
        %4366 = vrot.lane.b32.xlu0 %v3409, 126
        %v4367 = vpop.permute.xlu0 %4366
        %4368 = vrot.lane.b32.xlu0 %v3410, 126
        %v4369 = vpop.permute.xlu0 %4368
        %4370 = vrot.lane.b32.xlu0 %v3411, 126
        %v4371 = vpop.permute.xlu0 %4370
        %4372 = vrot.lane.b32.xlu0 %v3412, 126
        %v4373 = vpop.permute.xlu0 %4372
        %4374 = vrot.lane.b32.xlu0 %v3413, 126
        %v4375 = vpop.permute.xlu0 %4374
        %4376 = vrot.lane.b32.xlu0 %v3414, 126
        %v4377 = vpop.permute.xlu0 %4376
        %4378 = vrot.lane.b32.xlu0 %v3415, 126
        %v4379 = vpop.permute.xlu0 %4378
        %4380 = vrot.lane.b32.xlu0 %v3416, 126
        %v4381 = vpop.permute.xlu0 %4380
        %v4382 = vsel %vm629, %v4365, %v4367
        %v4383 = vsel %vm629, %v4367, %v4369
        %v4384 = vsel %vm629, %v4369, %v4371
        %v4385 = vsel %vm629, %v4371, %v4373
        %v4386 = vsel %vm629, %v4373, %v4375
        %v4387 = vsel %vm629, %v4375, %v4377
        %v4388 = vsel %vm629, %v4377, %v4379
        %v4389 = vsel %vm629, %v4379, %v4381
        %4390 = vrot.lane.b32.xlu0 %v3408, 118
        %v4391 = vpop.permute.xlu0 %4390
        %4392 = vrot.lane.b32.xlu0 %v3409, 118
        %v4393 = vpop.permute.xlu0 %4392
        %4394 = vrot.lane.b32.xlu0 %v3410, 118
        %v4395 = vpop.permute.xlu0 %4394
        %4396 = vrot.lane.b32.xlu0 %v3411, 118
        %v4397 = vpop.permute.xlu0 %4396
        %4398 = vrot.lane.b32.xlu0 %v3412, 118
        %v4399 = vpop.permute.xlu0 %4398
        %4400 = vrot.lane.b32.xlu0 %v3413, 118
        %v4401 = vpop.permute.xlu0 %4400
        %4402 = vrot.lane.b32.xlu0 %v3414, 118
        %v4403 = vpop.permute.xlu0 %4402
        %4404 = vrot.lane.b32.xlu0 %v3415, 118
        %v4405 = vpop.permute.xlu0 %4404
        %4406 = vrot.lane.b32.xlu0 %v3416, 118
        %v4407 = vpop.permute.xlu0 %4406
        %v4408 = vsel %vm656, %v4391, %v4393
        %v4409 = vsel %vm656, %v4393, %v4395
        %v4410 = vsel %vm656, %v4395, %v4397
        %v4411 = vsel %vm656, %v4397, %v4399
        %v4412 = vsel %vm656, %v4399, %v4401
        %v4413 = vsel %vm656, %v4401, %v4403
        %v4414 = vsel %vm656, %v4403, %v4405
        %v4415 = vsel %vm656, %v4405, %v4407
        %4416 = vrot.lane.b32.xlu0 %v3408, 117
        %v4417 = vpop.permute.xlu0 %4416
        %4418 = vrot.lane.b32.xlu0 %v3409, 117
        %v4419 = vpop.permute.xlu0 %4418
        %4420 = vrot.lane.b32.xlu0 %v3410, 117
        %v4421 = vpop.permute.xlu0 %4420
        %4422 = vrot.lane.b32.xlu0 %v3411, 117
        %v4423 = vpop.permute.xlu0 %4422
        %4424 = vrot.lane.b32.xlu0 %v3412, 117
        %v4425 = vpop.permute.xlu0 %4424
        %4426 = vrot.lane.b32.xlu0 %v3413, 117
        %v4427 = vpop.permute.xlu0 %4426
        %4428 = vrot.lane.b32.xlu0 %v3414, 117
        %v4429 = vpop.permute.xlu0 %4428
        %4430 = vrot.lane.b32.xlu0 %v3415, 117
        %v4431 = vpop.permute.xlu0 %4430
        %4432 = vrot.lane.b32.xlu0 %v3416, 117
        %v4433 = vpop.permute.xlu0 %4432
        %v4434 = vsel %vm683, %v4417, %v4419
        %v4435 = vsel %vm683, %v4419, %v4421
        %v4436 = vsel %vm683, %v4421, %v4423
        %v4437 = vsel %vm683, %v4423, %v4425
        %v4438 = vsel %vm683, %v4425, %v4427
        %v4439 = vsel %vm683, %v4427, %v4429
        %v4440 = vsel %vm683, %v4429, %v4431
        %v4441 = vsel %vm683, %v4431, %v4433
        %v4444 = vsel %vm3232, %v3408, %v4356
        %v4447 = vsel %vm3232, %v3409, %v4357
        %v4450 = vsel %vm3232, %v3410, %v4358
        %v4453 = vsel %vm3232, %v3411, %v4359
        %v4456 = vsel %vm3232, %v3412, %v4360
        %v4459 = vsel %vm3232, %v3413, %v4361
        %v4462 = vsel %vm3232, %v3414, %v4362
        %v4465 = vsel %vm3232, %v3415, %v4363
        %v4468 = vsel %vm3232, %v3416, %v4355
        %v4471 = vsel %vm3232, %v4382, %v4408
        %v4474 = vsel %vm3232, %v4383, %v4409
        %v4477 = vsel %vm3232, %v4384, %v4410
        %v4480 = vsel %vm3232, %v4385, %v4411
        %v4483 = vsel %vm3232, %v4386, %v4412
        %v4486 = vsel %vm3232, %v4387, %v4413
        %v4489 = vsel %vm3232, %v4388, %v4414
        %v4492 = vsel %vm3232, %v4389, %v4415
        %v4495 = vsel %vm3232, %v4381, %v4407
        %v4497 = vsel %vm3232, %v4434, %v3435
        %v4499 = vsel %vm3232, %v4435, %v3436
        %v4501 = vsel %vm3232, %v4436, %v3437
        %v4503 = vsel %vm3232, %v4437, %v3438
        %v4505 = vsel %vm3232, %v4438, %v3439
        %v4507 = vsel %vm3232, %v4439, %v3440
        %v4509 = vsel %vm3232, %v4440, %v3441
        %v4511 = vsel %vm3232, %v4441, %v3442
        %v4514 = vsel %vm3232, %v4433, %v3434
        %v4517 = vsel %vm3232, %v3460, %v3486
        %s4518 = scalar_lea.vmem [#allocation15], 8
        %v4519 = vld [vmem:[%s4518] sm:$0xf]
        %4548 = vrot.lane.b32.xlu0 %v4444, 39
        %v4549 = vpop.permute.xlu0 %4548
        %4550 = vrot.lane.b32.xlu0 %v4447, 39
        %v4551 = vpop.permute.xlu0 %4550
        %4552 = vrot.lane.b32.xlu0 %v4450, 39
        %v4553 = vpop.permute.xlu0 %4552
        %4554 = vrot.lane.b32.xlu0 %v4453, 39
        %v4555 = vpop.permute.xlu0 %4554
        %4556 = vrot.lane.b32.xlu0 %v4456, 39
        %v4557 = vpop.permute.xlu0 %4556
        %4558 = vrot.lane.b32.xlu0 %v4459, 39
        %v4559 = vpop.permute.xlu0 %4558
        %4560 = vrot.lane.b32.xlu0 %v4462, 39
        %v4561 = vpop.permute.xlu0 %4560
        %4562 = vrot.lane.b32.xlu0 %v4465, 39
        %v4563 = vpop.permute.xlu0 %4562
        %4564 = vrot.lane.b32.xlu0 %v4468, 39
        %v4565 = vpop.permute.xlu0 %4564
        %4566 = vrot.lane.b32.xlu0 %v4471, 39
        %v4567 = vpop.permute.xlu0 %4566
        %4568 = vrot.lane.b32.xlu0 %v4474, 39
        %v4569 = vpop.permute.xlu0 %4568
        %4570 = vrot.lane.b32.xlu0 %v4477, 39
        %v4571 = vpop.permute.xlu0 %4570
        %4572 = vrot.lane.b32.xlu0 %v4480, 39
        %v4573 = vpop.permute.xlu0 %4572
        %4574 = vrot.lane.b32.xlu0 %v4483, 39
        %v4575 = vpop.permute.xlu0 %4574
        %4576 = vrot.lane.b32.xlu0 %v4486, 39
        %v4577 = vpop.permute.xlu0 %4576
        %4578 = vrot.lane.b32.xlu0 %v4489, 39
        %v4579 = vpop.permute.xlu0 %4578
        %4580 = vrot.lane.b32.xlu0 %v4492, 39
        %v4581 = vpop.permute.xlu0 %4580
        %4582 = vrot.lane.b32.xlu0 %v4495, 39
        %v4583 = vpop.permute.xlu0 %4582
        %4584 = vrot.lane.b32.xlu0 %v4497, 39
        %v4585 = vpop.permute.xlu0 %4584
        %4586 = vrot.lane.b32.xlu0 %v4499, 39
        %v4587 = vpop.permute.xlu0 %4586
        %4588 = vrot.lane.b32.xlu0 %v4501, 39
        %v4589 = vpop.permute.xlu0 %4588
        %4590 = vrot.lane.b32.xlu0 %v4503, 39
        %v4591 = vpop.permute.xlu0 %4590
        %4592 = vrot.lane.b32.xlu0 %v4505, 39
        %v4593 = vpop.permute.xlu0 %4592
        %4594 = vrot.lane.b32.xlu0 %v4507, 39
        %v4595 = vpop.permute.xlu0 %4594
        %4596 = vrot.lane.b32.xlu0 %v4509, 39
        %v4597 = vpop.permute.xlu0 %4596
        %4598 = vrot.lane.b32.xlu0 %v4511, 39
        %v4599 = vpop.permute.xlu0 %4598
        %4600 = vrot.lane.b32.xlu0 %v4514, 39
        %v4601 = vpop.permute.xlu0 %4600
        %4602 = vrot.lane.b32.xlu0 %v3553, 39
        %v4603 = vpop.permute.xlu0 %4602
        %4604 = vrot.lane.b32.xlu0 %v3556, 39
        %v4605 = vpop.permute.xlu0 %4604
        %4606 = vrot.lane.b32.xlu0 %v3559, 39
        %v4607 = vpop.permute.xlu0 %4606
        %4608 = vrot.lane.b32.xlu0 %v3562, 39
        %v4609 = vpop.permute.xlu0 %4608
        %4610 = vrot.lane.b32.xlu0 %v3565, 39
        %v4611 = vpop.permute.xlu0 %4610
        %4612 = vrot.lane.b32.xlu0 %v3568, 39
        %v4613 = vpop.permute.xlu0 %4612
        %4614 = vrot.lane.b32.xlu0 %v3571, 39
        %v4615 = vpop.permute.xlu0 %4614
        %4616 = vrot.lane.b32.xlu0 %v3574, 39
        %v4617 = vpop.permute.xlu0 %4616
        %4618 = vrot.lane.b32.xlu0 %v4517, 39
        %v4619 = vpop.permute.xlu0 %4618
        %4620 = vrot.lane.b32.xlu0 %v3513, 39
        %v4621 = vpop.permute.xlu0 %4620
        %4622 = vrot.lane.b32.xlu0 %v3514, 39
        %v4623 = vpop.permute.xlu0 %4622
        %4624 = vrot.lane.b32.xlu0 %v3515, 39
        %v4625 = vpop.permute.xlu0 %4624
        %4626 = vrot.lane.b32.xlu0 %v3516, 39
        %v4627 = vpop.permute.xlu0 %4626
        %4628 = vrot.lane.b32.xlu0 %v3517, 39
        %v4629 = vpop.permute.xlu0 %4628
        %4630 = vrot.lane.b32.xlu0 %v3518, 39
        %v4631 = vpop.permute.xlu0 %4630
        %4632 = vrot.lane.b32.xlu0 %v3519, 39
        %v4633 = vpop.permute.xlu0 %4632
        %4634 = vrot.lane.b32.xlu0 %v3520, 39
        %v4635 = vpop.permute.xlu0 %4634
        %4636 = vrot.lane.b32.xlu0 %v3512, 39
        %v4637 = vpop.permute.xlu0 %4636
        %v4638 = vsel %vm2252, %v4549, %v4551
        %v4639 = vsel %vm2252, %v4551, %v4553
        %v4640 = vsel %vm2252, %v4553, %v4555
        %v4641 = vsel %vm2252, %v4555, %v4557
        %v4642 = vsel %vm2252, %v4557, %v4559
        %v4643 = vsel %vm2252, %v4559, %v4561
        %v4644 = vsel %vm2252, %v4561, %v4563
        %v4645 = vsel %vm2252, %v4563, %v4565
        %v4646 = vsel %vm2252, %v4567, %v4569
        %v4647 = vsel %vm2252, %v4569, %v4571
        %v4648 = vsel %vm2252, %v4571, %v4573
        %v4649 = vsel %vm2252, %v4573, %v4575
        %v4650 = vsel %vm2252, %v4575, %v4577
        %v4651 = vsel %vm2252, %v4577, %v4579
        %v4652 = vsel %vm2252, %v4579, %v4581
        %v4653 = vsel %vm2252, %v4581, %v4583
        %v4654 = vsel %vm2252, %v4585, %v4587
        %v4655 = vsel %vm2252, %v4587, %v4589
        %v4656 = vsel %vm2252, %v4589, %v4591
        %v4657 = vsel %vm2252, %v4591, %v4593
        %v4658 = vsel %vm2252, %v4593, %v4595
        %v4659 = vsel %vm2252, %v4595, %v4597
        %v4660 = vsel %vm2252, %v4597, %v4599
        %v4661 = vsel %vm2252, %v4599, %v4601
        %v4662 = vsel %vm2252, %v4603, %v4605
        %v4663 = vsel %vm2252, %v4605, %v4607
        %v4664 = vsel %vm2252, %v4607, %v4609
        %v4665 = vsel %vm2252, %v4609, %v4611
        %v4666 = vsel %vm2252, %v4611, %v4613
        %v4667 = vsel %vm2252, %v4613, %v4615
        %v4668 = vsel %vm2252, %v4615, %v4617
        %v4669 = vsel %vm2252, %v4617, %v4619
        %v4670 = vsel %vm2252, %v4621, %v4623
        %v4671 = vsel %vm2252, %v4623, %v4625
        %v4672 = vsel %vm2252, %v4625, %v4627
        %v4673 = vsel %vm2252, %v4627, %v4629
        %v4674 = vsel %vm2252, %v4629, %v4631
        %v4675 = vsel %vm2252, %v4631, %v4633
        %v4676 = vsel %vm2252, %v4633, %v4635
        %v4677 = vsel %vm2252, %v4635, %v4637
        %v4711 = vsel %vm3775, %v4519, 0
        %v4714 = vsel %vm3232, %v4670, 0
        %v4717 = vsel %vm3232, %v4671, 0
        %v4720 = vsel %vm3232, %v4672, 0
        %v4723 = vsel %vm3232, %v4673, 0
        %v4726 = vsel %vm3232, %v4674, 0
        %v4729 = vsel %vm3232, %v4675, 0
        %v4732 = vsel %vm3232, %v4676, 0
        %v4735 = vsel %vm3232, %v4677, 0
        %4737 = vmatprep.subr.bf16.mxu0 %v4639
        %4738 = vmatpush1.bf16.msra.mxu0 %v4638
        %4739 = vmatprep.subr.bf16.mxu0 %v4647
        %4740 = vmatpush1.bf16.msra.mxu0 %v4646
        %4741 = vmatprep.subr.bf16.mxu0 %v4655
        %4742 = vmatpush1.bf16.msra.mxu0 %v4654
        %4743 = vmatprep.subr.bf16.mxu0 %v4663
        %4744 = vmatpush1.bf16.msra.mxu0 %v4662
        %4745 = vmatprep.subr.bf16.mxu0 %v4717
        %4746 = vmatpush1.bf16.msra.mxu0 %v4714
        %4747 = vmatprep.subr.bf16.mxu0 0
        %4748 = vmatpush1.bf16.msra.mxu0 0
        %4749 = vmatprep.subr.bf16.mxu0 0
        %4750 = vmatpush1.bf16.msra.mxu0 0
        %4751 = vmatprep.subr.bf16.mxu0 0
        %4752 = vmatpush1.bf16.msra.mxu0 0
        %4753 = vmatprep.subr.bf16.mxu0 0
        %4754 = vmatpush1.bf16.msra.mxu0 0
        %4755 = vmatprep.subr.bf16.mxu0 0
        %4756 = vmatpush1.bf16.msra.mxu0 0
        %4757 = vmatprep.subr.bf16.mxu0 0
        %4758 = vmatpush1.bf16.msra.mxu0 0
        %4759 = vmatprep.subr.bf16.mxu0 0
        %4760 = vmatpush1.bf16.msra.mxu0 0
        %4761 = vmatprep.subr.bf16.mxu0 0
        %4762 = vmatpush1.bf16.msra.mxu0 0
        %4763 = vmatprep.subr.bf16.mxu0 0
        %4764 = vmatpush1.bf16.msra.mxu0 0
        %4765 = vmatprep.subr.bf16.mxu0 0
        %4766 = vmatpush1.bf16.msra.mxu0 0
        %4767 = vmatprep.subr.bf16.mxu0 0
        %4768 = vmatpush1.bf16.msra.mxu0 0
        %4769 = vmatprep.mubr.bf16.mxu0 0
        %4770 = vmatmul.mubr.bf16.gmra.mrb[0].mxu0 %v4711
        %v4771 = vpop.f32.mrb[0].mxu0
        %v4772 = vadd.f32 0.0, %v4771
        %v4773 = vpop.f32.mrb[0].mxu0
        %v4774 = vadd.f32 0.0, %v4773
        %v4775 = vpop.f32.mrb[0].mxu0
        %v4776 = vpop.f32.mrb[0].mxu0
        %4777 = vdwg.mxu0
        %4778 = vmatprep.subr.bf16.mxu0 %v4641
        %4779 = vmatpush1.bf16.msra.mxu0 %v4640
        %4780 = vmatprep.subr.bf16.mxu0 %v4649
        %4781 = vmatpush1.bf16.msra.mxu0 %v4648
        %4782 = vmatprep.subr.bf16.mxu0 %v4657
        %4783 = vmatpush1.bf16.msra.mxu0 %v4656
        %4784 = vmatprep.subr.bf16.mxu0 %v4665
        %4785 = vmatpush1.bf16.msra.mxu0 %v4664
        %4786 = vmatprep.subr.bf16.mxu0 %v4723
        %4787 = vmatpush1.bf16.msra.mxu0 %v4720
        %4788 = vmatprep.subr.bf16.mxu0 0
        %4789 = vmatpush1.bf16.msra.mxu0 0
        %4790 = vmatprep.subr.bf16.mxu0 0
        %4791 = vmatpush1.bf16.msra.mxu0 0
        %4792 = vmatprep.subr.bf16.mxu0 0
        %4793 = vmatpush1.bf16.msra.mxu0 0
        %4794 = vmatprep.subr.bf16.mxu0 0
        %4795 = vmatpush1.bf16.msra.mxu0 0
        %4796 = vmatprep.subr.bf16.mxu0 0
        %4797 = vmatpush1.bf16.msra.mxu0 0
        %4798 = vmatprep.subr.bf16.mxu0 0
        %4799 = vmatpush1.bf16.msra.mxu0 0
        %4800 = vmatprep.subr.bf16.mxu0 0
        %4801 = vmatpush1.bf16.msra.mxu0 0
        %4802 = vmatprep.subr.bf16.mxu0 0
        %4803 = vmatpush1.bf16.msra.mxu0 0
        %4804 = vmatprep.subr.bf16.mxu0 0
        %4805 = vmatpush1.bf16.msra.mxu0 0
        %4806 = vmatprep.subr.bf16.mxu0 0
        %4807 = vmatpush1.bf16.msra.mxu0 0
        %4808 = vmatprep.subr.bf16.mxu0 0
        %4809 = vmatpush1.bf16.msra.mxu0 0
        %4810 = vmatprep.mubr.bf16.mxu0 0
        %4811 = vmatmul.mubr.bf16.gmra.mrb[0].mxu0 %v4711
        %v4812 = vpop.f32.mrb[0].mxu0
        %v4813 = vadd.f32 0.0, %v4812
        %v4814 = vpop.f32.mrb[0].mxu0
        %v4815 = vadd.f32 0.0, %v4814
        %v4816 = vpop.f32.mrb[0].mxu0
        %v4817 = vpop.f32.mrb[0].mxu0
        %4818 = vdwg.mxu0
        %4819 = vmatprep.subr.bf16.mxu0 %v4643
        %4820 = vmatpush1.bf16.msra.mxu0 %v4642
        %4821 = vmatprep.subr.bf16.mxu0 %v4651
        %4822 = vmatpush1.bf16.msra.mxu0 %v4650
        %4823 = vmatprep.subr.bf16.mxu0 %v4659
        %4824 = vmatpush1.bf16.msra.mxu0 %v4658
        %4825 = vmatprep.subr.bf16.mxu0 %v4667
        %4826 = vmatpush1.bf16.msra.mxu0 %v4666
        %4827 = vmatprep.subr.bf16.mxu0 %v4729
        %4828 = vmatpush1.bf16.msra.mxu0 %v4726
        %4829 = vmatprep.subr.bf16.mxu0 0
        %4830 = vmatpush1.bf16.msra.mxu0 0
        %4831 = vmatprep.subr.bf16.mxu0 0
        %4832 = vmatpush1.bf16.msra.mxu0 0
        %4833 = vmatprep.subr.bf16.mxu0 0
        %4834 = vmatpush1.bf16.msra.mxu0 0
        %4835 = vmatprep.subr.bf16.mxu0 0
        %4836 = vmatpush1.bf16.msra.mxu0 0
        %4837 = vmatprep.subr.bf16.mxu0 0
        %4838 = vmatpush1.bf16.msra.mxu0 0
        %4839 = vmatprep.subr.bf16.mxu0 0
        %4840 = vmatpush1.bf16.msra.mxu0 0
        %4841 = vmatprep.subr.bf16.mxu0 0
        %4842 = vmatpush1.bf16.msra.mxu0 0
        %4843 = vmatprep.subr.bf16.mxu0 0
        %4844 = vmatpush1.bf16.msra.mxu0 0
        %4845 = vmatprep.subr.bf16.mxu0 0
        %4846 = vmatpush1.bf16.msra.mxu0 0
        %4847 = vmatprep.subr.bf16.mxu0 0
        %4848 = vmatpush1.bf16.msra.mxu0 0
        %4849 = vmatprep.subr.bf16.mxu0 0
        %4850 = vmatpush1.bf16.msra.mxu0 0
        %4851 = vmatprep.mubr.bf16.mxu0 0
        %4852 = vmatmul.mubr.bf16.gmra.mrb[0].mxu0 %v4711
        %v4853 = vpop.f32.mrb[0].mxu0
        %v4854 = vadd.f32 0.0, %v4853
        %v4855 = vpop.f32.mrb[0].mxu0
        %v4856 = vadd.f32 0.0, %v4855
        %v4857 = vpop.f32.mrb[0].mxu0
        %v4858 = vpop.f32.mrb[0].mxu0
        %4859 = vdwg.mxu0
        %4860 = vmatprep.subr.bf16.mxu0 %v4645
        %4861 = vmatpush1.bf16.msra.mxu0 %v4644
        %4862 = vmatprep.subr.bf16.mxu0 %v4653
        %4863 = vmatpush1.bf16.msra.mxu0 %v4652
        %4864 = vmatprep.subr.bf16.mxu0 %v4661
        %4865 = vmatpush1.bf16.msra.mxu0 %v4660
        %4866 = vmatprep.subr.bf16.mxu0 %v4669
        %4867 = vmatpush1.bf16.msra.mxu0 %v4668
        %4868 = vmatprep.subr.bf16.mxu0 %v4735
        %4869 = vmatpush1.bf16.msra.mxu0 %v4732
        %4870 = vmatprep.subr.bf16.mxu0 0
        %4871 = vmatpush1.bf16.msra.mxu0 0
        %4872 = vmatprep.subr.bf16.mxu0 0
        %4873 = vmatpush1.bf16.msra.mxu0 0
        %4874 = vmatprep.subr.bf16.mxu0 0
        %4875 = vmatpush1.bf16.msra.mxu0 0
        %4876 = vmatprep.subr.bf16.mxu0 0
        %4877 = vmatpush1.bf16.msra.mxu0 0
        %4878 = vmatprep.subr.bf16.mxu0 0
        %4879 = vmatpush1.bf16.msra.mxu0 0
        %4880 = vmatprep.subr.bf16.mxu0 0
        %4881 = vmatpush1.bf16.msra.mxu0 0
        %4882 = vmatprep.subr.bf16.mxu0 0
        %4883 = vmatpush1.bf16.msra.mxu0 0
        %4884 = vmatprep.subr.bf16.mxu0 0
        %4885 = vmatpush1.bf16.msra.mxu0 0
        %4886 = vmatprep.subr.bf16.mxu0 0
        %4887 = vmatpush1.bf16.msra.mxu0 0
        %4888 = vmatprep.subr.bf16.mxu0 0
        %4889 = vmatpush1.bf16.msra.mxu0 0
        %4890 = vmatprep.subr.bf16.mxu0 0
        %4891 = vmatpush1.bf16.msra.mxu0 0
        %4892 = vmatprep.mubr.bf16.mxu0 0
        %4893 = vmatmul.mubr.bf16.gmra.mrb[0].mxu0 %v4711
        %v4894 = vpop.f32.mrb[0].mxu0
        %v4895 = vadd.f32 0.0, %v4894
        %v4896 = vpop.f32.mrb[0].mxu0
        %v4897 = vadd.f32 0.0, %v4896
        %v4898 = vpop.f32.mrb[0].mxu0
        %v4899 = vpop.f32.mrb[0].mxu0
        %4900 = vdwg.mxu0
        %v4901 = vadd.f32 %v4209, %v4772
        %v4902 = vadd.f32 %v4211, %v4774
        %v4903 = vadd.f32 %v4250, %v4813
        %v4904 = vadd.f32 %v4252, %v4815
        %v4905 = vadd.f32 %v4291, %v4854
        %v4906 = vadd.f32 %v4293, %v4856
        %v4907 = vadd.f32 %v4332, %v4895
        %v4908 = vadd.f32 %v4334, %v4897
        %v4909 = vld [vmem:[#allocation17] sm:$0xff]
        %4911 = vset.pattern.permute.xlu0 0
        %4912 = vperm.xlu0 %4911, %v4909
        %v4913 = vpop.permute.xlu0 %4912
        %v4915 = vadd.f32 %v4901, %v4913
        %v4916 = vadd.f32 %v4902, %v4913
        %v4917 = vadd.f32 %v4903, %v4913
        %v4918 = vadd.f32 %v4904, %v4913
        %v4919 = vadd.f32 %v4905, %v4913
        %v4920 = vadd.f32 %v4906, %v4913
        %v4921 = vadd.f32 %v4907, %v4913
        %v4922 = vadd.f32 %v4908, %v4913
        %v4923 = vld [vmem:[#allocation6] sm:$0xff]
        %v4924 = vunpack.c.l.bf16 %v4923
        %v4925 = vunpack.c.h.bf16 %v4923
        %v4928 = vlaneseq
        %v4929 = vshrl.u32 %v4928, 7
        %v4930 = vsub.s32 0, %v4929
        %v4931 = vrot.slane %v4924, %v4930
        %v4932 = vlaneseq
        %v4933 = vshrl.u32 %v4932, 7
        %v4934 = vsub.s32 2, %v4933
        %v4935 = vrot.slane %v4924, %v4934
        %v4936 = vlaneseq
        %v4937 = vshrl.u32 %v4936, 7
        %v4938 = vsub.s32 4, %v4937
        %v4939 = vrot.slane %v4924, %v4938
        %v4940 = vlaneseq
        %v4941 = vshrl.u32 %v4940, 7
        %v4942 = vsub.s32 6, %v4941
        %v4943 = vrot.slane %v4924, %v4942
        %v4944 = vlaneseq
        %v4945 = vshrl.u32 %v4944, 7
        %v4946 = vsub.s32 0, %v4945
        %v4947 = vrot.slane %v4925, %v4946
        %v4948 = vlaneseq
        %v4949 = vshrl.u32 %v4948, 7
        %v4950 = vsub.s32 2, %v4949
        %v4951 = vrot.slane %v4925, %v4950
        %v4952 = vlaneseq
        %v4953 = vshrl.u32 %v4952, 7
        %v4954 = vsub.s32 4, %v4953
        %v4955 = vrot.slane %v4925, %v4954
        %v4956 = vlaneseq
        %v4957 = vshrl.u32 %v4956, 7
        %v4958 = vsub.s32 6, %v4957
        %v4959 = vrot.slane %v4925, %v4958
        %v4968 = vlaneseq
        %v4969 = vshrl.u32 %v4968, 7
        %v4970 = vsub.s32 0, %v4969
        %v4971 = vrot.slane %v4931, %v4970
        %v4972 = vlaneseq
        %v4973 = vshrl.u32 %v4972, 7
        %v4974 = vsub.s32 0, %v4973
        %v4975 = vrot.slane %v4935, %v4974
        %v4976 = vlaneseq
        %v4977 = vshrl.u32 %v4976, 7
        %v4978 = vsub.s32 0, %v4977
        %v4979 = vrot.slane %v4939, %v4978
        %v4980 = vlaneseq
        %v4981 = vshrl.u32 %v4980, 7
        %v4982 = vsub.s32 0, %v4981
        %v4983 = vrot.slane %v4943, %v4982
        %v4984 = vlaneseq
        %v4985 = vshrl.u32 %v4984, 7
        %v4986 = vsub.s32 0, %v4985
        %v4987 = vrot.slane %v4947, %v4986
        %v4988 = vlaneseq
        %v4989 = vshrl.u32 %v4988, 7
        %v4990 = vsub.s32 0, %v4989
        %v4991 = vrot.slane %v4951, %v4990
        %v4992 = vlaneseq
        %v4993 = vshrl.u32 %v4992, 7
        %v4994 = vsub.s32 0, %v4993
        %v4995 = vrot.slane %v4955, %v4994
        %v4996 = vlaneseq
        %v4997 = vshrl.u32 %v4996, 7
        %v4998 = vsub.s32 0, %v4997
        %v4999 = vrot.slane %v4959, %v4998
        %v5000 = vmul.f32 %v4915, %v4971
        %v5001 = vmul.f32 %v4916, %v4975
        %v5002 = vmul.f32 %v4917, %v4979
        %v5003 = vmul.f32 %v4918, %v4983
        %v5004 = vmul.f32 %v4919, %v4987
        %v5005 = vmul.f32 %v4920, %v4991
        %v5006 = vmul.f32 %v4921, %v4995
        %v5007 = vmul.f32 %v4922, %v4999
        %v5008 = vadd.f32 %v5000, %v5001
        %v5009 = vadd.f32 %v5008, %v5002
        %v5010 = vadd.f32 %v5009, %v5003
        %v5011 = vadd.f32 %v5010, %v5004
        %v5012 = vadd.f32 %v5011, %v5005
        %v5013 = vadd.f32 %v5012, %v5006
        %v5014 = vadd.f32 %v5013, %v5007
        %5015 = vadd.xlane.f32.xlu0 %v5014
        %v5016 = vpop.xlane.xlu0 %5015
        %v5017 = vadd.f32 %v5016, 0.0
        %v5018 = vmul.f32 %v5000, %v4915
        %v5019 = vmul.f32 %v5001, %v4916
        %v5020 = vmul.f32 %v5002, %v4917
        %v5021 = vmul.f32 %v5003, %v4918
        %v5022 = vmul.f32 %v5004, %v4919
        %v5023 = vmul.f32 %v5005, %v4920
        %v5024 = vmul.f32 %v5006, %v4921
        %v5025 = vmul.f32 %v5007, %v4922
        %v5026 = vadd.f32 %v5018, %v5019
        %v5027 = vadd.f32 %v5026, %v5020
        %v5028 = vadd.f32 %v5027, %v5021
        %v5029 = vadd.f32 %v5028, %v5022
        %v5030 = vadd.f32 %v5029, %v5023
        %v5031 = vadd.f32 %v5030, %v5024
        %v5032 = vadd.f32 %v5031, %v5025
        %5033 = vadd.xlane.f32.xlu0 %v5032
        %v5034 = vpop.xlane.xlu0 %5033
        %v5035 = vadd.f32 %v5034, 0.0
        %v5036 = vpack.c.bf16 %v4915, %v4915
        %v5037 = vpack.c.bf16 %v4916, %v4916
        %v5038 = vpack.c.bf16 %v4917, %v4917
        %v5039 = vpack.c.bf16 %v4918, %v4918
        %v5040 = vpack.c.bf16 %v4919, %v4919
        %v5041 = vpack.c.bf16 %v4920, %v4920
        %v5042 = vpack.c.bf16 %v4921, %v4921
        %v5043 = vpack.c.bf16 %v4922, %v4922
        %v5052 = vunpack.c.l.b16 %v5036
        %v5053 = vunpack.c.l.b16 %v5037
        %v5054 = vunpack.c.l.b16 %v5038
        %v5055 = vunpack.c.l.b16 %v5039
        %v5056 = vunpack.c.l.b16 %v5040
        %v5057 = vunpack.c.l.b16 %v5041
        %v5058 = vunpack.c.l.b16 %v5042
        %v5059 = vunpack.c.l.b16 %v5043
        %v5060 = vpack.c.b16 %v5053, %v5052
        %v5061 = vpack.c.b16 %v5055, %v5054
        %v5062 = vpack.c.b16 %v5057, %v5056
        %v5063 = vpack.c.b16 %v5059, %v5058
        %5068 = vst [vmem:[%s533] sm:$0xff] %v5060
        %5069 = vst [vmem:[%s533 + $0x8] sm:$0xff] %v5061
        %5070 = vst [vmem:[%s533 + $0x10] sm:$0xff] %v5062
        %5071 = vst [vmem:[%s533 + $0x18] sm:$0xff] %v5063
        %v5072 = vld [vmem:[#allocation8] sm:$0xff]
        %v5073 = vsel %vm2736, %v5017, %v5035
        %v5075 = vsel %vm2738, %v5072, 0
        %5077 = vmatprep.subr.mxu0 0.0
        %5078 = vmatpush1.msra.mxu0 %v5073
        %5079 = vmatprep.subr.mxu0 0.0
        %5080 = vmatpush1.msra.mxu0 0.0
        %5081 = vmatprep.subr.mxu0 0.0
        %5082 = vmatpush1.msra.mxu0 0.0
        %5083 = vmatprep.subr.mxu0 0.0
        %5084 = vmatpush1.msra.mxu0 0.0
        %5085 = vmatprep.subr.mxu0 0.0
        %5086 = vmatpush1.msra.mxu0 0.0
        %5087 = vmatprep.subr.mxu0 0.0
        %5088 = vmatpush1.msra.mxu0 0.0
        %5089 = vmatprep.subr.mxu0 0.0
        %5090 = vmatpush1.msra.mxu0 0.0
        %5091 = vmatprep.subr.mxu0 0.0
        %5092 = vmatpush1.msra.mxu0 0.0
        %5093 = vmatprep.subr.mxu0 0.0
        %5094 = vmatpush1.msra.mxu0 0.0
        %5095 = vmatprep.subr.mxu0 0.0
        %5096 = vmatpush1.msra.mxu0 0.0
        %5097 = vmatprep.subr.mxu0 0.0
        %5098 = vmatpush1.msra.mxu0 0.0
        %5099 = vmatprep.subr.mxu0 0.0
        %5100 = vmatpush1.msra.mxu0 0.0
        %5101 = vmatprep.subr.mxu0 0.0
        %5102 = vmatpush1.msra.mxu0 0.0
        %5103 = vmatprep.subr.mxu0 0.0
        %5104 = vmatpush1.msra.mxu0 0.0
        %5105 = vmatprep.subr.mxu0 0.0
        %5106 = vmatpush1.msra.mxu0 0.0
        %5107 = vmatprep.subr.mxu0 0.0
        %5108 = vmatpush1.msra.mxu0 0.0
        %5109 = vmatprep.subr.mxu0 0.0
        %5110 = vmatpush1.msra.mxu0 0.0
        %5111 = vmatprep.subr.mxu0 0.0
        %5112 = vmatpush1.msra.mxu0 0.0
        %5113 = vmatprep.subr.mxu0 0.0
        %5114 = vmatpush1.msra.mxu0 0.0
        %5115 = vmatprep.subr.mxu0 0.0
        %5116 = vmatpush1.msra.mxu0 0.0
        %5117 = vmatprep.subr.mxu0 0.0
        %5118 = vmatpush1.msra.mxu0 0.0
        %5119 = vmatprep.subr.mxu0 0.0
        %5120 = vmatpush1.msra.mxu0 0.0
        %5121 = vmatprep.subr.mxu0 0.0
        %5122 = vmatpush1.msra.mxu0 0.0
        %5123 = vmatprep.subr.mxu0 0.0
        %5124 = vmatpush1.msra.mxu0 0.0
        %5125 = vmatprep.subr.mxu0 0.0
        %5126 = vmatpush1.msra.mxu0 0.0
        %5127 = vmatprep.subr.mxu0 0.0
        %5128 = vmatpush1.msra.mxu0 0.0
        %5129 = vmatprep.subr.mxu0 0.0
        %5130 = vmatpush1.msra.mxu0 0.0
        %5131 = vmatprep.subr.mxu0 0.0
        %5132 = vmatpush1.msra.mxu0 0.0
        %5133 = vmatprep.subr.mxu0 0.0
        %5134 = vmatpush1.msra.mxu0 0.0
        %5135 = vmatprep.subr.mxu0 0.0
        %5136 = vmatpush1.msra.mxu0 0.0
        %5137 = vmatprep.subr.mxu0 0.0
        %5138 = vmatpush1.msra.mxu0 0.0
        %5139 = vmatprep.subr.mxu0 0.0
        %5140 = vmatpush1.msra.mxu0 0.0
        %5141 = vmatprep.mubr.f32.mxu0 0.0
        %5142 = vmatmul.mubr.f32.gmra.mrb[0].mxu0 %v5075
        %v5143 = vpop.f32.mrb[0].mxu0
        %v5144 = vadd.f32 0.0, %v5143
        %v5145 = vpop.f32.mrb[0].mxu0
        %5146 = vdwg.mxu0
        %v5147 = vmul.f32 %v5144, %v5144
        %5149 = vrot.lane.b32.xlu0 %v5147, 1
        %v5150 = vpop.permute.xlu0 %5149
        %v5152 = vsub.f32 %v5144, %v5150
        %v5153 = vld [vmem:[#allocation18] sm:$0xff]
        %v5154 = vadd.f32 %v5152, 1e-05
        %v5155 = vrsqrt.pop %v5154
        %5157 = vrot.lane.b32.xlu0 %v5155, 127
        %v5158 = vpop.permute.xlu0 %5157
        %v5160 = vmul.f32 %v5153, %v5158
        %v5161 = vld [vmem:[#allocation20] sm:$0xff]
        %v5162 = vmul.f32 %v5144, %v5160
        %v5163 = vsub.f32 %v5161, %v5162
        %v5164 = vld [vmem:[%s533] sm:$0xff]
        %v5165 = vld [vmem:[%s533 + $0x8] sm:$0xff]
        %v5166 = vld [vmem:[%s533 + $0x10] sm:$0xff]
        %v5167 = vld [vmem:[%s533 + $0x18] sm:$0xff]
        %v5168 = vunpack.c.l.bf16 %v5164
        %v5169 = vunpack.c.h.bf16 %v5164
        %v5170 = vunpack.c.l.bf16 %v5165
        %v5171 = vunpack.c.h.bf16 %v5165
        %v5172 = vunpack.c.l.bf16 %v5166
        %v5173 = vunpack.c.h.bf16 %v5166
        %v5174 = vunpack.c.l.bf16 %v5167
        %v5175 = vunpack.c.h.bf16 %v5167
        %v5176 = vld [vmem:[#allocation6] sm:$0xff]
        %v5177 = vunpack.c.l.bf16 %v5176
        %v5178 = vunpack.c.h.bf16 %v5176
        %5180 = vset.pattern.permute.xlu0 0
        %5181 = vperm.xlu0 %5180, %v5160
        %v5182 = vpop.permute.xlu0 %5181
        %v5184 = vmul.f32 %v5168, %v5182
        %v5185 = vmul.f32 %v5169, %v5182
        %v5186 = vmul.f32 %v5170, %v5182
        %v5187 = vmul.f32 %v5171, %v5182
        %v5188 = vmul.f32 %v5172, %v5182
        %v5189 = vmul.f32 %v5173, %v5182
        %v5190 = vmul.f32 %v5174, %v5182
        %v5191 = vmul.f32 %v5175, %v5182
        %5193 = vset.pattern.permute.xlu0 0
        %5194 = vperm.xlu0 %5193, %v5163
        %v5195 = vpop.permute.xlu0 %5194
        %v5197 = vadd.f32 %v5184, %v5195
        %v5198 = vadd.f32 %v5185, %v5195
        %v5199 = vadd.f32 %v5186, %v5195
        %v5200 = vadd.f32 %v5187, %v5195
        %v5201 = vadd.f32 %v5188, %v5195
        %v5202 = vadd.f32 %v5189, %v5195
        %v5203 = vadd.f32 %v5190, %v5195
        %v5204 = vadd.f32 %v5191, %v5195
        %v5205 = vmax.f32 %v5197, 0.0
        %v5206 = vmax.f32 %v5198, 0.0
        %v5207 = vmax.f32 %v5199, 0.0
        %v5208 = vmax.f32 %v5200, 0.0
        %v5209 = vmax.f32 %v5201, 0.0
        %v5210 = vmax.f32 %v5202, 0.0
        %v5211 = vmax.f32 %v5203, 0.0
        %v5212 = vmax.f32 %v5204, 0.0
        %v5215 = vlaneseq
        %v5216 = vshrl.u32 %v5215, 7
        %v5217 = vsub.s32 0, %v5216
        %v5218 = vrot.slane %v5177, %v5217
        %v5219 = vlaneseq
        %v5220 = vshrl.u32 %v5219, 7
        %v5221 = vsub.s32 2, %v5220
        %v5222 = vrot.slane %v5177, %v5221
        %v5223 = vlaneseq
        %v5224 = vshrl.u32 %v5223, 7
        %v5225 = vsub.s32 4, %v5224
        %v5226 = vrot.slane %v5177, %v5225
        %v5227 = vlaneseq
        %v5228 = vshrl.u32 %v5227, 7
        %v5229 = vsub.s32 6, %v5228
        %v5230 = vrot.slane %v5177, %v5229
        %v5231 = vlaneseq
        %v5232 = vshrl.u32 %v5231, 7
        %v5233 = vsub.s32 0, %v5232
        %v5234 = vrot.slane %v5178, %v5233
        %v5235 = vlaneseq
        %v5236 = vshrl.u32 %v5235, 7
        %v5237 = vsub.s32 2, %v5236
        %v5238 = vrot.slane %v5178, %v5237
        %v5239 = vlaneseq
        %v5240 = vshrl.u32 %v5239, 7
        %v5241 = vsub.s32 4, %v5240
        %v5242 = vrot.slane %v5178, %v5241
        %v5243 = vlaneseq
        %v5244 = vshrl.u32 %v5243, 7
        %v5245 = vsub.s32 6, %v5244
        %v5246 = vrot.slane %v5178, %v5245
        %v5255 = vlaneseq
        %v5256 = vshrl.u32 %v5255, 7
        %v5257 = vsub.s32 0, %v5256
        %v5258 = vrot.slane %v5218, %v5257
        %v5259 = vlaneseq
        %v5260 = vshrl.u32 %v5259, 7
        %v5261 = vsub.s32 0, %v5260
        %v5262 = vrot.slane %v5222, %v5261
        %v5263 = vlaneseq
        %v5264 = vshrl.u32 %v5263, 7
        %v5265 = vsub.s32 0, %v5264
        %v5266 = vrot.slane %v5226, %v5265
        %v5267 = vlaneseq
        %v5268 = vshrl.u32 %v5267, 7
        %v5269 = vsub.s32 0, %v5268
        %v5270 = vrot.slane %v5230, %v5269
        %v5271 = vlaneseq
        %v5272 = vshrl.u32 %v5271, 7
        %v5273 = vsub.s32 0, %v5272
        %v5274 = vrot.slane %v5234, %v5273
        %v5275 = vlaneseq
        %v5276 = vshrl.u32 %v5275, 7
        %v5277 = vsub.s32 0, %v5276
        %v5278 = vrot.slane %v5238, %v5277
        %v5279 = vlaneseq
        %v5280 = vshrl.u32 %v5279, 7
        %v5281 = vsub.s32 0, %v5280
        %v5282 = vrot.slane %v5242, %v5281
        %v5283 = vlaneseq
        %v5284 = vshrl.u32 %v5283, 7
        %v5285 = vsub.s32 0, %v5284
        %v5286 = vrot.slane %v5246, %v5285
        %v5287 = vmul.f32 %v5205, %v5258
        %v5288 = vmul.f32 %v5206, %v5262
        %v5289 = vmul.f32 %v5207, %v5266
        %v5290 = vmul.f32 %v5208, %v5270
        %v5291 = vmul.f32 %v5209, %v5274
        %v5292 = vmul.f32 %v5210, %v5278
        %v5293 = vmul.f32 %v5211, %v5282
        %v5294 = vmul.f32 %v5212, %v5286
        %v5295 = vpack.c.bf16 %v5287, %v5287
        %v5296 = vpack.c.bf16 %v5288, %v5288
        %v5297 = vpack.c.bf16 %v5289, %v5289
        %v5298 = vpack.c.bf16 %v5290, %v5290
        %v5299 = vpack.c.bf16 %v5291, %v5291
        %v5300 = vpack.c.bf16 %v5292, %v5292
        %v5301 = vpack.c.bf16 %v5293, %v5293
        %v5302 = vpack.c.bf16 %v5294, %v5294
        %v5311 = vunpack.c.l.b16 %v5295
        %v5312 = vunpack.c.l.b16 %v5296
        %v5313 = vunpack.c.l.b16 %v5297
        %v5314 = vunpack.c.l.b16 %v5298
        %v5315 = vunpack.c.l.b16 %v5299
        %v5316 = vunpack.c.l.b16 %v5300
        %v5317 = vunpack.c.l.b16 %v5301
        %v5318 = vunpack.c.l.b16 %v5302
        %v5319 = vpack.c.b16 %v5312, %v5311
        %v5320 = vpack.c.b16 %v5314, %v5313
        %v5321 = vpack.c.b16 %v5316, %v5315
        %v5322 = vpack.c.b16 %v5318, %v5317
        %5327 = vst [vmem:[%s533] sm:$0xff] %v5319
        %5328 = vst [vmem:[%s533 + $0x8] sm:$0xff] %v5320
        %5329 = vst [vmem:[%s533 + $0x10] sm:$0xff] %v5321
        %5330 = vst [vmem:[%s533 + $0x18] sm:$0xff] %v5322
        %s5331 = sand.u32 %s277, 1
        %s5332 = scalar_lea.sflag [#allocation5], %s5331
        %s5333 = sand.u32 %s277, 1
        %s5334 = smul.addr %s5333, 32
        %s5335 = scalar_lea.vmem [#allocation21], %s5334
        // Predicated region
        $region109: #{up_block_3d.1} parent=63 // pred_check
          %p5336 = pneg %p287
        $region110: #{up_block_3d.1} parent=63 // pred_check_branch
          %5338 = sbr.rel (%p5336) target = $region112
        $region111: #{up_block_3d.1} parent=63 // pred_region
          %s5340 = ssub.s32 512, 512
          %5341 = vsyncadd %s5332, %s5340
          %s5342 = smul.addr %s33, 8
          %s5343 = smul.addr %s5342, 64
          %s5344 = scalar_lea.hbm %s11, %s5343
          %s5346 = sshll.u32 %s5335, 4
          %s5347 = int_to_ptr.vmem [resolvable:$true] %s5346
          %5349 = dma.vmem_to_hbm [thread:$0]  %s5347, 512, %s5344, %s5332
        $region112: #{up_block_3d.1} parent=63 // pred_fallthru
          _
      $region64: #{up_block_3d.1} parent=5 // pred_fallthru
        _
      %p5350 = scmp.le.s32.totalorder 2, %s28
      // Predicated region
      $region113: #{up_block_3d.1} parent=5 // pred_check
        %p5351 = pneg %p5350
      $region114: #{up_block_3d.1} parent=5 // pred_check_branch
        %5353 = sbr.rel (%p5351) target = $region116
      $region115: #{up_block_3d.1} parent=5 // pred_region
        %s5354 = ssub.s32 %s28, 2
        // Predicated region
        $region117: #{up_block_3d.1} parent=115 // pred_check
          %p5355 = pneg %p293
        $region118: #{up_block_3d.1} parent=115 // pred_check_branch
          %5357 = sbr.rel (%p5355) target = $region120
        $region119: #{up_block_3d.1} parent=115 // pred_region
          %s5358 = sand.u32 %s278, 1
          %s5359 = scalar_lea.sflag [#allocation5], %s5358
          %s5360 = sand.u32 %s278, 1
          %s5361 = smul.addr %s5360, 32
          %s5362 = scalar_lea.vmem [#allocation21], %s5361
          %5363 = dma.done %s5359, 512
        $region120: #{up_block_3d.1} parent=115 // pred_fallthru
          _
      $region116: #{up_block_3d.1} parent=5 // pred_fallthru
        _
    $region6: #{up_block_3d.1} parent=1 // loop_footer
      %s32 = sadd.s32 1, %s28
    $region7: #{up_block_3d.1} parent=1 // loop_footer_branch
      %27 = sbr.rel target = $region3
    $region8: #{up_block_3d.1} parent=1 // loop_exit
      _
    %5364 = vsyncpa [#allocation4], 1
    %s5365 = scalar_lea.sflag [#allocation4], 1
    %5366 = vsyncpa %s5365, 1
    %5367 = vsyncpa [#allocation7], 1
    %5368 = vsyncpa [#allocation10], 1
    %5369 = vsyncpa [#allocation13], 1
    %5370 = vsyncpa [#allocation16], 1
    %5371 = vsyncpa [#allocation19], 1
    %5372 = vsyncpa [#allocation5], 1
    %s5373 = scalar_lea.sflag [#allocation5], 1
    %5374 = vsyncpa %s5373, 1

</llo_original>
